<compile_context>
chip_gen: v7x
topology: tpu7x:2x2x1
jax: 0.10.0
libtpu: 0.0.40
codegen_flags: <defaults>
</compile_context>

<pallas_src>
import jax
import jax.numpy as jnp
from jax.experimental import pallas as pl
from jax.experimental.pallas import tpu as pltpu

IN_CHANNELS = 256            # fixed by the hard-coded nn.Conv1d(256, 256, 1) in TimeConv.forward
KERNEL_SIZES = (3, 5, 7)
EMBED_DIM = 768
MAXPAD = max(KERNEL_SIZES) // 2
N_SHIFT = 2 * MAXPAD + 1


def _default_conv_dtype():
    """bf16 tap arithmetic only on generations with a bf16 VPU (v6e/v7x); v5e and
    unknown devices fall back to f32 (bf16 elementwise would be emulated there)."""
    try:
        kind = jax.devices()[0].device_kind.lower()
    except Exception:
        return jnp.float32
    if ("v6" in kind) or ("v7" in kind) or ("tpu7" in kind):
        return jnp.bfloat16
    return jnp.float32


def _pick_block_b(B, T, target_rows=512):
    """Batch-block size Bb.

    Aim for Bb*T ~= target_rows of MXU M per grid step (fills the 256-tall MXU on
    v6e/v7x and amortizes the ~0.35us per-step pipeline overhead + the resident folded
    weight).  B does NOT need to be a multiple of Bb — the wrapper pads the batch.
    We no longer force >=2 grid steps: that only matters for v7x's two TensorCores and
    it is exactly what collapsed M to 16 at B=2; pass block_b explicitly to shard there.
    """
    return max(1, min(B, pl.cdiv(target_rows, T)))


def _make_kernel(Bb, T, C, D, conv_dtype):
    def kernel(x_ref, w3_ref, w5_ref, w7_ref, bdw_ref, wf_ref, bf_ref, o_ref, y_ref):
        # Hoist the 7 distinct shifted time views; each unaligned sublane slice (XLU
        # rotate) and VMEM load of x happens once and is reused by all three branches.
        # x_ref is never materialized whole — only these T-row windows are loaded.
        xs = [x_ref[:, s:s + T, :].astype(conv_dtype) for s in range(N_SHIFT)]
        bdw = bdw_ref[...]                                   # [3, C] conv_dtype
        for i, (k, w_ref) in enumerate(zip(KERNEL_SIZES, (w3_ref, w5_ref, w7_ref))):
            off = MAXPAD - k // 2
            w = w_ref[...]                                   # [k, C] conv_dtype
            # Depthwise conv along time on the VPU; first tap initializes the
            # accumulator and carries the depthwise bias (no zero-fill + extra add).
            y = bdw[i][None, None, :] + w[0][None, None, :] * xs[off]
            for j in range(1, k):
                y = y + w[j][None, None, :] * xs[off + j]
            # Lane-aligned column store (offsets 0/256/512 are multiples of 128 lanes)
            # into the bf16 [Bb*T, 3C] scratch: plain vst, no lane shuffle.
            y_ref[:, i * C:(i + 1) * C] = y.reshape(Bb * T, C).astype(jnp.bfloat16)
        # One K=3C matmul; the MXU accumulates over K internally (MRB in-place on v7x),
        # so no [M, D] f32 accumulator round-trips through the vld/vst slots.
        o_ref[...] = jnp.dot(y_ref[...], wf_ref[...],
                             preferred_element_type=jnp.float32) + bf_ref[...]

    return kernel


def eeg_to_text_embeddings(x, params, *, block_b=None, conv_dtype=None):
    """x: [B, C, T] float32 (PyTorch NCT).  Returns [B, T, embedding_dim] float32."""
    B, C, T = x.shape
    D = params["wp"].shape[0]
    n = len(KERNEL_SIZES)
    T_pad = T + 2 * MAXPAD

    if conv_dtype is None:
        conv_dtype = _default_conv_dtype()

    Bb = int(block_b) if block_b is not None else _pick_block_b(B, T)
    n_blocks = int(pl.cdiv(B, Bb))
    B_pad = n_blocks * Bb

    # ---- wrapper-side glue (runs once, outside the kernel) ----
    # Pad time with the max padding once (per-branch offsets handled in-kernel), pad the
    # batch up to a multiple of Bb, move to [B_pad, T_pad, C] so C sits on lanes.
    x_tc = jnp.transpose(
        jnp.pad(x, ((0, B_pad - B), (0, 0), (MAXPAD, MAXPAD))), (0, 2, 1)
    )                                                       # [B_pad, T_pad, C] f32

    w_dw_t = [w.T.astype(conv_dtype) for w in params["w_dw"]]   # [k, C] each
    bdw = jnp.stack(params["b_dw"]).astype(conv_dtype)          # [3, C]

    # Fold each branch's 1x1 conv into the projection and concatenate over branches:
    #   Wf_i[c, d] = sum_o w1_i[o, c] * wp[d, i*C + o]      (shape [C, D])
    #   bf[d]      = bp[d] + sum_i sum_o wp[d, i*C + o] * b1_i[o]
    wp = params["wp"]                                       # [D, 3C]
    wf_list, bf = [], params["bp"]
    for i in range(n):
        wp_i = wp[:, i * C:(i + 1) * C]                     # [D, C]
        wf_list.append(params["w1"][i].T @ wp_i.T)          # [C, D]
        bf = bf + wp_i @ params["b1"][i]
    wf = jnp.concatenate(wf_list, axis=0).astype(jnp.bfloat16)   # [3C, D] bf16 MXU operand
    bf = bf[None, :].astype(jnp.float32)                         # [1, D]

    # Per-step VMEM footprint (double-buffered in/out blocks + weights + scratch) with
    # generous headroom; matters once Bb is raised on v5e (16 MiB default scoped VMEM).
    conv_itemsize = jnp.dtype(conv_dtype).itemsize
    x_blk_bytes = Bb * T_pad * C * 4
    out_blk_bytes = Bb * T * D * 4
    weight_bytes = (sum(KERNEL_SIZES) + n) * C * conv_itemsize + n * C * D * 2 + D * 4
    scratch_bytes = Bb * T * n * C * 2
    est = 2 * (x_blk_bytes + out_blk_bytes + weight_bytes) + scratch_bytes
    vmem_limit = int(min(48 << 20, max(32 << 20, 2 * est + (4 << 20))))

    kernel = _make_kernel(Bb, T, C, D, conv_dtype)
    out2d = pl.pallas_call(
        kernel,
        out_shape=jax.ShapeDtypeStruct((B_pad * T, D), jnp.float32),
        grid=(n_blocks,),
        in_specs=[
            pl.BlockSpec((Bb, T_pad, C), lambda b: (b, 0, 0)),
            pl.BlockSpec((KERNEL_SIZES[0], C), lambda b: (0, 0)),
            pl.BlockSpec((KERNEL_SIZES[1], C), lambda b: (0, 0)),
            pl.BlockSpec((KERNEL_SIZES[2], C), lambda b: (0, 0)),
            pl.BlockSpec((n, C), lambda b: (0, 0)),
            pl.BlockSpec((n * C, D), lambda b: (0, 0)),
            pl.BlockSpec((1, D), lambda b: (0, 0)),
        ],
        out_specs=pl.BlockSpec((Bb * T, D), lambda b: (b, 0)),
        scratch_shapes=[pltpu.VMEM((Bb * T, n * C), jnp.bfloat16)],
        compiler_params=pltpu.CompilerParams(
            dimension_semantics=("parallel",),
            vmem_limit_bytes=vmem_limit,
        ),
    )(x_tc, w_dw_t[0], w_dw_t[1], w_dw_t[2], bdw, wf, bf)

    # Free metadata in XLA: un-flatten rows and drop the batch padding.
    return out2d.reshape(B_pad, T, D)[:B]


def reference(x, params):
    """Pure-JAX f32 reference of TimeConv + projection + permute (PyTorch semantics)."""
    B, C, T = x.shape
    outs = []
    for i, k in enumerate(KERNEL_SIZES):
        pad = k // 2
        xp = jnp.pad(x, ((0, 0), (0, 0), (pad, pad)))
        y = sum(params["w_dw"][i][:, j][None, :, None] * xp[:, :, j:j + T] for j in range(k))
        y = y + params["b_dw"][i][None, :, None]
        z = jnp.einsum('oc,bct->bot', params["w1"][i], y) + params["b1"][i][None, :, None]
        outs.append(z)
    fused = jnp.concatenate(outs, axis=1)                          # [B, 3C, T]
    e = jnp.einsum('dk,bkt->bdt', params["wp"], fused) + params["bp"][None, :, None]
    return jnp.transpose(e, (0, 2, 1))                             # [B, T, D]


def init_params(key, C, D):
    ks = jax.random.split(key, 16)
    it = iter(ks)
    scale = 0.05
    params = {
        # depthwise Conv1d(C, C, k, groups=C): weight [C, 1, k] -> effective [C, k], bias [C]
        "w_dw": [scale * jax.random.normal(next(it), (C, k), jnp.float32) for k in KERNEL_SIZES],
        "b_dw": [scale * jax.random.normal(next(it), (C,), jnp.float32) for _ in KERNEL_SIZES],
        # per-branch Conv1d(256, 256, 1): weight [C, C, 1] -> [C, C], bias [C]
        "w1": [scale * jax.random.normal(next(it), (C, C), jnp.float32) for _ in KERNEL_SIZES],
        "b1": [scale * jax.random.normal(next(it), (C,), jnp.float32) for _ in KERNEL_SIZES],
        # projection Conv1d(3C, D, 1): weight [D, 3C, 1] -> [D, 3C], bias [D]
        "wp": scale * jax.random.normal(next(it), (D, len(KERNEL_SIZES) * C), jnp.float32),
        "bp": scale * jax.random.normal(next(it), (D,), jnp.float32),
    }
    return params


if __name__ == "__main__":
    B, C, T, D = 2, IN_CHANNELS, 16, EMBED_DIM
    key = jax.random.PRNGKey(0)
    k_x, k_p = jax.random.split(key)
    eeg = jax.random.normal(k_x, (B, C, T), jnp.float32)          # [batch, in_channels, time_steps]
    params = init_params(k_p, C, D)

    out = jax.block_until_ready(eeg_to_text_embeddings(eeg, params))
    ref = jax.block_until_ready(reference(eeg, params))

    assert out.shape == (B, T, D)
    # bf16 MXU operands (and bf16 taps on v6e/v7x) with f32 accumulation -> loosened
    # tolerance vs the pure-f32 reference.
    assert jnp.allclose(out, ref, rtol=1e-2, atol=1e-2), float(jnp.max(jnp.abs(out - ref)))

    print("KERNEL_OK")
</pallas_src>

<mosaic_0001>
module attributes {stable_mosaic.version = 11 : i64} {
  func.func @kernel(%arg0: i32, %arg1: memref<2x22x256xf32, #tpu.memory_space<vmem>>, %arg2: memref<3x256xf32, #tpu.memory_space<vmem>>, %arg3: memref<5x256xf32, #tpu.memory_space<vmem>>, %arg4: memref<7x256xf32, #tpu.memory_space<vmem>>, %arg5: memref<3x256xf32, #tpu.memory_space<vmem>>, %arg6: memref<768x768xbf16, #tpu.memory_space<vmem>>, %arg7: memref<1x768xf32, #tpu.memory_space<vmem>>, %arg8: memref<32x768xf32, #tpu.memory_space<vmem>>, %arg9: memref<32x768xbf16, #tpu.memory_space<vmem>>) attributes {dimension_semantics = [#tpu.dimension_semantics<parallel>], iteration_bounds = array<i64: 1>, scalar_prefetch = 0 : i64, scratch_operands = 1 : i64, tpu.core_type = #tpu.core_type<tc>, window_params = [{transform_indices = @transform_0, window_bounds = array<i64: 2, 22, 256>}, {pipeline_mode = #tpu.pipeline_mode<synchronous>, transform_indices = @transform_1, window_bounds = array<i64: 3, 256>}, {pipeline_mode = #tpu.pipeline_mode<synchronous>, transform_indices = @transform_2, window_bounds = array<i64: 5, 256>}, {pipeline_mode = #tpu.pipeline_mode<synchronous>, transform_indices = @transform_3, window_bounds = array<i64: 7, 256>}, {pipeline_mode = #tpu.pipeline_mode<synchronous>, transform_indices = @transform_4, window_bounds = array<i64: 3, 256>}, {pipeline_mode = #tpu.pipeline_mode<synchronous>, transform_indices = @transform_5, window_bounds = array<i64: 768, 768>}, {pipeline_mode = #tpu.pipeline_mode<synchronous>, transform_indices = @transform_6, window_bounds = array<i64: 1, 768>}, {transform_indices = @transform_7, window_bounds = array<i64: 32, 768>}]} {
    %c0 = arith.constant 0 : index
    %c0_0 = arith.constant 0 : index
    %c0_1 = arith.constant 0 : index
    %0 = vector.load %arg1[%c0, %c0_0, %c0_1] : memref<2x22x256xf32, #tpu.memory_space<vmem>>, vector<2x16x256xf32>
    %c0_2 = arith.constant 0 : index
    %c1 = arith.constant 1 : index
    %c0_3 = arith.constant 0 : index
    %1 = vector.load %arg1[%c0_2, %c1, %c0_3] : memref<2x22x256xf32, #tpu.memory_space<vmem>>, vector<2x16x256xf32>
    %c0_4 = arith.constant 0 : index
    %c2 = arith.constant 2 : index
    %c0_5 = arith.constant 0 : index
    %2 = vector.load %arg1[%c0_4, %c2, %c0_5] : memref<2x22x256xf32, #tpu.memory_space<vmem>>, vector<2x16x256xf32>
    %c0_6 = arith.constant 0 : index
    %c3 = arith.constant 3 : index
    %c0_7 = arith.constant 0 : index
    %3 = vector.load %arg1[%c0_6, %c3, %c0_7] : memref<2x22x256xf32, #tpu.memory_space<vmem>>, vector<2x16x256xf32>
    %c0_8 = arith.constant 0 : index
    %c4 = arith.constant 4 : index
    %c0_9 = arith.constant 0 : index
    %4 = vector.load %arg1[%c0_8, %c4, %c0_9] : memref<2x22x256xf32, #tpu.memory_space<vmem>>, vector<2x16x256xf32>
    %c0_10 = arith.constant 0 : index
    %c5 = arith.constant 5 : index
    %c0_11 = arith.constant 0 : index
    %5 = vector.load %arg1[%c0_10, %c5, %c0_11] : memref<2x22x256xf32, #tpu.memory_space<vmem>>, vector<2x16x256xf32>
    %c0_12 = arith.constant 0 : index
    %c6 = arith.constant 6 : index
    %c0_13 = arith.constant 0 : index
    %6 = vector.load %arg1[%c0_12, %c6, %c0_13] : memref<2x22x256xf32, #tpu.memory_space<vmem>>, vector<2x16x256xf32>
    %c0_14 = arith.constant 0 : index
    %c0_15 = arith.constant 0 : index
    %7 = vector.load %arg5[%c0_14, %c0_15] : memref<3x256xf32, #tpu.memory_space<vmem>>, vector<3x256xf32>
    %c0_16 = arith.constant 0 : index
    %c0_17 = arith.constant 0 : index
    %8 = vector.load %arg2[%c0_16, %c0_17] : memref<3x256xf32, #tpu.memory_space<vmem>>, vector<3x256xf32>
    %9 = vector.extract_strided_slice %7 {offsets = [0, 0], sizes = [1, 256], strides = [1, 1]} : vector<3x256xf32> to vector<1x256xf32>
    %10 = vector.shape_cast %9 : vector<1x256xf32> to vector<256xf32>
    %11 = vector.shape_cast %10 : vector<256xf32> to vector<1x1x256xf32>
    %12 = vector.extract_strided_slice %8 {offsets = [0, 0], sizes = [1, 256], strides = [1, 1]} : vector<3x256xf32> to vector<1x256xf32>
    %13 = vector.shape_cast %12 : vector<1x256xf32> to vector<256xf32>
    %14 = vector.shape_cast %13 : vector<256xf32> to vector<1x1x256xf32>
    %15 = vector.broadcast %14 : vector<1x1x256xf32> to vector<2x16x256xf32>
    %16 = arith.mulf %15, %2 : vector<2x16x256xf32>
    %17 = vector.broadcast %11 : vector<1x1x256xf32> to vector<2x16x256xf32>
    %18 = arith.addf %17, %16 : vector<2x16x256xf32>
    %19 = vector.extract_strided_slice %8 {offsets = [1, 0], sizes = [1, 256], strides = [1, 1]} : vector<3x256xf32> to vector<1x256xf32>
    %20 = vector.shape_cast %19 : vector<1x256xf32> to vector<256xf32>
    %21 = vector.shape_cast %20 : vector<256xf32> to vector<1x1x256xf32>
    %22 = vector.broadcast %21 : vector<1x1x256xf32> to vector<2x16x256xf32>
    %23 = arith.mulf %22, %3 : vector<2x16x256xf32>
    %24 = arith.addf %18, %23 : vector<2x16x256xf32>
    %25 = vector.extract_strided_slice %8 {offsets = [2, 0], sizes = [1, 256], strides = [1, 1]} : vector<3x256xf32> to vector<1x256xf32>
    %26 = vector.shape_cast %25 : vector<1x256xf32> to vector<256xf32>
    %27 = vector.shape_cast %26 : vector<256xf32> to vector<1x1x256xf32>
    %28 = vector.broadcast %27 : vector<1x1x256xf32> to vector<2x16x256xf32>
    %29 = arith.mulf %28, %4 : vector<2x16x256xf32>
    %30 = arith.addf %24, %29 : vector<2x16x256xf32>
    %31 = vector.shape_cast %30 : vector<2x16x256xf32> to vector<32x256xf32>
    %32 = arith.truncf %31 : vector<32x256xf32> to vector<32x256xbf16>
    %c0_18 = arith.constant 0 : index
    %c0_19 = arith.constant 0 : index
    %33 = vector.load %arg9[%c0_18, %c0_19] : memref<32x768xbf16, #tpu.memory_space<vmem>>, vector<32x256xbf16>
    tpu.vector_store %arg9[%c0_18, %c0_19], %32 {strides = array<i32>} : memref<32x768xbf16, #tpu.memory_space<vmem>>, vector<32x256xbf16>,
    %c0_20 = arith.constant 0 : index
    %c0_21 = arith.constant 0 : index
    %34 = vector.load %arg3[%c0_20, %c0_21] : memref<5x256xf32, #tpu.memory_space<vmem>>, vector<5x256xf32>
    %35 = vector.extract_strided_slice %7 {offsets = [1, 0], sizes = [1, 256], strides = [1, 1]} : vector<3x256xf32> to vector<1x256xf32>
    %36 = vector.shape_cast %35 : vector<1x256xf32> to vector<256xf32>
    %37 = vector.shape_cast %36 : vector<256xf32> to vector<1x1x256xf32>
    %38 = vector.extract_strided_slice %34 {offsets = [0, 0], sizes = [1, 256], strides = [1, 1]} : vector<5x256xf32> to vector<1x256xf32>
    %39 = vector.shape_cast %38 : vector<1x256xf32> to vector<256xf32>
    %40 = vector.shape_cast %39 : vector<256xf32> to vector<1x1x256xf32>
    %41 = vector.broadcast %40 : vector<1x1x256xf32> to vector<2x16x256xf32>
    %42 = arith.mulf %41, %1 : vector<2x16x256xf32>
    %43 = vector.broadcast %37 : vector<1x1x256xf32> to vector<2x16x256xf32>
    %44 = arith.addf %43, %42 : vector<2x16x256xf32>
    %45 = vector.extract_strided_slice %34 {offsets = [1, 0], sizes = [1, 256], strides = [1, 1]} : vector<5x256xf32> to vector<1x256xf32>
    %46 = vector.shape_cast %45 : vector<1x256xf32> to vector<256xf32>
    %47 = vector.shape_cast %46 : vector<256xf32> to vector<1x1x256xf32>
    %48 = vector.broadcast %47 : vector<1x1x256xf32> to vector<2x16x256xf32>
    %49 = arith.mulf %48, %2 : vector<2x16x256xf32>
    %50 = arith.addf %44, %49 : vector<2x16x256xf32>
    %51 = vector.extract_strided_slice %34 {offsets = [2, 0], sizes = [1, 256], strides = [1, 1]} : vector<5x256xf32> to vector<1x256xf32>
    %52 = vector.shape_cast %51 : vector<1x256xf32> to vector<256xf32>
    %53 = vector.shape_cast %52 : vector<256xf32> to vector<1x1x256xf32>
    %54 = vector.broadcast %53 : vector<1x1x256xf32> to vector<2x16x256xf32>
    %55 = arith.mulf %54, %3 : vector<2x16x256xf32>
    %56 = arith.addf %50, %55 : vector<2x16x256xf32>
    %57 = vector.extract_strided_slice %34 {offsets = [3, 0], sizes = [1, 256], strides = [1, 1]} : vector<5x256xf32> to vector<1x256xf32>
    %58 = vector.shape_cast %57 : vector<1x256xf32> to vector<256xf32>
    %59 = vector.shape_cast %58 : vector<256xf32> to vector<1x1x256xf32>
    %60 = vector.broadcast %59 : vector<1x1x256xf32> to vector<2x16x256xf32>
    %61 = arith.mulf %60, %4 : vector<2x16x256xf32>
    %62 = arith.addf %56, %61 : vector<2x16x256xf32>
    %63 = vector.extract_strided_slice %34 {offsets = [4, 0], sizes = [1, 256], strides = [1, 1]} : vector<5x256xf32> to vector<1x256xf32>
    %64 = vector.shape_cast %63 : vector<1x256xf32> to vector<256xf32>
    %65 = vector.shape_cast %64 : vector<256xf32> to vector<1x1x256xf32>
    %66 = vector.broadcast %65 : vector<1x1x256xf32> to vector<2x16x256xf32>
    %67 = arith.mulf %66, %5 : vector<2x16x256xf32>
    %68 = arith.addf %62, %67 : vector<2x16x256xf32>
    %69 = vector.shape_cast %68 : vector<2x16x256xf32> to vector<32x256xf32>
    %70 = arith.truncf %69 : vector<32x256xf32> to vector<32x256xbf16>
    %c0_22 = arith.constant 0 : index
    %c256 = arith.constant 256 : index
    %71 = vector.load %arg9[%c0_22, %c256] : memref<32x768xbf16, #tpu.memory_space<vmem>>, vector<32x256xbf16>
    tpu.vector_store %arg9[%c0_22, %c256], %70 {strides = array<i32>} : memref<32x768xbf16, #tpu.memory_space<vmem>>, vector<32x256xbf16>,
    %c0_23 = arith.constant 0 : index
    %c0_24 = arith.constant 0 : index
    %72 = vector.load %arg4[%c0_23, %c0_24] : memref<7x256xf32, #tpu.memory_space<vmem>>, vector<7x256xf32>
    %73 = vector.extract_strided_slice %7 {offsets = [2, 0], sizes = [1, 256], strides = [1, 1]} : vector<3x256xf32> to vector<1x256xf32>
    %74 = vector.shape_cast %73 : vector<1x256xf32> to vector<256xf32>
    %75 = vector.shape_cast %74 : vector<256xf32> to vector<1x1x256xf32>
    %76 = vector.extract_strided_slice %72 {offsets = [0, 0], sizes = [1, 256], strides = [1, 1]} : vector<7x256xf32> to vector<1x256xf32>
    %77 = vector.shape_cast %76 : vector<1x256xf32> to vector<256xf32>
    %78 = vector.shape_cast %77 : vector<256xf32> to vector<1x1x256xf32>
    %79 = vector.broadcast %78 : vector<1x1x256xf32> to vector<2x16x256xf32>
    %80 = arith.mulf %79, %0 : vector<2x16x256xf32>
    %81 = vector.broadcast %75 : vector<1x1x256xf32> to vector<2x16x256xf32>
    %82 = arith.addf %81, %80 : vector<2x16x256xf32>
    %83 = vector.extract_strided_slice %72 {offsets = [1, 0], sizes = [1, 256], strides = [1, 1]} : vector<7x256xf32> to vector<1x256xf32>
    %84 = vector.shape_cast %83 : vector<1x256xf32> to vector<256xf32>
    %85 = vector.shape_cast %84 : vector<256xf32> to vector<1x1x256xf32>
    %86 = vector.broadcast %85 : vector<1x1x256xf32> to vector<2x16x256xf32>
    %87 = arith.mulf %86, %1 : vector<2x16x256xf32>
    %88 = arith.addf %82, %87 : vector<2x16x256xf32>
    %89 = vector.extract_strided_slice %72 {offsets = [2, 0], sizes = [1, 256], strides = [1, 1]} : vector<7x256xf32> to vector<1x256xf32>
    %90 = vector.shape_cast %89 : vector<1x256xf32> to vector<256xf32>
    %91 = vector.shape_cast %90 : vector<256xf32> to vector<1x1x256xf32>
    %92 = vector.broadcast %91 : vector<1x1x256xf32> to vector<2x16x256xf32>
    %93 = arith.mulf %92, %2 : vector<2x16x256xf32>
    %94 = arith.addf %88, %93 : vector<2x16x256xf32>
    %95 = vector.extract_strided_slice %72 {offsets = [3, 0], sizes = [1, 256], strides = [1, 1]} : vector<7x256xf32> to vector<1x256xf32>
    %96 = vector.shape_cast %95 : vector<1x256xf32> to vector<256xf32>
    %97 = vector.shape_cast %96 : vector<256xf32> to vector<1x1x256xf32>
    %98 = vector.broadcast %97 : vector<1x1x256xf32> to vector<2x16x256xf32>
    %99 = arith.mulf %98, %3 : vector<2x16x256xf32>
    %100 = arith.addf %94, %99 : vector<2x16x256xf32>
    %101 = vector.extract_strided_slice %72 {offsets = [4, 0], sizes = [1, 256], strides = [1, 1]} : vector<7x256xf32> to vector<1x256xf32>
    %102 = vector.shape_cast %101 : vector<1x256xf32> to vector<256xf32>
    %103 = vector.shape_cast %102 : vector<256xf32> to vector<1x1x256xf32>
    %104 = vector.broadcast %103 : vector<1x1x256xf32> to vector<2x16x256xf32>
    %105 = arith.mulf %104, %4 : vector<2x16x256xf32>
    %106 = arith.addf %100, %105 : vector<2x16x256xf32>
    %107 = vector.extract_strided_slice %72 {offsets = [5, 0], sizes = [1, 256], strides = [1, 1]} : vector<7x256xf32> to vector<1x256xf32>
    %108 = vector.shape_cast %107 : vector<1x256xf32> to vector<256xf32>
    %109 = vector.shape_cast %108 : vector<256xf32> to vector<1x1x256xf32>
    %110 = vector.broadcast %109 : vector<1x1x256xf32> to vector<2x16x256xf32>
    %111 = arith.mulf %110, %5 : vector<2x16x256xf32>
    %112 = arith.addf %106, %111 : vector<2x16x256xf32>
    %113 = vector.extract_strided_slice %72 {offsets = [6, 0], sizes = [1, 256], strides = [1, 1]} : vector<7x256xf32> to vector<1x256xf32>
    %114 = vector.shape_cast %113 : vector<1x256xf32> to vector<256xf32>
    %115 = vector.shape_cast %114 : vector<256xf32> to vector<1x1x256xf32>
    %116 = vector.broadcast %115 : vector<1x1x256xf32> to vector<2x16x256xf32>
    %117 = arith.mulf %116, %6 : vector<2x16x256xf32>
    %118 = arith.addf %112, %117 : vector<2x16x256xf32>
    %119 = vector.shape_cast %118 : vector<2x16x256xf32> to vector<32x256xf32>
    %120 = arith.truncf %119 : vector<32x256xf32> to vector<32x256xbf16>
    %c0_25 = arith.constant 0 : index
    %c512 = arith.constant 512 : index
    %121 = vector.load %arg9[%c0_25, %c512] : memref<32x768xbf16, #tpu.memory_space<vmem>>, vector<32x256xbf16>
    tpu.vector_store %arg9[%c0_25, %c512], %120 {strides = array<i32>} : memref<32x768xbf16, #tpu.memory_space<vmem>>, vector<32x256xbf16>,
    %c0_26 = arith.constant 0 : index
    %c0_27 = arith.constant 0 : index
    %122 = vector.load %arg9[%c0_26, %c0_27] : memref<32x768xbf16, #tpu.memory_space<vmem>>, vector<32x768xbf16>
    %c0_28 = arith.constant 0 : index
    %c0_29 = arith.constant 0 : index
    %123 = vector.load %arg6[%c0_28, %c0_29] : memref<768x768xbf16, #tpu.memory_space<vmem>>, vector<768x768xbf16>
    %cst = arith.constant dense<0.000000e+00> : vector<32x768xf32>
    %124 = tpu.matmul %122, %123, %cst {dimension_numbers = #tpu.dot_dimension_numbers<[1], [0], [0], [1], [0, 0, 1, 1], [], []>} : vector<32x768xbf16>, vector<768x768xbf16>, vector<32x768xf32> -> vector<32x768xf32>
    %c0_30 = arith.constant 0 : index
    %c0_31 = arith.constant 0 : index
    %125 = vector.load %arg7[%c0_30, %c0_31] : memref<1x768xf32, #tpu.memory_space<vmem>>, vector<1x768xf32>
    %126 = vector.broadcast %125 : vector<1x768xf32> to vector<32x768xf32>
    %127 = arith.addf %124, %126 : vector<32x768xf32>
    %c0_32 = arith.constant 0 : index
    %c0_33 = arith.constant 0 : index
    %128 = vector.load %arg8[%c0_32, %c0_33] : memref<32x768xf32, #tpu.memory_space<vmem>>, vector<32x768xf32>
    tpu.vector_store %arg8[%c0_32, %c0_33], %127 {strides = array<i32>} : memref<32x768xf32, #tpu.memory_space<vmem>>, vector<32x768xf32>,
    return
  }
  func.func @transform_0(%arg0: i32) -> (i32, i32, i32) {
    %c0_i32 = arith.constant 0 : i32
    %c0_i32_0 = arith.constant 0 : i32
    %c0_i32_1 = arith.constant 0 : i32
    return %arg0, %c0_i32, %c0_i32_0 : i32, i32, i32
  }
  func.func @transform_1(%arg0: i32) -> (i32, i32) {
    %c0_i32 = arith.constant 0 : i32
    %c0_i32_0 = arith.constant 0 : i32
    %c0_i32_1 = arith.constant 0 : i32
    return %c0_i32, %c0_i32_0 : i32, i32
  }
  func.func @transform_2(%arg0: i32) -> (i32, i32) {
    %c0_i32 = arith.constant 0 : i32
    %c0_i32_0 = arith.constant 0 : i32
    %c0_i32_1 = arith.constant 0 : i32
    return %c0_i32, %c0_i32_0 : i32, i32
  }
  func.func @transform_3(%arg0: i32) -> (i32, i32) {
    %c0_i32 = arith.constant 0 : i32
    %c0_i32_0 = arith.constant 0 : i32
    %c0_i32_1 = arith.constant 0 : i32
    return %c0_i32, %c0_i32_0 : i32, i32
  }
  func.func @transform_4(%arg0: i32) -> (i32, i32) {
    %c0_i32 = arith.constant 0 : i32
    %c0_i32_0 = arith.constant 0 : i32
    %c0_i32_1 = arith.constant 0 : i32
    return %c0_i32, %c0_i32_0 : i32, i32
  }
  func.func @transform_5(%arg0: i32) -> (i32, i32) {
    %c0_i32 = arith.constant 0 : i32
    %c0_i32_0 = arith.constant 0 : i32
    %c0_i32_1 = arith.constant 0 : i32
    return %c0_i32, %c0_i32_0 : i32, i32
  }
  func.func @transform_6(%arg0: i32) -> (i32, i32) {
    %c0_i32 = arith.constant 0 : i32
    %c0_i32_0 = arith.constant 0 : i32
    %c0_i32_1 = arith.constant 0 : i32
    return %c0_i32, %c0_i32_0 : i32, i32
  }
  func.func @transform_7(%arg0: i32) -> (i32, i32) {
    %c0_i32 = arith.constant 0 : i32
    %c0_i32_0 = arith.constant 0 : i32
    return %arg0, %c0_i32 : i32, i32
  }
}

</mosaic_0001>

<llo_original>
// kernel: tpu_custom_call.1
$region0: #{tpu_custom_call.1}
  #allocation0 [shape = 'u32[]', space=smem, size = 0x4, offset = 0x4, fixed_abs, tag = 'smem constant byte address 0x4 - core index']
  #allocation1 [shape = 'u32[144,128]{1,0:T(1,128)}', space=vmem, size = 0x12000, scoped, tag = 'internal scratch']
  #allocation2 [shape = 'bf16[32,768]{1,0:T(16,128)(2,1)}', space=vmem, size = 0xc000, scoped, tag = 'scratch operand']
  %s0 = inlined_call_operand.vmem [shape: f32[2,22,256], index: 0, kind: input, shape index: {}]
  %s1 = inlined_call_operand.hbm [shape: f32[3,256], index: 1, kind: input, shape index: {}]
  %s2 = inlined_call_operand.hbm [shape: f32[5,256], index: 2, kind: input, shape index: {}]
  %s3 = inlined_call_operand.hbm [shape: f32[7,256], index: 3, kind: input, shape index: {}]
  %s4 = inlined_call_operand.hbm [shape: f32[3,256], index: 4, kind: input, shape index: {}]
  %s5 = inlined_call_operand.hbm [shape: bf16[768,768], index: 5, kind: input, shape index: {}]
  %s6 = inlined_call_operand.hbm [shape: f32[1,768], index: 6, kind: input, shape index: {}]
  %s7 = inlined_call_operand.hbm [shape: f32[32,768], index: 7, kind: output, shape index: {}]
  %s8 = sld [smem:[#allocation0]]
  $region62: #{tpu_custom_call.1} parent=0
    _
  %s10 = ssub.s32 1, %s8
  %s11 = scalar_select 0, %s10, %s8
  $region1: #{tpu_custom_call.1} parent=0
    #allocation3 [shape = 'u8[4096]{0}', space=vmem, size = 0x1000, scoped, tag = 'input window, operand 1, single buffered']
    #allocation4 [shape = 's32[1]{0}', space=sflag, size = 0x4, scoped, tag = 'scoped memory for tpu_custom_call.1']
    #allocation5 [shape = 's32[1]{0}', space=sflag, size = 0x4, scoped, tag = 'scoped memory for tpu_custom_call.1']
    #allocation6 [shape = 'u8[8192]{0}', space=vmem, size = 0x2000, scoped, tag = 'input window, operand 2, single buffered']
    #allocation7 [shape = 's32[1]{0}', space=sflag, size = 0x4, scoped, tag = 'scoped memory for tpu_custom_call.1']
    #allocation8 [shape = 'u8[8192]{0}', space=vmem, size = 0x2000, scoped, tag = 'input window, operand 3, single buffered']
    #allocation9 [shape = 'u8[4096]{0}', space=vmem, size = 0x1000, scoped, tag = 'input window, operand 4, single buffered']
    #allocation10 [shape = 's32[1]{0}', space=sflag, size = 0x4, scoped, tag = 'scoped memory for tpu_custom_call.1']
    #allocation11 [shape = 'u8[1179648]{0}', space=vmem, size = 0x120000, scoped, tag = 'input window, operand 5, single buffered']
    #allocation12 [shape = 'u8[3072]{0}', space=vmem, size = 0xc00, scoped, tag = 'input window, operand 6, single buffered']
    #allocation13 [shape = 's32[1]{0}', space=sflag, size = 0x4, scoped, tag = 'scoped memory for tpu_custom_call.1']
    #allocation14 [shape = 'u8[98304]{0}', space=vmem, size = 0x18000, scoped, tag = 'output window, operand 0, single buffered']
    %12 = vsyncpa [#allocation4], 0
    %13 = vsyncpa [#allocation7], 0
    %14 = vsyncpa [#allocation10], 0
    %15 = vsyncpa [#allocation13], 0
    %16 = vsyncpa [#allocation5], 0
    // Predicated region
    $region2: #{tpu_custom_call.1} parent=1 // pred_check
      _
    $region3: #{tpu_custom_call.1} parent=1 // pred_check_branch
      %18 = sbr.rel (0) target = $region5
    $region4: #{tpu_custom_call.1} parent=1 // pred_region
      _
    $region5: #{tpu_custom_call.1} parent=1 // pred_fallthru
      _
    // Predicated region
    $region6: #{tpu_custom_call.1} parent=1 // pred_check
      _
    $region7: #{tpu_custom_call.1} parent=1 // pred_check_branch
      %20 = sbr.rel (0) target = $region9
    $region8: #{tpu_custom_call.1} parent=1 // pred_region
      %s22 = ssub.s32 128, 128
      %23 = vsyncadd [#allocation4], %s22
      %s25 = sshll.u32 [#allocation3], 4
      %s26 = int_to_ptr.vmem [resolvable:$true] %s25
      %28 = dma.hbm_to_vmem [thread:$0]  %s1, 128, %s26, [#allocation4]
    $region9: #{tpu_custom_call.1} parent=1 // pred_fallthru
      _
    // Predicated region
    $region10: #{tpu_custom_call.1} parent=1 // pred_check
      _
    $region11: #{tpu_custom_call.1} parent=1 // pred_check_branch
      %30 = sbr.rel (0) target = $region13
    $region12: #{tpu_custom_call.1} parent=1 // pred_region
      %s32 = ssub.s32 256, 256
      %33 = vsyncadd [#allocation7], %s32
      %s35 = sshll.u32 [#allocation6], 4
      %s36 = int_to_ptr.vmem [resolvable:$true] %s35
      %38 = dma.hbm_to_vmem [thread:$0]  %s2, 256, %s36, [#allocation7]
    $region13: #{tpu_custom_call.1} parent=1 // pred_fallthru
      _
    // Predicated region
    $region14: #{tpu_custom_call.1} parent=1 // pred_check
      _
    $region15: #{tpu_custom_call.1} parent=1 // pred_check_branch
      %40 = sbr.rel (0) target = $region17
    $region16: #{tpu_custom_call.1} parent=1 // pred_region
      %s42 = ssub.s32 256, 256
      %43 = vsyncadd [#allocation7], %s42
      %s45 = sshll.u32 [#allocation8], 4
      %s46 = int_to_ptr.vmem [resolvable:$true] %s45
      %48 = dma.hbm_to_vmem [thread:$0]  %s3, 256, %s46, [#allocation7]
    $region17: #{tpu_custom_call.1} parent=1 // pred_fallthru
      _
    // Predicated region
    $region18: #{tpu_custom_call.1} parent=1 // pred_check
      _
    $region19: #{tpu_custom_call.1} parent=1 // pred_check_branch
      %50 = sbr.rel (0) target = $region21
    $region20: #{tpu_custom_call.1} parent=1 // pred_region
      %s52 = ssub.s32 128, 128
      %53 = vsyncadd [#allocation10], %s52
      %s55 = sshll.u32 [#allocation9], 4
      %s56 = int_to_ptr.vmem [resolvable:$true] %s55
      %58 = dma.hbm_to_vmem [thread:$0]  %s4, 128, %s56, [#allocation10]
    $region21: #{tpu_custom_call.1} parent=1 // pred_fallthru
      _
    // Predicated region
    $region22: #{tpu_custom_call.1} parent=1 // pred_check
      _
    $region23: #{tpu_custom_call.1} parent=1 // pred_check_branch
      %60 = sbr.rel (0) target = $region25
    $region24: #{tpu_custom_call.1} parent=1 // pred_region
      %s62 = ssub.s32 36864, 36864
      %63 = vsyncadd [#allocation10], %s62
      %s64 = sshll.u32 [#allocation11], 4
      %s65 = int_to_ptr.vmem [resolvable:$true] %s64
      %70 = dma.hbm_to_vmem [thread:$0]  %s5, 36864, %s65, [#allocation10], 384, 384, 24
    $region25: #{tpu_custom_call.1} parent=1 // pred_fallthru
      _
    // Predicated region
    $region26: #{tpu_custom_call.1} parent=1 // pred_check
      _
    $region27: #{tpu_custom_call.1} parent=1 // pred_check_branch
      %72 = sbr.rel (0) target = $region29
    $region28: #{tpu_custom_call.1} parent=1 // pred_region
      %s74 = ssub.s32 96, 96
      %75 = vsyncadd [#allocation13], %s74
      %s77 = sshll.u32 [#allocation12], 4
      %s78 = int_to_ptr.vmem [resolvable:$true] %s77
      %80 = dma.hbm_to_vmem [thread:$0]  %s6, 96, %s78, [#allocation13]
    $region29: #{tpu_custom_call.1} parent=1 // pred_fallthru
      _
    // Predicated region
    $region30: #{tpu_custom_call.1} parent=1 // pred_check
      _
    $region31: #{tpu_custom_call.1} parent=1 // pred_check_branch
      %82 = sbr.rel (0) target = $region33
    $region32: #{tpu_custom_call.1} parent=1 // pred_region
      %83 = dma.done [#allocation4], 128
    $region33: #{tpu_custom_call.1} parent=1 // pred_fallthru
      _
    // Predicated region
    $region34: #{tpu_custom_call.1} parent=1 // pred_check
      _
    $region35: #{tpu_custom_call.1} parent=1 // pred_check_branch
      %85 = sbr.rel (0) target = $region37
    $region36: #{tpu_custom_call.1} parent=1 // pred_region
      %86 = dma.done [#allocation7], 256
    $region37: #{tpu_custom_call.1} parent=1 // pred_fallthru
      _
    // Predicated region
    $region38: #{tpu_custom_call.1} parent=1 // pred_check
      _
    $region39: #{tpu_custom_call.1} parent=1 // pred_check_branch
      %88 = sbr.rel (0) target = $region41
    $region40: #{tpu_custom_call.1} parent=1 // pred_region
      %89 = dma.done [#allocation7], 256
    $region41: #{tpu_custom_call.1} parent=1 // pred_fallthru
      _
    // Predicated region
    $region42: #{tpu_custom_call.1} parent=1 // pred_check
      _
    $region43: #{tpu_custom_call.1} parent=1 // pred_check_branch
      %91 = sbr.rel (0) target = $region45
    $region44: #{tpu_custom_call.1} parent=1 // pred_region
      %92 = dma.done [#allocation10], 128
    $region45: #{tpu_custom_call.1} parent=1 // pred_fallthru
      _
    // Predicated region
    $region46: #{tpu_custom_call.1} parent=1 // pred_check
      _
    $region47: #{tpu_custom_call.1} parent=1 // pred_check_branch
      %94 = sbr.rel (0) target = $region49
    $region48: #{tpu_custom_call.1} parent=1 // pred_region
      %95 = dma.done [#allocation10], 36864
    $region49: #{tpu_custom_call.1} parent=1 // pred_fallthru
      _
    // Predicated region
    $region50: #{tpu_custom_call.1} parent=1 // pred_check
      _
    $region51: #{tpu_custom_call.1} parent=1 // pred_check_branch
      %97 = sbr.rel (0) target = $region53
    $region52: #{tpu_custom_call.1} parent=1 // pred_region
      %98 = dma.done [#allocation13], 96
    $region53: #{tpu_custom_call.1} parent=1 // pred_fallthru
      _
    %v99 = vld [vmem:[%s0] sm:$0xff]
    %v100 = vld [vmem:[%s0 + $0x8] sm:$0xff]
    %v101 = vld [vmem:[%s0 + $0x10] sm:$0xff]
    %v102 = vld [vmem:[%s0 + $0x18] sm:$0xff]
    %v103 = vld [vmem:[%s0 + $0x30] sm:$0xff]
    %v104 = vld [vmem:[%s0 + $0x38] sm:$0xff]
    %v105 = vld [vmem:[%s0 + $0x40] sm:$0xff]
    %v106 = vld [vmem:[%s0 + $0x48] sm:$0xff]
    %v107 = vld [vmem:[%s0] sm:$0xfe]
    %v108 = vld [vmem:[%s0 + $0x8] sm:$0xfe]
    %v109 = vld [vmem:[%s0 + $0x20] sm:$0x1]
    %v110 = vld [vmem:[%s0 + $0x28] sm:$0x1]
    %v111 = vld [vmem:[%s0 + $0x30] sm:$0xfe]
    %v112 = vld [vmem:[%s0 + $0x38] sm:$0xfe]
    %v113 = vld [vmem:[%s0 + $0x50] sm:$0x1]
    %v114 = vld [vmem:[%s0 + $0x58] sm:$0x1]
    %v115 = vld [vmem:[%s0] sm:$0xfc]
    %v116 = vld [vmem:[%s0 + $0x8] sm:$0xfc]
    %v117 = vld [vmem:[%s0 + $0x20] sm:$0x3]
    %v118 = vld [vmem:[%s0 + $0x28] sm:$0x3]
    %v119 = vld [vmem:[%s0 + $0x30] sm:$0xfc]
    %v120 = vld [vmem:[%s0 + $0x38] sm:$0xfc]
    %v121 = vld [vmem:[%s0 + $0x50] sm:$0x3]
    %v122 = vld [vmem:[%s0 + $0x58] sm:$0x3]
    %v123 = vld [vmem:[%s0] sm:$0xf8]
    %v124 = vld [vmem:[%s0 + $0x8] sm:$0xf8]
    %v125 = vld [vmem:[%s0 + $0x20] sm:$0x7]
    %v126 = vld [vmem:[%s0 + $0x28] sm:$0x7]
    %v127 = vld [vmem:[%s0 + $0x30] sm:$0xf8]
    %v128 = vld [vmem:[%s0 + $0x38] sm:$0xf8]
    %v129 = vld [vmem:[%s0 + $0x50] sm:$0x7]
    %v130 = vld [vmem:[%s0 + $0x58] sm:$0x7]
    %v131 = vld [vmem:[%s0] sm:$0xf0]
    %v132 = vld [vmem:[%s0 + $0x8] sm:$0xf0]
    %v133 = vld [vmem:[%s0 + $0x20] sm:$0xf]
    %v134 = vld [vmem:[%s0 + $0x28] sm:$0xf]
    %v135 = vld [vmem:[%s0 + $0x30] sm:$0xf0]
    %v136 = vld [vmem:[%s0 + $0x38] sm:$0xf0]
    %v137 = vld [vmem:[%s0 + $0x50] sm:$0xf]
    %v138 = vld [vmem:[%s0 + $0x58] sm:$0xf]
    %v139 = vld [vmem:[%s0] sm:$0xe0]
    %v140 = vld [vmem:[%s0 + $0x8] sm:$0xe0]
    %v141 = vld [vmem:[%s0 + $0x20] sm:$0x1f]
    %v142 = vld [vmem:[%s0 + $0x28] sm:$0x1f]
    %v143 = vld [vmem:[%s0 + $0x30] sm:$0xe0]
    %v144 = vld [vmem:[%s0 + $0x38] sm:$0xe0]
    %v145 = vld [vmem:[%s0 + $0x50] sm:$0x1f]
    %v146 = vld [vmem:[%s0 + $0x58] sm:$0x1f]
    %v147 = vld [vmem:[%s0] sm:$0xc0]
    %v148 = vld [vmem:[%s0 + $0x8] sm:$0xc0]
    %v149 = vld [vmem:[%s0 + $0x20] sm:$0x3f]
    %v150 = vld [vmem:[%s0 + $0x28] sm:$0x3f]
    %v151 = vld [vmem:[%s0 + $0x30] sm:$0xc0]
    %v152 = vld [vmem:[%s0 + $0x38] sm:$0xc0]
    %v153 = vld [vmem:[%s0 + $0x50] sm:$0x3f]
    %v154 = vld [vmem:[%s0 + $0x58] sm:$0x3f]
    %v155 = vld [vmem:[#allocation9] sm:$0x77]
    %v156 = vld [vmem:[#allocation3] sm:$0x77]
    %v158 = vlaneseq
    %v159 = vshrl.u32 %v158, 7
    %v160 = vsub.s32 0, %v159
    %v161 = vrot.slane %v156, %v160
    %v162 = vlaneseq
    %v163 = vshrl.u32 %v162, 7
    %v164 = vsub.s32 4, %v163
    %v165 = vrot.slane %v156, %v164
    %v168 = vlaneseq
    %v169 = vshrl.u32 %v168, 7
    %v170 = vsub.s32 0, %v169
    %v171 = vrot.slane %v161, %v170
    %v172 = vlaneseq
    %v173 = vshrl.u32 %v172, 7
    %v174 = vsub.s32 0, %v173
    %v175 = vrot.slane %v165, %v174
    %v176 = vmul.f32 %v171, %v115
    %v177 = vmul.f32 %v175, %v116
    %v178 = vmul.f32 %v171, %v101
    %v179 = vmul.f32 %v175, %v102
    %v180 = vmul.f32 %v171, %v117
    %v181 = vmul.f32 %v175, %v118
    %v182 = vmul.f32 %v171, %v119
    %v183 = vmul.f32 %v175, %v120
    %v184 = vmul.f32 %v171, %v105
    %v185 = vmul.f32 %v175, %v106
    %v186 = vmul.f32 %v171, %v121
    %v187 = vmul.f32 %v175, %v122
    %v189 = vlaneseq
    %v190 = vshrl.u32 %v189, 7
    %v191 = vsub.s32 0, %v190
    %v192 = vrot.slane %v155, %v191
    %v193 = vlaneseq
    %v194 = vshrl.u32 %v193, 7
    %v195 = vsub.s32 4, %v194
    %v196 = vrot.slane %v155, %v195
    %v199 = vlaneseq
    %v200 = vshrl.u32 %v199, 7
    %v201 = vsub.s32 0, %v200
    %v202 = vrot.slane %v192, %v201
    %v203 = vlaneseq
    %v204 = vshrl.u32 %v203, 7
    %v205 = vsub.s32 0, %v204
    %v206 = vrot.slane %v196, %v205
    %v207 = vadd.f32 %v202, %v176
    %v208 = vadd.f32 %v206, %v177
    %v209 = vadd.f32 %v202, %v178
    %v210 = vadd.f32 %v206, %v179
    %v211 = vadd.f32 %v202, %v180
    %v212 = vadd.f32 %v206, %v181
    %v213 = vadd.f32 %v202, %v182
    %v214 = vadd.f32 %v206, %v183
    %v215 = vadd.f32 %v202, %v184
    %v216 = vadd.f32 %v206, %v185
    %v217 = vadd.f32 %v202, %v186
    %v218 = vadd.f32 %v206, %v187
    %v219 = vlaneseq
    %v220 = vshrl.u32 %v219, 7
    %v221 = vsub.s32 1, %v220
    %v222 = vrot.slane %v156, %v221
    %v223 = vlaneseq
    %v224 = vshrl.u32 %v223, 7
    %v225 = vsub.s32 5, %v224
    %v226 = vrot.slane %v156, %v225
    %v229 = vlaneseq
    %v230 = vshrl.u32 %v229, 7
    %v231 = vsub.s32 1, %v230
    %v232 = vrot.slane %v222, %v231
    %v233 = vlaneseq
    %v234 = vshrl.u32 %v233, 7
    %v235 = vsub.s32 1, %v234
    %v236 = vrot.slane %v226, %v235
    %v237 = vmul.f32 %v232, %v123
    %v238 = vmul.f32 %v236, %v124
    %v239 = vmul.f32 %v232, %v101
    %v240 = vmul.f32 %v236, %v102
    %v241 = vmul.f32 %v232, %v125
    %v242 = vmul.f32 %v236, %v126
    %v243 = vmul.f32 %v232, %v127
    %v244 = vmul.f32 %v236, %v128
    %v245 = vmul.f32 %v232, %v105
    %v246 = vmul.f32 %v236, %v106
    %v247 = vmul.f32 %v232, %v129
    %v248 = vmul.f32 %v236, %v130
    %vm261 = vcmask 1046528
    %v262 = vrot.slane %v237, 1
    %v263 = vrot.slane %v239, 1
    %v264 = vsel %vm261, %v262, %v263
    %v265 = vrot.slane %v238, 1
    %v266 = vrot.slane %v240, 1
    %v267 = vsel %vm261, %v265, %v266
    %v268 = vrot.slane %v241, 1
    %v269 = vsel %vm261, %v263, %v268
    %v270 = vrot.slane %v242, 1
    %v271 = vsel %vm261, %v266, %v270
    %v272 = vrot.slane %v243, 1
    %v273 = vrot.slane %v245, 1
    %v274 = vsel %vm261, %v272, %v273
    %v275 = vrot.slane %v244, 1
    %v276 = vrot.slane %v246, 1
    %v277 = vsel %vm261, %v275, %v276
    %v278 = vrot.slane %v247, 1
    %v279 = vsel %vm261, %v273, %v278
    %v280 = vrot.slane %v248, 1
    %v281 = vsel %vm261, %v276, %v280
    %v294 = vadd.f32 %v207, %v264
    %v295 = vadd.f32 %v208, %v267
    %v296 = vadd.f32 %v209, %v269
    %v297 = vadd.f32 %v210, %v271
    %v298 = vadd.f32 %v211, %v268
    %v299 = vadd.f32 %v212, %v270
    %v300 = vadd.f32 %v213, %v274
    %v301 = vadd.f32 %v214, %v277
    %v302 = vadd.f32 %v215, %v279
    %v303 = vadd.f32 %v216, %v281
    %v304 = vadd.f32 %v217, %v278
    %v305 = vadd.f32 %v218, %v280
    %v306 = vlaneseq
    %v307 = vshrl.u32 %v306, 7
    %v308 = vsub.s32 2, %v307
    %v309 = vrot.slane %v156, %v308
    %v310 = vlaneseq
    %v311 = vshrl.u32 %v310, 7
    %v312 = vsub.s32 6, %v311
    %v313 = vrot.slane %v156, %v312
    %v316 = vlaneseq
    %v317 = vshrl.u32 %v316, 7
    %v318 = vsub.s32 2, %v317
    %v319 = vrot.slane %v309, %v318
    %v320 = vlaneseq
    %v321 = vshrl.u32 %v320, 7
    %v322 = vsub.s32 2, %v321
    %v323 = vrot.slane %v313, %v322
    %v324 = vmul.f32 %v319, %v131
    %v325 = vmul.f32 %v323, %v132
    %v326 = vmul.f32 %v319, %v101
    %v327 = vmul.f32 %v323, %v102
    %v328 = vmul.f32 %v319, %v133
    %v329 = vmul.f32 %v323, %v134
    %v330 = vmul.f32 %v319, %v135
    %v331 = vmul.f32 %v323, %v136
    %v332 = vmul.f32 %v319, %v105
    %v333 = vmul.f32 %v323, %v106
    %v334 = vmul.f32 %v319, %v137
    %v335 = vmul.f32 %v323, %v138
    %vm348 = vcmask 1045504
    %v349 = vrot.slane %v324, 2
    %v350 = vrot.slane %v326, 2
    %v351 = vsel %vm348, %v349, %v350
    %v352 = vrot.slane %v325, 2
    %v353 = vrot.slane %v327, 2
    %v354 = vsel %vm348, %v352, %v353
    %v355 = vrot.slane %v328, 2
    %v356 = vsel %vm348, %v350, %v355
    %v357 = vrot.slane %v329, 2
    %v358 = vsel %vm348, %v353, %v357
    %v359 = vrot.slane %v330, 2
    %v360 = vrot.slane %v332, 2
    %v361 = vsel %vm348, %v359, %v360
    %v362 = vrot.slane %v331, 2
    %v363 = vrot.slane %v333, 2
    %v364 = vsel %vm348, %v362, %v363
    %v365 = vrot.slane %v334, 2
    %v366 = vsel %vm348, %v360, %v365
    %v367 = vrot.slane %v335, 2
    %v368 = vsel %vm348, %v363, %v367
    %v381 = vadd.f32 %v294, %v351
    %v382 = vadd.f32 %v295, %v354
    %v383 = vadd.f32 %v296, %v356
    %v384 = vadd.f32 %v297, %v358
    %v385 = vadd.f32 %v298, %v355
    %v386 = vadd.f32 %v299, %v357
    %v387 = vadd.f32 %v300, %v361
    %v388 = vadd.f32 %v301, %v364
    %v389 = vadd.f32 %v302, %v366
    %v390 = vadd.f32 %v303, %v368
    %v391 = vadd.f32 %v304, %v365
    %v392 = vadd.f32 %v305, %v367
    %v405 = vrot.slane %v381, 2
    %v406 = vrot.slane %v383, 2
    %v407 = vsel %vm348, %v405, %v406
    %v408 = vrot.slane %v382, 2
    %v409 = vrot.slane %v384, 2
    %v410 = vsel %vm348, %v408, %v409
    %v411 = vrot.slane %v385, 2
    %v412 = vsel %vm348, %v406, %v411
    %v413 = vrot.slane %v386, 2
    %v414 = vsel %vm348, %v409, %v413
    %v415 = vrot.slane %v387, 2
    %v416 = vrot.slane %v389, 2
    %v417 = vsel %vm348, %v415, %v416
    %v418 = vrot.slane %v388, 2
    %v419 = vrot.slane %v390, 2
    %v420 = vsel %vm348, %v418, %v419
    %v421 = vrot.slane %v391, 2
    %v422 = vsel %vm348, %v416, %v421
    %v423 = vrot.slane %v392, 2
    %v424 = vsel %vm348, %v419, %v423
    %v433 = vpack.c.bf16 %v412, %v407
    %v434 = vpack.c.bf16 %v414, %v410
    %v435 = vpack.c.bf16 %v422, %v417
    %v436 = vpack.c.bf16 %v424, %v420
    %437 = vst [vmem:[#allocation2] sm:$0xff] %v433
    %438 = vst [vmem:[#allocation2 + $0x8] sm:$0xff] %v434
    %439 = vst [vmem:[#allocation2 + $0x30] sm:$0xff] %v435
    %440 = vst [vmem:[#allocation2 + $0x38] sm:$0xff] %v436
    %v441 = vld [vmem:[#allocation6] sm:$0x1f]
    %v442 = vld [vmem:[#allocation6 + $0x8] sm:$0x1f]
    %v443 = vlaneseq
    %v444 = vshrl.u32 %v443, 7
    %v445 = vsub.s32 0, %v444
    %v446 = vrot.slane %v441, %v445
    %v447 = vlaneseq
    %v448 = vshrl.u32 %v447, 7
    %v449 = vsub.s32 0, %v448
    %v450 = vrot.slane %v442, %v449
    %v451 = vmul.f32 %v446, %v107
    %v452 = vmul.f32 %v450, %v108
    %v453 = vmul.f32 %v446, %v101
    %v454 = vmul.f32 %v450, %v102
    %v455 = vmul.f32 %v446, %v109
    %v456 = vmul.f32 %v450, %v110
    %v457 = vmul.f32 %v446, %v111
    %v458 = vmul.f32 %v450, %v112
    %v459 = vmul.f32 %v446, %v105
    %v460 = vmul.f32 %v450, %v106
    %v461 = vmul.f32 %v446, %v113
    %v462 = vmul.f32 %v450, %v114
    %v463 = vlaneseq
    %v464 = vshrl.u32 %v463, 7
    %v465 = vsub.s32 1, %v464
    %v466 = vrot.slane %v155, %v465
    %v467 = vlaneseq
    %v468 = vshrl.u32 %v467, 7
    %v469 = vsub.s32 5, %v468
    %v470 = vrot.slane %v155, %v469
    %v473 = vlaneseq
    %v474 = vshrl.u32 %v473, 7
    %v475 = vsub.s32 1, %v474
    %v476 = vrot.slane %v466, %v475
    %v477 = vlaneseq
    %v478 = vshrl.u32 %v477, 7
    %v479 = vsub.s32 1, %v478
    %v480 = vrot.slane %v470, %v479
    %v481 = vadd.f32 %v476, %v451
    %v482 = vadd.f32 %v480, %v452
    %v483 = vadd.f32 %v476, %v453
    %v484 = vadd.f32 %v480, %v454
    %v485 = vadd.f32 %v476, %v455
    %v486 = vadd.f32 %v480, %v456
    %v487 = vadd.f32 %v476, %v457
    %v488 = vadd.f32 %v480, %v458
    %v489 = vadd.f32 %v476, %v459
    %v490 = vadd.f32 %v480, %v460
    %v491 = vadd.f32 %v476, %v461
    %v492 = vadd.f32 %v480, %v462
    %v493 = vlaneseq
    %v494 = vshrl.u32 %v493, 7
    %v495 = vsub.s32 1, %v494
    %v496 = vrot.slane %v441, %v495
    %v497 = vlaneseq
    %v498 = vshrl.u32 %v497, 7
    %v499 = vsub.s32 1, %v498
    %v500 = vrot.slane %v442, %v499
    %v501 = vmul.f32 %v496, %v115
    %v502 = vmul.f32 %v500, %v116
    %v503 = vmul.f32 %v496, %v101
    %v504 = vmul.f32 %v500, %v102
    %v505 = vmul.f32 %v496, %v117
    %v506 = vmul.f32 %v500, %v118
    %v507 = vmul.f32 %v496, %v119
    %v508 = vmul.f32 %v500, %v120
    %v509 = vmul.f32 %v496, %v105
    %v510 = vmul.f32 %v500, %v106
    %v511 = vmul.f32 %v496, %v121
    %v512 = vmul.f32 %v500, %v122
    %v525 = vrot.slane %v501, 1
    %v526 = vrot.slane %v503, 1
    %v527 = vsel %vm261, %v525, %v526
    %v528 = vrot.slane %v502, 1
    %v529 = vrot.slane %v504, 1
    %v530 = vsel %vm261, %v528, %v529
    %v531 = vrot.slane %v505, 1
    %v532 = vsel %vm261, %v526, %v531
    %v533 = vrot.slane %v506, 1
    %v534 = vsel %vm261, %v529, %v533
    %v535 = vrot.slane %v507, 1
    %v536 = vrot.slane %v509, 1
    %v537 = vsel %vm261, %v535, %v536
    %v538 = vrot.slane %v508, 1
    %v539 = vrot.slane %v510, 1
    %v540 = vsel %vm261, %v538, %v539
    %v541 = vrot.slane %v511, 1
    %v542 = vsel %vm261, %v536, %v541
    %v543 = vrot.slane %v512, 1
    %v544 = vsel %vm261, %v539, %v543
    %v557 = vadd.f32 %v481, %v527
    %v558 = vadd.f32 %v482, %v530
    %v559 = vadd.f32 %v483, %v532
    %v560 = vadd.f32 %v484, %v534
    %v561 = vadd.f32 %v485, %v531
    %v562 = vadd.f32 %v486, %v533
    %v563 = vadd.f32 %v487, %v537
    %v564 = vadd.f32 %v488, %v540
    %v565 = vadd.f32 %v489, %v542
    %v566 = vadd.f32 %v490, %v544
    %v567 = vadd.f32 %v491, %v541
    %v568 = vadd.f32 %v492, %v543
    %v569 = vlaneseq
    %v570 = vshrl.u32 %v569, 7
    %v571 = vsub.s32 2, %v570
    %v572 = vrot.slane %v441, %v571
    %v573 = vlaneseq
    %v574 = vshrl.u32 %v573, 7
    %v575 = vsub.s32 2, %v574
    %v576 = vrot.slane %v442, %v575
    %v577 = vmul.f32 %v572, %v123
    %v578 = vmul.f32 %v576, %v124
    %v579 = vmul.f32 %v572, %v101
    %v580 = vmul.f32 %v576, %v102
    %v581 = vmul.f32 %v572, %v125
    %v582 = vmul.f32 %v576, %v126
    %v583 = vmul.f32 %v572, %v127
    %v584 = vmul.f32 %v576, %v128
    %v585 = vmul.f32 %v572, %v105
    %v586 = vmul.f32 %v576, %v106
    %v587 = vmul.f32 %v572, %v129
    %v588 = vmul.f32 %v576, %v130
    %v601 = vrot.slane %v577, 2
    %v602 = vrot.slane %v579, 2
    %v603 = vsel %vm348, %v601, %v602
    %v604 = vrot.slane %v578, 2
    %v605 = vrot.slane %v580, 2
    %v606 = vsel %vm348, %v604, %v605
    %v607 = vrot.slane %v581, 2
    %v608 = vsel %vm348, %v602, %v607
    %v609 = vrot.slane %v582, 2
    %v610 = vsel %vm348, %v605, %v609
    %v611 = vrot.slane %v583, 2
    %v612 = vrot.slane %v585, 2
    %v613 = vsel %vm348, %v611, %v612
    %v614 = vrot.slane %v584, 2
    %v615 = vrot.slane %v586, 2
    %v616 = vsel %vm348, %v614, %v615
    %v617 = vrot.slane %v587, 2
    %v618 = vsel %vm348, %v612, %v617
    %v619 = vrot.slane %v588, 2
    %v620 = vsel %vm348, %v615, %v619
    %v633 = vadd.f32 %v557, %v603
    %v634 = vadd.f32 %v558, %v606
    %v635 = vadd.f32 %v559, %v608
    %v636 = vadd.f32 %v560, %v610
    %v637 = vadd.f32 %v561, %v607
    %v638 = vadd.f32 %v562, %v609
    %v639 = vadd.f32 %v563, %v613
    %v640 = vadd.f32 %v564, %v616
    %v641 = vadd.f32 %v565, %v618
    %v642 = vadd.f32 %v566, %v620
    %v643 = vadd.f32 %v567, %v617
    %v644 = vadd.f32 %v568, %v619
    %v645 = vlaneseq
    %v646 = vshrl.u32 %v645, 7
    %v647 = vsub.s32 3, %v646
    %v648 = vrot.slane %v441, %v647
    %v649 = vlaneseq
    %v650 = vshrl.u32 %v649, 7
    %v651 = vsub.s32 3, %v650
    %v652 = vrot.slane %v442, %v651
    %v653 = vmul.f32 %v648, %v131
    %v654 = vmul.f32 %v652, %v132
    %v655 = vmul.f32 %v648, %v101
    %v656 = vmul.f32 %v652, %v102
    %v657 = vmul.f32 %v648, %v133
    %v658 = vmul.f32 %v652, %v134
    %v659 = vmul.f32 %v648, %v135
    %v660 = vmul.f32 %v652, %v136
    %v661 = vmul.f32 %v648, %v105
    %v662 = vmul.f32 %v652, %v106
    %v663 = vmul.f32 %v648, %v137
    %v664 = vmul.f32 %v652, %v138
    %vm677 = vcmask 1044480
    %v678 = vrot.slane %v653, 3
    %v679 = vrot.slane %v655, 3
    %v680 = vsel %vm677, %v678, %v679
    %v681 = vrot.slane %v654, 3
    %v682 = vrot.slane %v656, 3
    %v683 = vsel %vm677, %v681, %v682
    %v684 = vrot.slane %v657, 3
    %v685 = vsel %vm677, %v679, %v684
    %v686 = vrot.slane %v658, 3
    %v687 = vsel %vm677, %v682, %v686
    %v688 = vrot.slane %v659, 3
    %v689 = vrot.slane %v661, 3
    %v690 = vsel %vm677, %v688, %v689
    %v691 = vrot.slane %v660, 3
    %v692 = vrot.slane %v662, 3
    %v693 = vsel %vm677, %v691, %v692
    %v694 = vrot.slane %v663, 3
    %v695 = vsel %vm677, %v689, %v694
    %v696 = vrot.slane %v664, 3
    %v697 = vsel %vm677, %v692, %v696
    %v710 = vadd.f32 %v633, %v680
    %v711 = vadd.f32 %v634, %v683
    %v712 = vadd.f32 %v635, %v685
    %v713 = vadd.f32 %v636, %v687
    %v714 = vadd.f32 %v637, %v684
    %v715 = vadd.f32 %v638, %v686
    %v716 = vadd.f32 %v639, %v690
    %v717 = vadd.f32 %v640, %v693
    %v718 = vadd.f32 %v641, %v695
    %v719 = vadd.f32 %v642, %v697
    %v720 = vadd.f32 %v643, %v694
    %v721 = vadd.f32 %v644, %v696
    %v722 = vlaneseq
    %v723 = vshrl.u32 %v722, 7
    %v724 = vsub.s32 4, %v723
    %v725 = vrot.slane %v441, %v724
    %v726 = vlaneseq
    %v727 = vshrl.u32 %v726, 7
    %v728 = vsub.s32 4, %v727
    %v729 = vrot.slane %v442, %v728
    %v730 = vmul.f32 %v725, %v139
    %v731 = vmul.f32 %v729, %v140
    %v732 = vmul.f32 %v725, %v101
    %v733 = vmul.f32 %v729, %v102
    %v734 = vmul.f32 %v725, %v141
    %v735 = vmul.f32 %v729, %v142
    %v736 = vmul.f32 %v725, %v143
    %v737 = vmul.f32 %v729, %v144
    %v738 = vmul.f32 %v725, %v105
    %v739 = vmul.f32 %v729, %v106
    %v740 = vmul.f32 %v725, %v145
    %v741 = vmul.f32 %v729, %v146
    %vm754 = vcmask 1043456
    %v755 = vrot.slane %v730, 4
    %v756 = vrot.slane %v732, 4
    %v757 = vsel %vm754, %v755, %v756
    %v758 = vrot.slane %v731, 4
    %v759 = vrot.slane %v733, 4
    %v760 = vsel %vm754, %v758, %v759
    %v761 = vrot.slane %v734, 4
    %v762 = vsel %vm754, %v756, %v761
    %v763 = vrot.slane %v735, 4
    %v764 = vsel %vm754, %v759, %v763
    %v765 = vrot.slane %v736, 4
    %v766 = vrot.slane %v738, 4
    %v767 = vsel %vm754, %v765, %v766
    %v768 = vrot.slane %v737, 4
    %v769 = vrot.slane %v739, 4
    %v770 = vsel %vm754, %v768, %v769
    %v771 = vrot.slane %v740, 4
    %v772 = vsel %vm754, %v766, %v771
    %v773 = vrot.slane %v741, 4
    %v774 = vsel %vm754, %v769, %v773
    %v787 = vadd.f32 %v710, %v757
    %v788 = vadd.f32 %v711, %v760
    %v789 = vadd.f32 %v712, %v762
    %v790 = vadd.f32 %v713, %v764
    %v791 = vadd.f32 %v714, %v761
    %v792 = vadd.f32 %v715, %v763
    %v793 = vadd.f32 %v716, %v767
    %v794 = vadd.f32 %v717, %v770
    %v795 = vadd.f32 %v718, %v772
    %v796 = vadd.f32 %v719, %v774
    %v797 = vadd.f32 %v720, %v771
    %v798 = vadd.f32 %v721, %v773
    %v811 = vrot.slane %v787, 1
    %v812 = vrot.slane %v789, 1
    %v813 = vsel %vm261, %v811, %v812
    %v814 = vrot.slane %v788, 1
    %v815 = vrot.slane %v790, 1
    %v816 = vsel %vm261, %v814, %v815
    %v817 = vrot.slane %v791, 1
    %v818 = vsel %vm261, %v812, %v817
    %v819 = vrot.slane %v792, 1
    %v820 = vsel %vm261, %v815, %v819
    %v821 = vrot.slane %v793, 1
    %v822 = vrot.slane %v795, 1
    %v823 = vsel %vm261, %v821, %v822
    %v824 = vrot.slane %v794, 1
    %v825 = vrot.slane %v796, 1
    %v826 = vsel %vm261, %v824, %v825
    %v827 = vrot.slane %v797, 1
    %v828 = vsel %vm261, %v822, %v827
    %v829 = vrot.slane %v798, 1
    %v830 = vsel %vm261, %v825, %v829
    %v839 = vpack.c.bf16 %v818, %v813
    %v840 = vpack.c.bf16 %v820, %v816
    %v841 = vpack.c.bf16 %v828, %v823
    %v842 = vpack.c.bf16 %v830, %v826
    %843 = vst [vmem:[#allocation2 + $0x10] sm:$0xff] %v839
    %844 = vst [vmem:[#allocation2 + $0x18] sm:$0xff] %v840
    %845 = vst [vmem:[#allocation2 + $0x40] sm:$0xff] %v841
    %846 = vst [vmem:[#allocation2 + $0x48] sm:$0xff] %v842
    %v847 = vld [vmem:[#allocation8] sm:$0x7f]
    %v848 = vld [vmem:[#allocation8 + $0x8] sm:$0x7f]
    %v849 = vlaneseq
    %v850 = vshrl.u32 %v849, 7
    %v851 = vsub.s32 0, %v850
    %v852 = vrot.slane %v847, %v851
    %v853 = vlaneseq
    %v854 = vshrl.u32 %v853, 7
    %v855 = vsub.s32 0, %v854
    %v856 = vrot.slane %v848, %v855
    %v857 = vmul.f32 %v852, %v99
    %v858 = vmul.f32 %v856, %v100
    %v859 = vmul.f32 %v852, %v101
    %v860 = vmul.f32 %v856, %v102
    %v861 = vmul.f32 %v852, %v103
    %v862 = vmul.f32 %v856, %v104
    %v863 = vmul.f32 %v852, %v105
    %v864 = vmul.f32 %v856, %v106
    %v865 = vlaneseq
    %v866 = vshrl.u32 %v865, 7
    %v867 = vsub.s32 2, %v866
    %v868 = vrot.slane %v155, %v867
    %v869 = vlaneseq
    %v870 = vshrl.u32 %v869, 7
    %v871 = vsub.s32 6, %v870
    %v872 = vrot.slane %v155, %v871
    %v875 = vlaneseq
    %v876 = vshrl.u32 %v875, 7
    %v877 = vsub.s32 2, %v876
    %v878 = vrot.slane %v868, %v877
    %v879 = vlaneseq
    %v880 = vshrl.u32 %v879, 7
    %v881 = vsub.s32 2, %v880
    %v882 = vrot.slane %v872, %v881
    %v883 = vadd.f32 %v878, %v857
    %v884 = vadd.f32 %v882, %v858
    %v885 = vadd.f32 %v878, %v859
    %v886 = vadd.f32 %v882, %v860
    %v887 = vadd.f32 %v878, %v861
    %v888 = vadd.f32 %v882, %v862
    %v889 = vadd.f32 %v878, %v863
    %v890 = vadd.f32 %v882, %v864
    %v891 = vlaneseq
    %v892 = vshrl.u32 %v891, 7
    %v893 = vsub.s32 1, %v892
    %v894 = vrot.slane %v847, %v893
    %v895 = vlaneseq
    %v896 = vshrl.u32 %v895, 7
    %v897 = vsub.s32 1, %v896
    %v898 = vrot.slane %v848, %v897
    %v899 = vmul.f32 %v894, %v107
    %v900 = vmul.f32 %v898, %v108
    %v901 = vmul.f32 %v894, %v101
    %v902 = vmul.f32 %v898, %v102
    %v903 = vmul.f32 %v894, %v109
    %v904 = vmul.f32 %v898, %v110
    %v905 = vmul.f32 %v894, %v111
    %v906 = vmul.f32 %v898, %v112
    %v907 = vmul.f32 %v894, %v105
    %v908 = vmul.f32 %v898, %v106
    %v909 = vmul.f32 %v894, %v113
    %v910 = vmul.f32 %v898, %v114
    %v923 = vrot.slane %v899, 1
    %v924 = vrot.slane %v901, 1
    %v925 = vsel %vm261, %v923, %v924
    %v926 = vrot.slane %v900, 1
    %v927 = vrot.slane %v902, 1
    %v928 = vsel %vm261, %v926, %v927
    %v929 = vrot.slane %v903, 1
    %v930 = vsel %vm261, %v924, %v929
    %v931 = vrot.slane %v904, 1
    %v932 = vsel %vm261, %v927, %v931
    %v933 = vrot.slane %v905, 1
    %v934 = vrot.slane %v907, 1
    %v935 = vsel %vm261, %v933, %v934
    %v936 = vrot.slane %v906, 1
    %v937 = vrot.slane %v908, 1
    %v938 = vsel %vm261, %v936, %v937
    %v939 = vrot.slane %v909, 1
    %v940 = vsel %vm261, %v934, %v939
    %v941 = vrot.slane %v910, 1
    %v942 = vsel %vm261, %v937, %v941
    %v951 = vadd.f32 %v883, %v925
    %v952 = vadd.f32 %v884, %v928
    %v953 = vadd.f32 %v885, %v930
    %v954 = vadd.f32 %v886, %v932
    %v955 = vadd.f32 %v887, %v935
    %v956 = vadd.f32 %v888, %v938
    %v957 = vadd.f32 %v889, %v940
    %v958 = vadd.f32 %v890, %v942
    %v959 = vlaneseq
    %v960 = vshrl.u32 %v959, 7
    %v961 = vsub.s32 2, %v960
    %v962 = vrot.slane %v847, %v961
    %v963 = vlaneseq
    %v964 = vshrl.u32 %v963, 7
    %v965 = vsub.s32 2, %v964
    %v966 = vrot.slane %v848, %v965
    %v967 = vmul.f32 %v962, %v115
    %v968 = vmul.f32 %v966, %v116
    %v969 = vmul.f32 %v962, %v101
    %v970 = vmul.f32 %v966, %v102
    %v971 = vmul.f32 %v962, %v117
    %v972 = vmul.f32 %v966, %v118
    %v973 = vmul.f32 %v962, %v119
    %v974 = vmul.f32 %v966, %v120
    %v975 = vmul.f32 %v962, %v105
    %v976 = vmul.f32 %v966, %v106
    %v977 = vmul.f32 %v962, %v121
    %v978 = vmul.f32 %v966, %v122
    %v991 = vrot.slane %v967, 2
    %v992 = vrot.slane %v969, 2
    %v993 = vsel %vm348, %v991, %v992
    %v994 = vrot.slane %v968, 2
    %v995 = vrot.slane %v970, 2
    %v996 = vsel %vm348, %v994, %v995
    %v997 = vrot.slane %v971, 2
    %v998 = vsel %vm348, %v992, %v997
    %v999 = vrot.slane %v972, 2
    %v1000 = vsel %vm348, %v995, %v999
    %v1001 = vrot.slane %v973, 2
    %v1002 = vrot.slane %v975, 2
    %v1003 = vsel %vm348, %v1001, %v1002
    %v1004 = vrot.slane %v974, 2
    %v1005 = vrot.slane %v976, 2
    %v1006 = vsel %vm348, %v1004, %v1005
    %v1007 = vrot.slane %v977, 2
    %v1008 = vsel %vm348, %v1002, %v1007
    %v1009 = vrot.slane %v978, 2
    %v1010 = vsel %vm348, %v1005, %v1009
    %v1019 = vadd.f32 %v951, %v993
    %v1020 = vadd.f32 %v952, %v996
    %v1021 = vadd.f32 %v953, %v998
    %v1022 = vadd.f32 %v954, %v1000
    %v1023 = vadd.f32 %v955, %v1003
    %v1024 = vadd.f32 %v956, %v1006
    %v1025 = vadd.f32 %v957, %v1008
    %v1026 = vadd.f32 %v958, %v1010
    %v1027 = vlaneseq
    %v1028 = vshrl.u32 %v1027, 7
    %v1029 = vsub.s32 3, %v1028
    %v1030 = vrot.slane %v847, %v1029
    %v1031 = vlaneseq
    %v1032 = vshrl.u32 %v1031, 7
    %v1033 = vsub.s32 3, %v1032
    %v1034 = vrot.slane %v848, %v1033
    %v1035 = vmul.f32 %v1030, %v123
    %v1036 = vmul.f32 %v1034, %v124
    %v1037 = vmul.f32 %v1030, %v101
    %v1038 = vmul.f32 %v1034, %v102
    %v1039 = vmul.f32 %v1030, %v125
    %v1040 = vmul.f32 %v1034, %v126
    %v1041 = vmul.f32 %v1030, %v127
    %v1042 = vmul.f32 %v1034, %v128
    %v1043 = vmul.f32 %v1030, %v105
    %v1044 = vmul.f32 %v1034, %v106
    %v1045 = vmul.f32 %v1030, %v129
    %v1046 = vmul.f32 %v1034, %v130
    %v1059 = vrot.slane %v1035, 3
    %v1060 = vrot.slane %v1037, 3
    %v1061 = vsel %vm677, %v1059, %v1060
    %v1062 = vrot.slane %v1036, 3
    %v1063 = vrot.slane %v1038, 3
    %v1064 = vsel %vm677, %v1062, %v1063
    %v1065 = vrot.slane %v1039, 3
    %v1066 = vsel %vm677, %v1060, %v1065
    %v1067 = vrot.slane %v1040, 3
    %v1068 = vsel %vm677, %v1063, %v1067
    %v1069 = vrot.slane %v1041, 3
    %v1070 = vrot.slane %v1043, 3
    %v1071 = vsel %vm677, %v1069, %v1070
    %v1072 = vrot.slane %v1042, 3
    %v1073 = vrot.slane %v1044, 3
    %v1074 = vsel %vm677, %v1072, %v1073
    %v1075 = vrot.slane %v1045, 3
    %v1076 = vsel %vm677, %v1070, %v1075
    %v1077 = vrot.slane %v1046, 3
    %v1078 = vsel %vm677, %v1073, %v1077
    %v1087 = vadd.f32 %v1019, %v1061
    %v1088 = vadd.f32 %v1020, %v1064
    %v1089 = vadd.f32 %v1021, %v1066
    %v1090 = vadd.f32 %v1022, %v1068
    %v1091 = vadd.f32 %v1023, %v1071
    %v1092 = vadd.f32 %v1024, %v1074
    %v1093 = vadd.f32 %v1025, %v1076
    %v1094 = vadd.f32 %v1026, %v1078
    %v1095 = vlaneseq
    %v1096 = vshrl.u32 %v1095, 7
    %v1097 = vsub.s32 4, %v1096
    %v1098 = vrot.slane %v847, %v1097
    %v1099 = vlaneseq
    %v1100 = vshrl.u32 %v1099, 7
    %v1101 = vsub.s32 4, %v1100
    %v1102 = vrot.slane %v848, %v1101
    %v1103 = vmul.f32 %v1098, %v131
    %v1104 = vmul.f32 %v1102, %v132
    %v1105 = vmul.f32 %v1098, %v101
    %v1106 = vmul.f32 %v1102, %v102
    %v1107 = vmul.f32 %v1098, %v133
    %v1108 = vmul.f32 %v1102, %v134
    %v1109 = vmul.f32 %v1098, %v135
    %v1110 = vmul.f32 %v1102, %v136
    %v1111 = vmul.f32 %v1098, %v105
    %v1112 = vmul.f32 %v1102, %v106
    %v1113 = vmul.f32 %v1098, %v137
    %v1114 = vmul.f32 %v1102, %v138
    %v1127 = vrot.slane %v1103, 4
    %v1128 = vrot.slane %v1105, 4
    %v1129 = vsel %vm754, %v1127, %v1128
    %v1130 = vrot.slane %v1104, 4
    %v1131 = vrot.slane %v1106, 4
    %v1132 = vsel %vm754, %v1130, %v1131
    %v1133 = vrot.slane %v1107, 4
    %v1134 = vsel %vm754, %v1128, %v1133
    %v1135 = vrot.slane %v1108, 4
    %v1136 = vsel %vm754, %v1131, %v1135
    %v1137 = vrot.slane %v1109, 4
    %v1138 = vrot.slane %v1111, 4
    %v1139 = vsel %vm754, %v1137, %v1138
    %v1140 = vrot.slane %v1110, 4
    %v1141 = vrot.slane %v1112, 4
    %v1142 = vsel %vm754, %v1140, %v1141
    %v1143 = vrot.slane %v1113, 4
    %v1144 = vsel %vm754, %v1138, %v1143
    %v1145 = vrot.slane %v1114, 4
    %v1146 = vsel %vm754, %v1141, %v1145
    %v1155 = vadd.f32 %v1087, %v1129
    %v1156 = vadd.f32 %v1088, %v1132
    %v1157 = vadd.f32 %v1089, %v1134
    %v1158 = vadd.f32 %v1090, %v1136
    %v1159 = vadd.f32 %v1091, %v1139
    %v1160 = vadd.f32 %v1092, %v1142
    %v1161 = vadd.f32 %v1093, %v1144
    %v1162 = vadd.f32 %v1094, %v1146
    %v1163 = vlaneseq
    %v1164 = vshrl.u32 %v1163, 7
    %v1165 = vsub.s32 5, %v1164
    %v1166 = vrot.slane %v847, %v1165
    %v1167 = vlaneseq
    %v1168 = vshrl.u32 %v1167, 7
    %v1169 = vsub.s32 5, %v1168
    %v1170 = vrot.slane %v848, %v1169
    %v1171 = vmul.f32 %v1166, %v139
    %v1172 = vmul.f32 %v1170, %v140
    %v1173 = vmul.f32 %v1166, %v101
    %v1174 = vmul.f32 %v1170, %v102
    %v1175 = vmul.f32 %v1166, %v141
    %v1176 = vmul.f32 %v1170, %v142
    %v1177 = vmul.f32 %v1166, %v143
    %v1178 = vmul.f32 %v1170, %v144
    %v1179 = vmul.f32 %v1166, %v105
    %v1180 = vmul.f32 %v1170, %v106
    %v1181 = vmul.f32 %v1166, %v145
    %v1182 = vmul.f32 %v1170, %v146
    %vm1195 = vcmask 1042432
    %v1196 = vrot.slane %v1171, 5
    %v1197 = vrot.slane %v1173, 5
    %v1198 = vsel %vm1195, %v1196, %v1197
    %v1199 = vrot.slane %v1172, 5
    %v1200 = vrot.slane %v1174, 5
    %v1201 = vsel %vm1195, %v1199, %v1200
    %v1202 = vrot.slane %v1175, 5
    %v1203 = vsel %vm1195, %v1197, %v1202
    %v1204 = vrot.slane %v1176, 5
    %v1205 = vsel %vm1195, %v1200, %v1204
    %v1206 = vrot.slane %v1177, 5
    %v1207 = vrot.slane %v1179, 5
    %v1208 = vsel %vm1195, %v1206, %v1207
    %v1209 = vrot.slane %v1178, 5
    %v1210 = vrot.slane %v1180, 5
    %v1211 = vsel %vm1195, %v1209, %v1210
    %v1212 = vrot.slane %v1181, 5
    %v1213 = vsel %vm1195, %v1207, %v1212
    %v1214 = vrot.slane %v1182, 5
    %v1215 = vsel %vm1195, %v1210, %v1214
    %v1224 = vadd.f32 %v1155, %v1198
    %v1225 = vadd.f32 %v1156, %v1201
    %v1226 = vadd.f32 %v1157, %v1203
    %v1227 = vadd.f32 %v1158, %v1205
    %v1228 = vadd.f32 %v1159, %v1208
    %v1229 = vadd.f32 %v1160, %v1211
    %v1230 = vadd.f32 %v1161, %v1213
    %v1231 = vadd.f32 %v1162, %v1215
    %v1232 = vlaneseq
    %v1233 = vshrl.u32 %v1232, 7
    %v1234 = vsub.s32 6, %v1233
    %v1235 = vrot.slane %v847, %v1234
    %v1236 = vlaneseq
    %v1237 = vshrl.u32 %v1236, 7
    %v1238 = vsub.s32 6, %v1237
    %v1239 = vrot.slane %v848, %v1238
    %v1240 = vmul.f32 %v1235, %v147
    %v1241 = vmul.f32 %v1239, %v148
    %v1242 = vmul.f32 %v1235, %v101
    %v1243 = vmul.f32 %v1239, %v102
    %v1244 = vmul.f32 %v1235, %v149
    %v1245 = vmul.f32 %v1239, %v150
    %v1246 = vmul.f32 %v1235, %v151
    %v1247 = vmul.f32 %v1239, %v152
    %v1248 = vmul.f32 %v1235, %v105
    %v1249 = vmul.f32 %v1239, %v106
    %v1250 = vmul.f32 %v1235, %v153
    %v1251 = vmul.f32 %v1239, %v154
    %vm1264 = vcmask 1041408
    %v1265 = vrot.slane %v1240, 6
    %v1266 = vrot.slane %v1242, 6
    %v1267 = vsel %vm1264, %v1265, %v1266
    %v1268 = vrot.slane %v1241, 6
    %v1269 = vrot.slane %v1243, 6
    %v1270 = vsel %vm1264, %v1268, %v1269
    %v1271 = vrot.slane %v1244, 6
    %v1272 = vsel %vm1264, %v1266, %v1271
    %v1273 = vrot.slane %v1245, 6
    %v1274 = vsel %vm1264, %v1269, %v1273
    %v1275 = vrot.slane %v1246, 6
    %v1276 = vrot.slane %v1248, 6
    %v1277 = vsel %vm1264, %v1275, %v1276
    %v1278 = vrot.slane %v1247, 6
    %v1279 = vrot.slane %v1249, 6
    %v1280 = vsel %vm1264, %v1278, %v1279
    %v1281 = vrot.slane %v1250, 6
    %v1282 = vsel %vm1264, %v1276, %v1281
    %v1283 = vrot.slane %v1251, 6
    %v1284 = vsel %vm1264, %v1279, %v1283
    %v1293 = vadd.f32 %v1224, %v1267
    %v1294 = vadd.f32 %v1225, %v1270
    %v1295 = vadd.f32 %v1226, %v1272
    %v1296 = vadd.f32 %v1227, %v1274
    %v1297 = vadd.f32 %v1228, %v1277
    %v1298 = vadd.f32 %v1229, %v1280
    %v1299 = vadd.f32 %v1230, %v1282
    %v1300 = vadd.f32 %v1231, %v1284
    %v1301 = vpack.c.bf16 %v1295, %v1293
    %v1302 = vpack.c.bf16 %v1296, %v1294
    %v1303 = vpack.c.bf16 %v1299, %v1297
    %v1304 = vpack.c.bf16 %v1300, %v1298
    %1305 = vst [vmem:[#allocation2 + $0x20] sm:$0xff] %v1301
    %1306 = vst [vmem:[#allocation2 + $0x28] sm:$0xff] %v1302
    %1307 = vst [vmem:[#allocation2 + $0x50] sm:$0xff] %v1303
    %1308 = vst [vmem:[#allocation2 + $0x58] sm:$0xff] %v1304
    %v1309 = vld [vmem:[#allocation2] sm:$0xff]
    %v1310 = vld [vmem:[#allocation2 + $0x8] sm:$0xff]
    %v1311 = vld [vmem:[#allocation2 + $0x10] sm:$0xff]
    %v1312 = vld [vmem:[#allocation2 + $0x18] sm:$0xff]
    %v1313 = vld [vmem:[#allocation2 + $0x20] sm:$0xff]
    %v1314 = vld [vmem:[#allocation2 + $0x28] sm:$0xff]
    %v1315 = vld [vmem:[#allocation2 + $0x30] sm:$0xff]
    %v1316 = vld [vmem:[#allocation2 + $0x38] sm:$0xff]
    %v1317 = vld [vmem:[#allocation2 + $0x40] sm:$0xff]
    %v1318 = vld [vmem:[#allocation2 + $0x48] sm:$0xff]
    %v1319 = vld [vmem:[#allocation2 + $0x50] sm:$0xff]
    %v1320 = vld [vmem:[#allocation2 + $0x58] sm:$0xff]
    %v1321 = vld [vmem:[#allocation11] sm:$0xff]
    %v1322 = vld [vmem:[#allocation11 + $0x8] sm:$0xff]
    %v1323 = vld [vmem:[#allocation11 + $0x10] sm:$0xff]
    %v1324 = vld [vmem:[#allocation11 + $0x18] sm:$0xff]
    %v1325 = vld [vmem:[#allocation11 + $0x20] sm:$0xff]
    %v1326 = vld [vmem:[#allocation11 + $0x28] sm:$0xff]
    %v1327 = vld [vmem:[#allocation11 + $0x30] sm:$0xff]
    %v1328 = vld [vmem:[#allocation11 + $0x38] sm:$0xff]
    %v1329 = vld [vmem:[#allocation11 + $0x40] sm:$0xff]
    %v1330 = vld [vmem:[#allocation11 + $0x48] sm:$0xff]
    %v1331 = vld [vmem:[#allocation11 + $0x50] sm:$0xff]
    %v1332 = vld [vmem:[#allocation11 + $0x58] sm:$0xff]
    %v1333 = vld [vmem:[#allocation11 + $0x60] sm:$0xff]
    %v1334 = vld [vmem:[#allocation11 + $0x68] sm:$0xff]
    %v1335 = vld [vmem:[#allocation11 + $0x70] sm:$0xff]
    %v1336 = vld [vmem:[#allocation11 + $0x78] sm:$0xff]
    %v1337 = vld [vmem:[#allocation11 + $0x80] sm:$0xff]
    %v1338 = vld [vmem:[#allocation11 + $0x88] sm:$0xff]
    %v1339 = vld [vmem:[#allocation11 + $0x90] sm:$0xff]
    %v1340 = vld [vmem:[#allocation11 + $0x98] sm:$0xff]
    %v1341 = vld [vmem:[#allocation11 + $0xa0] sm:$0xff]
    %v1342 = vld [vmem:[#allocation11 + $0xa8] sm:$0xff]
    %v1343 = vld [vmem:[#allocation11 + $0xb0] sm:$0xff]
    %v1344 = vld [vmem:[#allocation11 + $0xb8] sm:$0xff]
    %v1345 = vld [vmem:[#allocation11 + $0xc0] sm:$0xff]
    %v1346 = vld [vmem:[#allocation11 + $0xc8] sm:$0xff]
    %v1347 = vld [vmem:[#allocation11 + $0xd0] sm:$0xff]
    %v1348 = vld [vmem:[#allocation11 + $0xd8] sm:$0xff]
    %v1349 = vld [vmem:[#allocation11 + $0xe0] sm:$0xff]
    %v1350 = vld [vmem:[#allocation11 + $0xe8] sm:$0xff]
    %v1351 = vld [vmem:[#allocation11 + $0xf0] sm:$0xff]
    %v1352 = vld [vmem:[#allocation11 + $0xf8] sm:$0xff]
    %v1353 = vld [vmem:[#allocation11 + $0x100] sm:$0xff]
    %v1354 = vld [vmem:[#allocation11 + $0x108] sm:$0xff]
    %v1355 = vld [vmem:[#allocation11 + $0x110] sm:$0xff]
    %v1356 = vld [vmem:[#allocation11 + $0x118] sm:$0xff]
    %v1357 = vld [vmem:[#allocation11 + $0x120] sm:$0xff]
    %v1358 = vld [vmem:[#allocation11 + $0x128] sm:$0xff]
    %v1359 = vld [vmem:[#allocation11 + $0x130] sm:$0xff]
    %v1360 = vld [vmem:[#allocation11 + $0x138] sm:$0xff]
    %v1361 = vld [vmem:[#allocation11 + $0x140] sm:$0xff]
    %v1362 = vld [vmem:[#allocation11 + $0x148] sm:$0xff]
    %v1363 = vld [vmem:[#allocation11 + $0x150] sm:$0xff]
    %v1364 = vld [vmem:[#allocation11 + $0x158] sm:$0xff]
    %v1365 = vld [vmem:[#allocation11 + $0x160] sm:$0xff]
    %v1366 = vld [vmem:[#allocation11 + $0x168] sm:$0xff]
    %v1367 = vld [vmem:[#allocation11 + $0x170] sm:$0xff]
    %v1368 = vld [vmem:[#allocation11 + $0x178] sm:$0xff]
    %v1369 = vld [vmem:[#allocation11 + $0x180] sm:$0xff]
    %v1370 = vld [vmem:[#allocation11 + $0x188] sm:$0xff]
    %v1371 = vld [vmem:[#allocation11 + $0x190] sm:$0xff]
    %v1372 = vld [vmem:[#allocation11 + $0x198] sm:$0xff]
    %v1373 = vld [vmem:[#allocation11 + $0x1a0] sm:$0xff]
    %v1374 = vld [vmem:[#allocation11 + $0x1a8] sm:$0xff]
    %v1375 = vld [vmem:[#allocation11 + $0x1b0] sm:$0xff]
    %v1376 = vld [vmem:[#allocation11 + $0x1b8] sm:$0xff]
    %v1377 = vld [vmem:[#allocation11 + $0x1c0] sm:$0xff]
    %v1378 = vld [vmem:[#allocation11 + $0x1c8] sm:$0xff]
    %v1379 = vld [vmem:[#allocation11 + $0x1d0] sm:$0xff]
    %v1380 = vld [vmem:[#allocation11 + $0x1d8] sm:$0xff]
    %v1381 = vld [vmem:[#allocation11 + $0x1e0] sm:$0xff]
    %v1382 = vld [vmem:[#allocation11 + $0x1e8] sm:$0xff]
    %v1383 = vld [vmem:[#allocation11 + $0x1f0] sm:$0xff]
    %v1384 = vld [vmem:[#allocation11 + $0x1f8] sm:$0xff]
    %v1385 = vld [vmem:[#allocation11 + $0x200] sm:$0xff]
    %v1386 = vld [vmem:[#allocation11 + $0x208] sm:$0xff]
    %v1387 = vld [vmem:[#allocation11 + $0x210] sm:$0xff]
    %v1388 = vld [vmem:[#allocation11 + $0x218] sm:$0xff]
    %v1389 = vld [vmem:[#allocation11 + $0x220] sm:$0xff]
    %v1390 = vld [vmem:[#allocation11 + $0x228] sm:$0xff]
    %v1391 = vld [vmem:[#allocation11 + $0x230] sm:$0xff]
    %v1392 = vld [vmem:[#allocation11 + $0x238] sm:$0xff]
    %v1393 = vld [vmem:[#allocation11 + $0x240] sm:$0xff]
    %v1394 = vld [vmem:[#allocation11 + $0x248] sm:$0xff]
    %v1395 = vld [vmem:[#allocation11 + $0x250] sm:$0xff]
    %v1396 = vld [vmem:[#allocation11 + $0x258] sm:$0xff]
    %v1397 = vld [vmem:[#allocation11 + $0x260] sm:$0xff]
    %v1398 = vld [vmem:[#allocation11 + $0x268] sm:$0xff]
    %v1399 = vld [vmem:[#allocation11 + $0x270] sm:$0xff]
    %v1400 = vld [vmem:[#allocation11 + $0x278] sm:$0xff]
    %v1401 = vld [vmem:[#allocation11 + $0x280] sm:$0xff]
    %v1402 = vld [vmem:[#allocation11 + $0x288] sm:$0xff]
    %v1403 = vld [vmem:[#allocation11 + $0x290] sm:$0xff]
    %v1404 = vld [vmem:[#allocation11 + $0x298] sm:$0xff]
    %v1405 = vld [vmem:[#allocation11 + $0x2a0] sm:$0xff]
    %v1406 = vld [vmem:[#allocation11 + $0x2a8] sm:$0xff]
    %v1407 = vld [vmem:[#allocation11 + $0x2b0] sm:$0xff]
    %v1408 = vld [vmem:[#allocation11 + $0x2b8] sm:$0xff]
    %v1409 = vld [vmem:[#allocation11 + $0x2c0] sm:$0xff]
    %v1410 = vld [vmem:[#allocation11 + $0x2c8] sm:$0xff]
    %v1411 = vld [vmem:[#allocation11 + $0x2d0] sm:$0xff]
    %v1412 = vld [vmem:[#allocation11 + $0x2d8] sm:$0xff]
    %v1413 = vld [vmem:[#allocation11 + $0x2e0] sm:$0xff]
    %v1414 = vld [vmem:[#allocation11 + $0x2e8] sm:$0xff]
    %v1415 = vld [vmem:[#allocation11 + $0x2f0] sm:$0xff]
    %v1416 = vld [vmem:[#allocation11 + $0x2f8] sm:$0xff]
    %v1417 = vld [vmem:[#allocation11 + $0x300] sm:$0xff]
    %v1418 = vld [vmem:[#allocation11 + $0x308] sm:$0xff]
    %v1419 = vld [vmem:[#allocation11 + $0x310] sm:$0xff]
    %v1420 = vld [vmem:[#allocation11 + $0x318] sm:$0xff]
    %v1421 = vld [vmem:[#allocation11 + $0x320] sm:$0xff]
    %v1422 = vld [vmem:[#allocation11 + $0x328] sm:$0xff]
    %v1423 = vld [vmem:[#allocation11 + $0x330] sm:$0xff]
    %v1424 = vld [vmem:[#allocation11 + $0x338] sm:$0xff]
    %v1425 = vld [vmem:[#allocation11 + $0x340] sm:$0xff]
    %v1426 = vld [vmem:[#allocation11 + $0x348] sm:$0xff]
    %v1427 = vld [vmem:[#allocation11 + $0x350] sm:$0xff]
    %v1428 = vld [vmem:[#allocation11 + $0x358] sm:$0xff]
    %v1429 = vld [vmem:[#allocation11 + $0x360] sm:$0xff]
    %v1430 = vld [vmem:[#allocation11 + $0x368] sm:$0xff]
    %v1431 = vld [vmem:[#allocation11 + $0x370] sm:$0xff]
    %v1432 = vld [vmem:[#allocation11 + $0x378] sm:$0xff]
    %v1433 = vld [vmem:[#allocation11 + $0x380] sm:$0xff]
    %v1434 = vld [vmem:[#allocation11 + $0x388] sm:$0xff]
    %v1435 = vld [vmem:[#allocation11 + $0x390] sm:$0xff]
    %v1436 = vld [vmem:[#allocation11 + $0x398] sm:$0xff]
    %v1437 = vld [vmem:[#allocation11 + $0x3a0] sm:$0xff]
    %v1438 = vld [vmem:[#allocation11 + $0x3a8] sm:$0xff]
    %v1439 = vld [vmem:[#allocation11 + $0x3b0] sm:$0xff]
    %v1440 = vld [vmem:[#allocation11 + $0x3b8] sm:$0xff]
    %v1441 = vld [vmem:[#allocation11 + $0x3c0] sm:$0xff]
    %v1442 = vld [vmem:[#allocation11 + $0x3c8] sm:$0xff]
    %v1443 = vld [vmem:[#allocation11 + $0x3d0] sm:$0xff]
    %v1444 = vld [vmem:[#allocation11 + $0x3d8] sm:$0xff]
    %v1445 = vld [vmem:[#allocation11 + $0x3e0] sm:$0xff]
    %v1446 = vld [vmem:[#allocation11 + $0x3e8] sm:$0xff]
    %v1447 = vld [vmem:[#allocation11 + $0x3f0] sm:$0xff]
    %v1448 = vld [vmem:[#allocation11 + $0x3f8] sm:$0xff]
    %v1449 = vld [vmem:[#allocation11 + $0x400] sm:$0xff]
    %v1450 = vld [vmem:[#allocation11 + $0x408] sm:$0xff]
    %v1451 = vld [vmem:[#allocation11 + $0x410] sm:$0xff]
    %v1452 = vld [vmem:[#allocation11 + $0x418] sm:$0xff]
    %v1453 = vld [vmem:[#allocation11 + $0x420] sm:$0xff]
    %v1454 = vld [vmem:[#allocation11 + $0x428] sm:$0xff]
    %v1455 = vld [vmem:[#allocation11 + $0x430] sm:$0xff]
    %v1456 = vld [vmem:[#allocation11 + $0x438] sm:$0xff]
    %v1457 = vld [vmem:[#allocation11 + $0x440] sm:$0xff]
    %v1458 = vld [vmem:[#allocation11 + $0x448] sm:$0xff]
    %v1459 = vld [vmem:[#allocation11 + $0x450] sm:$0xff]
    %v1460 = vld [vmem:[#allocation11 + $0x458] sm:$0xff]
    %v1461 = vld [vmem:[#allocation11 + $0x460] sm:$0xff]
    %v1462 = vld [vmem:[#allocation11 + $0x468] sm:$0xff]
    %v1463 = vld [vmem:[#allocation11 + $0x470] sm:$0xff]
    %v1464 = vld [vmem:[#allocation11 + $0x478] sm:$0xff]
    %v1465 = vld [vmem:[#allocation11 + $0x480] sm:$0xff]
    %v1466 = vld [vmem:[#allocation11 + $0x488] sm:$0xff]
    %v1467 = vld [vmem:[#allocation11 + $0x490] sm:$0xff]
    %v1468 = vld [vmem:[#allocation11 + $0x498] sm:$0xff]
    %v1469 = vld [vmem:[#allocation11 + $0x4a0] sm:$0xff]
    %v1470 = vld [vmem:[#allocation11 + $0x4a8] sm:$0xff]
    %v1471 = vld [vmem:[#allocation11 + $0x4b0] sm:$0xff]
    %v1472 = vld [vmem:[#allocation11 + $0x4b8] sm:$0xff]
    %v1473 = vld [vmem:[#allocation11 + $0x4c0] sm:$0xff]
    %v1474 = vld [vmem:[#allocation11 + $0x4c8] sm:$0xff]
    %v1475 = vld [vmem:[#allocation11 + $0x4d0] sm:$0xff]
    %v1476 = vld [vmem:[#allocation11 + $0x4d8] sm:$0xff]
    %v1477 = vld [vmem:[#allocation11 + $0x4e0] sm:$0xff]
    %v1478 = vld [vmem:[#allocation11 + $0x4e8] sm:$0xff]
    %v1479 = vld [vmem:[#allocation11 + $0x4f0] sm:$0xff]
    %v1480 = vld [vmem:[#allocation11 + $0x4f8] sm:$0xff]
    %v1481 = vld [vmem:[#allocation11 + $0x500] sm:$0xff]
    %v1482 = vld [vmem:[#allocation11 + $0x508] sm:$0xff]
    %v1483 = vld [vmem:[#allocation11 + $0x510] sm:$0xff]
    %v1484 = vld [vmem:[#allocation11 + $0x518] sm:$0xff]
    %v1485 = vld [vmem:[#allocation11 + $0x520] sm:$0xff]
    %v1486 = vld [vmem:[#allocation11 + $0x528] sm:$0xff]
    %v1487 = vld [vmem:[#allocation11 + $0x530] sm:$0xff]
    %v1488 = vld [vmem:[#allocation11 + $0x538] sm:$0xff]
    %v1489 = vld [vmem:[#allocation11 + $0x540] sm:$0xff]
    %v1490 = vld [vmem:[#allocation11 + $0x548] sm:$0xff]
    %v1491 = vld [vmem:[#allocation11 + $0x550] sm:$0xff]
    %v1492 = vld [vmem:[#allocation11 + $0x558] sm:$0xff]
    %v1493 = vld [vmem:[#allocation11 + $0x560] sm:$0xff]
    %v1494 = vld [vmem:[#allocation11 + $0x568] sm:$0xff]
    %v1495 = vld [vmem:[#allocation11 + $0x570] sm:$0xff]
    %v1496 = vld [vmem:[#allocation11 + $0x578] sm:$0xff]
    %v1497 = vld [vmem:[#allocation11 + $0x580] sm:$0xff]
    %v1498 = vld [vmem:[#allocation11 + $0x588] sm:$0xff]
    %v1499 = vld [vmem:[#allocation11 + $0x590] sm:$0xff]
    %v1500 = vld [vmem:[#allocation11 + $0x598] sm:$0xff]
    %v1501 = vld [vmem:[#allocation11 + $0x5a0] sm:$0xff]
    %v1502 = vld [vmem:[#allocation11 + $0x5a8] sm:$0xff]
    %v1503 = vld [vmem:[#allocation11 + $0x5b0] sm:$0xff]
    %v1504 = vld [vmem:[#allocation11 + $0x5b8] sm:$0xff]
    %v1505 = vld [vmem:[#allocation11 + $0x5c0] sm:$0xff]
    %v1506 = vld [vmem:[#allocation11 + $0x5c8] sm:$0xff]
    %v1507 = vld [vmem:[#allocation11 + $0x5d0] sm:$0xff]
    %v1508 = vld [vmem:[#allocation11 + $0x5d8] sm:$0xff]
    %v1509 = vld [vmem:[#allocation11 + $0x5e0] sm:$0xff]
    %v1510 = vld [vmem:[#allocation11 + $0x5e8] sm:$0xff]
    %v1511 = vld [vmem:[#allocation11 + $0x5f0] sm:$0xff]
    %v1512 = vld [vmem:[#allocation11 + $0x5f8] sm:$0xff]
    %v1513 = vld [vmem:[#allocation11 + $0x600] sm:$0xff]
    %v1514 = vld [vmem:[#allocation11 + $0x608] sm:$0xff]
    %v1515 = vld [vmem:[#allocation11 + $0x610] sm:$0xff]
    %v1516 = vld [vmem:[#allocation11 + $0x618] sm:$0xff]
    %v1517 = vld [vmem:[#allocation11 + $0x620] sm:$0xff]
    %v1518 = vld [vmem:[#allocation11 + $0x628] sm:$0xff]
    %v1519 = vld [vmem:[#allocation11 + $0x630] sm:$0xff]
    %v1520 = vld [vmem:[#allocation11 + $0x638] sm:$0xff]
    %v1521 = vld [vmem:[#allocation11 + $0x640] sm:$0xff]
    %v1522 = vld [vmem:[#allocation11 + $0x648] sm:$0xff]
    %v1523 = vld [vmem:[#allocation11 + $0x650] sm:$0xff]
    %v1524 = vld [vmem:[#allocation11 + $0x658] sm:$0xff]
    %v1525 = vld [vmem:[#allocation11 + $0x660] sm:$0xff]
    %v1526 = vld [vmem:[#allocation11 + $0x668] sm:$0xff]
    %v1527 = vld [vmem:[#allocation11 + $0x670] sm:$0xff]
    %v1528 = vld [vmem:[#allocation11 + $0x678] sm:$0xff]
    %v1529 = vld [vmem:[#allocation11 + $0x680] sm:$0xff]
    %v1530 = vld [vmem:[#allocation11 + $0x688] sm:$0xff]
    %v1531 = vld [vmem:[#allocation11 + $0x690] sm:$0xff]
    %v1532 = vld [vmem:[#allocation11 + $0x698] sm:$0xff]
    %v1533 = vld [vmem:[#allocation11 + $0x6a0] sm:$0xff]
    %v1534 = vld [vmem:[#allocation11 + $0x6a8] sm:$0xff]
    %v1535 = vld [vmem:[#allocation11 + $0x6b0] sm:$0xff]
    %v1536 = vld [vmem:[#allocation11 + $0x6b8] sm:$0xff]
    %v1537 = vld [vmem:[#allocation11 + $0x6c0] sm:$0xff]
    %v1538 = vld [vmem:[#allocation11 + $0x6c8] sm:$0xff]
    %v1539 = vld [vmem:[#allocation11 + $0x6d0] sm:$0xff]
    %v1540 = vld [vmem:[#allocation11 + $0x6d8] sm:$0xff]
    %v1541 = vld [vmem:[#allocation11 + $0x6e0] sm:$0xff]
    %v1542 = vld [vmem:[#allocation11 + $0x6e8] sm:$0xff]
    %v1543 = vld [vmem:[#allocation11 + $0x6f0] sm:$0xff]
    %v1544 = vld [vmem:[#allocation11 + $0x6f8] sm:$0xff]
    %v1545 = vld [vmem:[#allocation11 + $0x700] sm:$0xff]
    %v1546 = vld [vmem:[#allocation11 + $0x708] sm:$0xff]
    %v1547 = vld [vmem:[#allocation11 + $0x710] sm:$0xff]
    %v1548 = vld [vmem:[#allocation11 + $0x718] sm:$0xff]
    %v1549 = vld [vmem:[#allocation11 + $0x720] sm:$0xff]
    %v1550 = vld [vmem:[#allocation11 + $0x728] sm:$0xff]
    %v1551 = vld [vmem:[#allocation11 + $0x730] sm:$0xff]
    %v1552 = vld [vmem:[#allocation11 + $0x738] sm:$0xff]
    %v1553 = vld [vmem:[#allocation11 + $0x740] sm:$0xff]
    %v1554 = vld [vmem:[#allocation11 + $0x748] sm:$0xff]
    %v1555 = vld [vmem:[#allocation11 + $0x750] sm:$0xff]
    %v1556 = vld [vmem:[#allocation11 + $0x758] sm:$0xff]
    %v1557 = vld [vmem:[#allocation11 + $0x760] sm:$0xff]
    %v1558 = vld [vmem:[#allocation11 + $0x768] sm:$0xff]
    %v1559 = vld [vmem:[#allocation11 + $0x770] sm:$0xff]
    %v1560 = vld [vmem:[#allocation11 + $0x778] sm:$0xff]
    %v1561 = vld [vmem:[#allocation11 + $0x780] sm:$0xff]
    %v1562 = vld [vmem:[#allocation11 + $0x788] sm:$0xff]
    %v1563 = vld [vmem:[#allocation11 + $0x790] sm:$0xff]
    %v1564 = vld [vmem:[#allocation11 + $0x798] sm:$0xff]
    %v1565 = vld [vmem:[#allocation11 + $0x7a0] sm:$0xff]
    %v1566 = vld [vmem:[#allocation11 + $0x7a8] sm:$0xff]
    %v1567 = vld [vmem:[#allocation11 + $0x7b0] sm:$0xff]
    %v1568 = vld [vmem:[#allocation11 + $0x7b8] sm:$0xff]
    %v1569 = vld [vmem:[#allocation11 + $0x7c0] sm:$0xff]
    %v1570 = vld [vmem:[#allocation11 + $0x7c8] sm:$0xff]
    %v1571 = vld [vmem:[#allocation11 + $0x7d0] sm:$0xff]
    %v1572 = vld [vmem:[#allocation11 + $0x7d8] sm:$0xff]
    %v1573 = vld [vmem:[#allocation11 + $0x7e0] sm:$0xff]
    %v1574 = vld [vmem:[#allocation11 + $0x7e8] sm:$0xff]
    %v1575 = vld [vmem:[#allocation11 + $0x7f0] sm:$0xff]
    %v1576 = vld [vmem:[#allocation11 + $0x7f8] sm:$0xff]
    %v1577 = vld [vmem:[#allocation11 + $0x800] sm:$0xff]
    %v1578 = vld [vmem:[#allocation11 + $0x808] sm:$0xff]
    %v1579 = vld [vmem:[#allocation11 + $0x810] sm:$0xff]
    %v1580 = vld [vmem:[#allocation11 + $0x818] sm:$0xff]
    %v1581 = vld [vmem:[#allocation11 + $0x820] sm:$0xff]
    %v1582 = vld [vmem:[#allocation11 + $0x828] sm:$0xff]
    %v1583 = vld [vmem:[#allocation11 + $0x830] sm:$0xff]
    %v1584 = vld [vmem:[#allocation11 + $0x838] sm:$0xff]
    %v1585 = vld [vmem:[#allocation11 + $0x840] sm:$0xff]
    %v1586 = vld [vmem:[#allocation11 + $0x848] sm:$0xff]
    %v1587 = vld [vmem:[#allocation11 + $0x850] sm:$0xff]
    %v1588 = vld [vmem:[#allocation11 + $0x858] sm:$0xff]
    %v1589 = vld [vmem:[#allocation11 + $0x860] sm:$0xff]
    %v1590 = vld [vmem:[#allocation11 + $0x868] sm:$0xff]
    %v1591 = vld [vmem:[#allocation11 + $0x870] sm:$0xff]
    %v1592 = vld [vmem:[#allocation11 + $0x878] sm:$0xff]
    %v1593 = vld [vmem:[#allocation11 + $0x880] sm:$0xff]
    %v1594 = vld [vmem:[#allocation11 + $0x888] sm:$0xff]
    %v1595 = vld [vmem:[#allocation11 + $0x890] sm:$0xff]
    %v1596 = vld [vmem:[#allocation11 + $0x898] sm:$0xff]
    %v1597 = vld [vmem:[#allocation11 + $0x8a0] sm:$0xff]
    %v1598 = vld [vmem:[#allocation11 + $0x8a8] sm:$0xff]
    %v1599 = vld [vmem:[#allocation11 + $0x8b0] sm:$0xff]
    %v1600 = vld [vmem:[#allocation11 + $0x8b8] sm:$0xff]
    %v1601 = vld [vmem:[#allocation11 + $0x8c0] sm:$0xff]
    %v1602 = vld [vmem:[#allocation11 + $0x8c8] sm:$0xff]
    %v1603 = vld [vmem:[#allocation11 + $0x8d0] sm:$0xff]
    %v1604 = vld [vmem:[#allocation11 + $0x8d8] sm:$0xff]
    %v1605 = vld [vmem:[#allocation11 + $0x8e0] sm:$0xff]
    %v1606 = vld [vmem:[#allocation11 + $0x8e8] sm:$0xff]
    %v1607 = vld [vmem:[#allocation11 + $0x8f0] sm:$0xff]
    %v1608 = vld [vmem:[#allocation11 + $0x8f8] sm:$0xff]
    %v1609 = vld [vmem:[#allocation12] sm:$0x3f]
    %v1611 = vlaneseq
    %v1612 = vshrl.u32 %v1611, 7
    %v1613 = vsub.s32 0, %v1612
    %v1614 = vrot.slane %v1609, %v1613
    %v1615 = vlaneseq
    %v1616 = vshrl.u32 %v1615, 7
    %v1617 = vsub.s32 1, %v1616
    %v1618 = vrot.slane %v1609, %v1617
    %v1619 = vlaneseq
    %v1620 = vshrl.u32 %v1619, 7
    %v1621 = vsub.s32 2, %v1620
    %v1622 = vrot.slane %v1609, %v1621
    %v1623 = vlaneseq
    %v1624 = vshrl.u32 %v1623, 7
    %v1625 = vsub.s32 3, %v1624
    %v1626 = vrot.slane %v1609, %v1625
    %v1627 = vlaneseq
    %v1628 = vshrl.u32 %v1627, 7
    %v1629 = vsub.s32 4, %v1628
    %v1630 = vrot.slane %v1609, %v1629
    %v1631 = vlaneseq
    %v1632 = vshrl.u32 %v1631, 7
    %v1633 = vsub.s32 5, %v1632
    %v1634 = vrot.slane %v1609, %v1633
    %v1929 = vunpack.c.l.b16 %v1321
    %v1930 = vunpack.c.h.b16 %v1321
    %v1931 = vunpack.c.l.b16 %v1322
    %v1932 = vunpack.c.h.b16 %v1322
    %v1933 = vunpack.c.l.b16 %v1323
    %v1934 = vunpack.c.h.b16 %v1323
    %v1935 = vunpack.c.l.b16 %v1324
    %v1936 = vunpack.c.h.b16 %v1324
    %v1937 = vunpack.c.l.b16 %v1325
    %v1938 = vunpack.c.h.b16 %v1325
    %v1939 = vunpack.c.l.b16 %v1326
    %v1940 = vunpack.c.h.b16 %v1326
    %v1941 = vunpack.c.l.b16 %v1327
    %v1942 = vunpack.c.h.b16 %v1327
    %v1943 = vunpack.c.l.b16 %v1328
    %v1944 = vunpack.c.h.b16 %v1328
    %v1945 = vunpack.c.l.b16 %v1329
    %v1946 = vunpack.c.h.b16 %v1329
    %v1947 = vunpack.c.l.b16 %v1330
    %v1948 = vunpack.c.h.b16 %v1330
    %v1949 = vunpack.c.l.b16 %v1331
    %v1950 = vunpack.c.h.b16 %v1331
    %v1951 = vunpack.c.l.b16 %v1332
    %v1952 = vunpack.c.h.b16 %v1332
    %v1953 = vunpack.c.l.b16 %v1333
    %v1954 = vunpack.c.h.b16 %v1333
    %v1955 = vunpack.c.l.b16 %v1334
    %v1956 = vunpack.c.h.b16 %v1334
    %v1957 = vunpack.c.l.b16 %v1335
    %v1958 = vunpack.c.h.b16 %v1335
    %v1959 = vunpack.c.l.b16 %v1336
    %v1960 = vunpack.c.h.b16 %v1336
    %v1961 = vunpack.c.l.b16 %v1337
    %v1962 = vunpack.c.h.b16 %v1337
    %v1963 = vunpack.c.l.b16 %v1338
    %v1964 = vunpack.c.h.b16 %v1338
    %v1965 = vunpack.c.l.b16 %v1339
    %v1966 = vunpack.c.h.b16 %v1339
    %v1967 = vunpack.c.l.b16 %v1340
    %v1968 = vunpack.c.h.b16 %v1340
    %v1969 = vunpack.c.l.b16 %v1341
    %v1970 = vunpack.c.h.b16 %v1341
    %v1971 = vunpack.c.l.b16 %v1342
    %v1972 = vunpack.c.h.b16 %v1342
    %v1973 = vunpack.c.l.b16 %v1343
    %v1974 = vunpack.c.h.b16 %v1343
    %v1975 = vunpack.c.l.b16 %v1344
    %v1976 = vunpack.c.h.b16 %v1344
    %v1977 = vunpack.c.l.b16 %v1345
    %v1978 = vunpack.c.h.b16 %v1345
    %v1979 = vunpack.c.l.b16 %v1346
    %v1980 = vunpack.c.h.b16 %v1346
    %v1981 = vunpack.c.l.b16 %v1347
    %v1982 = vunpack.c.h.b16 %v1347
    %v1983 = vunpack.c.l.b16 %v1348
    %v1984 = vunpack.c.h.b16 %v1348
    %v1985 = vunpack.c.l.b16 %v1349
    %v1986 = vunpack.c.h.b16 %v1349
    %v1987 = vunpack.c.l.b16 %v1350
    %v1988 = vunpack.c.h.b16 %v1350
    %v1989 = vunpack.c.l.b16 %v1351
    %v1990 = vunpack.c.h.b16 %v1351
    %v1991 = vunpack.c.l.b16 %v1352
    %v1992 = vunpack.c.h.b16 %v1352
    %v1993 = vunpack.c.l.b16 %v1353
    %v1994 = vunpack.c.h.b16 %v1353
    %v1995 = vunpack.c.l.b16 %v1354
    %v1996 = vunpack.c.h.b16 %v1354
    %v1997 = vunpack.c.l.b16 %v1355
    %v1998 = vunpack.c.h.b16 %v1355
    %v1999 = vunpack.c.l.b16 %v1356
    %v2000 = vunpack.c.h.b16 %v1356
    %v2001 = vunpack.c.l.b16 %v1357
    %v2002 = vunpack.c.h.b16 %v1357
    %v2003 = vunpack.c.l.b16 %v1358
    %v2004 = vunpack.c.h.b16 %v1358
    %v2005 = vunpack.c.l.b16 %v1359
    %v2006 = vunpack.c.h.b16 %v1359
    %v2007 = vunpack.c.l.b16 %v1360
    %v2008 = vunpack.c.h.b16 %v1360
    %v2009 = vunpack.c.l.b16 %v1361
    %v2010 = vunpack.c.h.b16 %v1361
    %v2011 = vunpack.c.l.b16 %v1362
    %v2012 = vunpack.c.h.b16 %v1362
    %v2013 = vunpack.c.l.b16 %v1363
    %v2014 = vunpack.c.h.b16 %v1363
    %v2015 = vunpack.c.l.b16 %v1364
    %v2016 = vunpack.c.h.b16 %v1364
    %v2017 = vunpack.c.l.b16 %v1365
    %v2018 = vunpack.c.h.b16 %v1365
    %v2019 = vunpack.c.l.b16 %v1366
    %v2020 = vunpack.c.h.b16 %v1366
    %v2021 = vunpack.c.l.b16 %v1367
    %v2022 = vunpack.c.h.b16 %v1367
    %v2023 = vunpack.c.l.b16 %v1368
    %v2024 = vunpack.c.h.b16 %v1368
    %v2025 = vunpack.c.l.b16 %v1369
    %v2026 = vunpack.c.h.b16 %v1369
    %v2027 = vunpack.c.l.b16 %v1370
    %v2028 = vunpack.c.h.b16 %v1370
    %v2029 = vunpack.c.l.b16 %v1371
    %v2030 = vunpack.c.h.b16 %v1371
    %v2031 = vunpack.c.l.b16 %v1372
    %v2032 = vunpack.c.h.b16 %v1372
    %v2033 = vunpack.c.l.b16 %v1373
    %v2034 = vunpack.c.h.b16 %v1373
    %v2035 = vunpack.c.l.b16 %v1374
    %v2036 = vunpack.c.h.b16 %v1374
    %v2037 = vunpack.c.l.b16 %v1375
    %v2038 = vunpack.c.h.b16 %v1375
    %v2039 = vunpack.c.l.b16 %v1376
    %v2040 = vunpack.c.h.b16 %v1376
    %v2041 = vunpack.c.l.b16 %v1377
    %v2042 = vunpack.c.h.b16 %v1377
    %v2043 = vunpack.c.l.b16 %v1378
    %v2044 = vunpack.c.h.b16 %v1378
    %v2045 = vunpack.c.l.b16 %v1379
    %v2046 = vunpack.c.h.b16 %v1379
    %v2047 = vunpack.c.l.b16 %v1380
    %v2048 = vunpack.c.h.b16 %v1380
    %v2049 = vunpack.c.l.b16 %v1381
    %v2050 = vunpack.c.h.b16 %v1381
    %v2051 = vunpack.c.l.b16 %v1382
    %v2052 = vunpack.c.h.b16 %v1382
    %v2053 = vunpack.c.l.b16 %v1383
    %v2054 = vunpack.c.h.b16 %v1383
    %v2055 = vunpack.c.l.b16 %v1384
    %v2056 = vunpack.c.h.b16 %v1384
    %v2057 = vunpack.c.l.b16 %v1385
    %v2058 = vunpack.c.h.b16 %v1385
    %v2059 = vunpack.c.l.b16 %v1386
    %v2060 = vunpack.c.h.b16 %v1386
    %v2061 = vunpack.c.l.b16 %v1387
    %v2062 = vunpack.c.h.b16 %v1387
    %v2063 = vunpack.c.l.b16 %v1388
    %v2064 = vunpack.c.h.b16 %v1388
    %v2065 = vunpack.c.l.b16 %v1389
    %v2066 = vunpack.c.h.b16 %v1389
    %v2067 = vunpack.c.l.b16 %v1390
    %v2068 = vunpack.c.h.b16 %v1390
    %v2069 = vunpack.c.l.b16 %v1391
    %v2070 = vunpack.c.h.b16 %v1391
    %v2071 = vunpack.c.l.b16 %v1392
    %v2072 = vunpack.c.h.b16 %v1392
    %v2073 = vunpack.c.l.b16 %v1393
    %v2074 = vunpack.c.h.b16 %v1393
    %v2075 = vunpack.c.l.b16 %v1394
    %v2076 = vunpack.c.h.b16 %v1394
    %v2077 = vunpack.c.l.b16 %v1395
    %v2078 = vunpack.c.h.b16 %v1395
    %v2079 = vunpack.c.l.b16 %v1396
    %v2080 = vunpack.c.h.b16 %v1396
    %v2081 = vunpack.c.l.b16 %v1397
    %v2082 = vunpack.c.h.b16 %v1397
    %v2083 = vunpack.c.l.b16 %v1398
    %v2084 = vunpack.c.h.b16 %v1398
    %v2085 = vunpack.c.l.b16 %v1399
    %v2086 = vunpack.c.h.b16 %v1399
    %v2087 = vunpack.c.l.b16 %v1400
    %v2088 = vunpack.c.h.b16 %v1400
    %v2089 = vunpack.c.l.b16 %v1401
    %v2090 = vunpack.c.h.b16 %v1401
    %v2091 = vunpack.c.l.b16 %v1402
    %v2092 = vunpack.c.h.b16 %v1402
    %v2093 = vunpack.c.l.b16 %v1403
    %v2094 = vunpack.c.h.b16 %v1403
    %v2095 = vunpack.c.l.b16 %v1404
    %v2096 = vunpack.c.h.b16 %v1404
    %v2097 = vunpack.c.l.b16 %v1405
    %v2098 = vunpack.c.h.b16 %v1405
    %v2099 = vunpack.c.l.b16 %v1406
    %v2100 = vunpack.c.h.b16 %v1406
    %v2101 = vunpack.c.l.b16 %v1407
    %v2102 = vunpack.c.h.b16 %v1407
    %v2103 = vunpack.c.l.b16 %v1408
    %v2104 = vunpack.c.h.b16 %v1408
    %v2105 = vunpack.c.l.b16 %v1409
    %v2106 = vunpack.c.h.b16 %v1409
    %v2107 = vunpack.c.l.b16 %v1410
    %v2108 = vunpack.c.h.b16 %v1410
    %v2109 = vunpack.c.l.b16 %v1411
    %v2110 = vunpack.c.h.b16 %v1411
    %v2111 = vunpack.c.l.b16 %v1412
    %v2112 = vunpack.c.h.b16 %v1412
    %v2113 = vunpack.c.l.b16 %v1413
    %v2114 = vunpack.c.h.b16 %v1413
    %v2115 = vunpack.c.l.b16 %v1414
    %v2116 = vunpack.c.h.b16 %v1414
    %v2117 = vunpack.c.l.b16 %v1415
    %v2118 = vunpack.c.h.b16 %v1415
    %v2119 = vunpack.c.l.b16 %v1416
    %v2120 = vunpack.c.h.b16 %v1416
    %v2121 = vunpack.c.l.b16 %v1417
    %v2122 = vunpack.c.h.b16 %v1417
    %v2123 = vunpack.c.l.b16 %v1418
    %v2124 = vunpack.c.h.b16 %v1418
    %v2125 = vunpack.c.l.b16 %v1419
    %v2126 = vunpack.c.h.b16 %v1419
    %v2127 = vunpack.c.l.b16 %v1420
    %v2128 = vunpack.c.h.b16 %v1420
    %v2129 = vunpack.c.l.b16 %v1421
    %v2130 = vunpack.c.h.b16 %v1421
    %v2131 = vunpack.c.l.b16 %v1422
    %v2132 = vunpack.c.h.b16 %v1422
    %v2133 = vunpack.c.l.b16 %v1423
    %v2134 = vunpack.c.h.b16 %v1423
    %v2135 = vunpack.c.l.b16 %v1424
    %v2136 = vunpack.c.h.b16 %v1424
    %v2137 = vunpack.c.l.b16 %v1425
    %v2138 = vunpack.c.h.b16 %v1425
    %v2139 = vunpack.c.l.b16 %v1426
    %v2140 = vunpack.c.h.b16 %v1426
    %v2141 = vunpack.c.l.b16 %v1427
    %v2142 = vunpack.c.h.b16 %v1427
    %v2143 = vunpack.c.l.b16 %v1428
    %v2144 = vunpack.c.h.b16 %v1428
    %v2145 = vunpack.c.l.b16 %v1429
    %v2146 = vunpack.c.h.b16 %v1429
    %v2147 = vunpack.c.l.b16 %v1430
    %v2148 = vunpack.c.h.b16 %v1430
    %v2149 = vunpack.c.l.b16 %v1431
    %v2150 = vunpack.c.h.b16 %v1431
    %v2151 = vunpack.c.l.b16 %v1432
    %v2152 = vunpack.c.h.b16 %v1432
    %v2153 = vunpack.c.l.b16 %v1433
    %v2154 = vunpack.c.h.b16 %v1433
    %v2155 = vunpack.c.l.b16 %v1434
    %v2156 = vunpack.c.h.b16 %v1434
    %v2157 = vunpack.c.l.b16 %v1435
    %v2158 = vunpack.c.h.b16 %v1435
    %v2159 = vunpack.c.l.b16 %v1436
    %v2160 = vunpack.c.h.b16 %v1436
    %v2161 = vunpack.c.l.b16 %v1437
    %v2162 = vunpack.c.h.b16 %v1437
    %v2163 = vunpack.c.l.b16 %v1438
    %v2164 = vunpack.c.h.b16 %v1438
    %v2165 = vunpack.c.l.b16 %v1439
    %v2166 = vunpack.c.h.b16 %v1439
    %v2167 = vunpack.c.l.b16 %v1440
    %v2168 = vunpack.c.h.b16 %v1440
    %v2169 = vunpack.c.l.b16 %v1441
    %v2170 = vunpack.c.h.b16 %v1441
    %v2171 = vunpack.c.l.b16 %v1442
    %v2172 = vunpack.c.h.b16 %v1442
    %v2173 = vunpack.c.l.b16 %v1443
    %v2174 = vunpack.c.h.b16 %v1443
    %v2175 = vunpack.c.l.b16 %v1444
    %v2176 = vunpack.c.h.b16 %v1444
    %v2177 = vunpack.c.l.b16 %v1445
    %v2178 = vunpack.c.h.b16 %v1445
    %v2179 = vunpack.c.l.b16 %v1446
    %v2180 = vunpack.c.h.b16 %v1446
    %v2181 = vunpack.c.l.b16 %v1447
    %v2182 = vunpack.c.h.b16 %v1447
    %v2183 = vunpack.c.l.b16 %v1448
    %v2184 = vunpack.c.h.b16 %v1448
    %v2185 = vunpack.c.l.b16 %v1449
    %v2186 = vunpack.c.h.b16 %v1449
    %v2187 = vunpack.c.l.b16 %v1450
    %v2188 = vunpack.c.h.b16 %v1450
    %v2189 = vunpack.c.l.b16 %v1451
    %v2190 = vunpack.c.h.b16 %v1451
    %v2191 = vunpack.c.l.b16 %v1452
    %v2192 = vunpack.c.h.b16 %v1452
    %v2193 = vunpack.c.l.b16 %v1453
    %v2194 = vunpack.c.h.b16 %v1453
    %v2195 = vunpack.c.l.b16 %v1454
    %v2196 = vunpack.c.h.b16 %v1454
    %v2197 = vunpack.c.l.b16 %v1455
    %v2198 = vunpack.c.h.b16 %v1455
    %v2199 = vunpack.c.l.b16 %v1456
    %v2200 = vunpack.c.h.b16 %v1456
    %v2201 = vunpack.c.l.b16 %v1457
    %v2202 = vunpack.c.h.b16 %v1457
    %v2203 = vunpack.c.l.b16 %v1458
    %v2204 = vunpack.c.h.b16 %v1458
    %v2205 = vunpack.c.l.b16 %v1459
    %v2206 = vunpack.c.h.b16 %v1459
    %v2207 = vunpack.c.l.b16 %v1460
    %v2208 = vunpack.c.h.b16 %v1460
    %v2209 = vunpack.c.l.b16 %v1461
    %v2210 = vunpack.c.h.b16 %v1461
    %v2211 = vunpack.c.l.b16 %v1462
    %v2212 = vunpack.c.h.b16 %v1462
    %v2213 = vunpack.c.l.b16 %v1463
    %v2214 = vunpack.c.h.b16 %v1463
    %v2215 = vunpack.c.l.b16 %v1464
    %v2216 = vunpack.c.h.b16 %v1464
    %v2217 = vunpack.c.l.b16 %v1465
    %v2218 = vunpack.c.h.b16 %v1465
    %v2219 = vunpack.c.l.b16 %v1466
    %v2220 = vunpack.c.h.b16 %v1466
    %v2221 = vunpack.c.l.b16 %v1467
    %v2222 = vunpack.c.h.b16 %v1467
    %v2223 = vunpack.c.l.b16 %v1468
    %v2224 = vunpack.c.h.b16 %v1468
    %v2225 = vunpack.c.l.b16 %v1469
    %v2226 = vunpack.c.h.b16 %v1469
    %v2227 = vunpack.c.l.b16 %v1470
    %v2228 = vunpack.c.h.b16 %v1470
    %v2229 = vunpack.c.l.b16 %v1471
    %v2230 = vunpack.c.h.b16 %v1471
    %v2231 = vunpack.c.l.b16 %v1472
    %v2232 = vunpack.c.h.b16 %v1472
    %v2233 = vunpack.c.l.b16 %v1473
    %v2234 = vunpack.c.h.b16 %v1473
    %v2235 = vunpack.c.l.b16 %v1474
    %v2236 = vunpack.c.h.b16 %v1474
    %v2237 = vunpack.c.l.b16 %v1475
    %v2238 = vunpack.c.h.b16 %v1475
    %v2239 = vunpack.c.l.b16 %v1476
    %v2240 = vunpack.c.h.b16 %v1476
    %v2241 = vunpack.c.l.b16 %v1477
    %v2242 = vunpack.c.h.b16 %v1477
    %v2243 = vunpack.c.l.b16 %v1478
    %v2244 = vunpack.c.h.b16 %v1478
    %v2245 = vunpack.c.l.b16 %v1479
    %v2246 = vunpack.c.h.b16 %v1479
    %v2247 = vunpack.c.l.b16 %v1480
    %v2248 = vunpack.c.h.b16 %v1480
    %v2249 = vunpack.c.l.b16 %v1481
    %v2250 = vunpack.c.h.b16 %v1481
    %v2251 = vunpack.c.l.b16 %v1482
    %v2252 = vunpack.c.h.b16 %v1482
    %v2253 = vunpack.c.l.b16 %v1483
    %v2254 = vunpack.c.h.b16 %v1483
    %v2255 = vunpack.c.l.b16 %v1484
    %v2256 = vunpack.c.h.b16 %v1484
    %v2257 = vunpack.c.l.b16 %v1485
    %v2258 = vunpack.c.h.b16 %v1485
    %v2259 = vunpack.c.l.b16 %v1486
    %v2260 = vunpack.c.h.b16 %v1486
    %v2261 = vunpack.c.l.b16 %v1487
    %v2262 = vunpack.c.h.b16 %v1487
    %v2263 = vunpack.c.l.b16 %v1488
    %v2264 = vunpack.c.h.b16 %v1488
    %v2265 = vunpack.c.l.b16 %v1489
    %v2266 = vunpack.c.h.b16 %v1489
    %v2267 = vunpack.c.l.b16 %v1490
    %v2268 = vunpack.c.h.b16 %v1490
    %v2269 = vunpack.c.l.b16 %v1491
    %v2270 = vunpack.c.h.b16 %v1491
    %v2271 = vunpack.c.l.b16 %v1492
    %v2272 = vunpack.c.h.b16 %v1492
    %v2273 = vunpack.c.l.b16 %v1493
    %v2274 = vunpack.c.h.b16 %v1493
    %v2275 = vunpack.c.l.b16 %v1494
    %v2276 = vunpack.c.h.b16 %v1494
    %v2277 = vunpack.c.l.b16 %v1495
    %v2278 = vunpack.c.h.b16 %v1495
    %v2279 = vunpack.c.l.b16 %v1496
    %v2280 = vunpack.c.h.b16 %v1496
    %v2281 = vunpack.c.l.b16 %v1497
    %v2282 = vunpack.c.h.b16 %v1497
    %v2283 = vunpack.c.l.b16 %v1498
    %v2284 = vunpack.c.h.b16 %v1498
    %v2285 = vunpack.c.l.b16 %v1499
    %v2286 = vunpack.c.h.b16 %v1499
    %v2287 = vunpack.c.l.b16 %v1500
    %v2288 = vunpack.c.h.b16 %v1500
    %v2289 = vunpack.c.l.b16 %v1501
    %v2290 = vunpack.c.h.b16 %v1501
    %v2291 = vunpack.c.l.b16 %v1502
    %v2292 = vunpack.c.h.b16 %v1502
    %v2293 = vunpack.c.l.b16 %v1503
    %v2294 = vunpack.c.h.b16 %v1503
    %v2295 = vunpack.c.l.b16 %v1504
    %v2296 = vunpack.c.h.b16 %v1504
    %v2297 = vunpack.c.l.b16 %v1505
    %v2298 = vunpack.c.h.b16 %v1505
    %v2299 = vunpack.c.l.b16 %v1506
    %v2300 = vunpack.c.h.b16 %v1506
    %v2301 = vunpack.c.l.b16 %v1507
    %v2302 = vunpack.c.h.b16 %v1507
    %v2303 = vunpack.c.l.b16 %v1508
    %v2304 = vunpack.c.h.b16 %v1508
    %v2305 = vunpack.c.l.b16 %v1509
    %v2306 = vunpack.c.h.b16 %v1509
    %v2307 = vunpack.c.l.b16 %v1510
    %v2308 = vunpack.c.h.b16 %v1510
    %v2309 = vunpack.c.l.b16 %v1511
    %v2310 = vunpack.c.h.b16 %v1511
    %v2311 = vunpack.c.l.b16 %v1512
    %v2312 = vunpack.c.h.b16 %v1512
    %v2313 = vunpack.c.l.b16 %v1513
    %v2314 = vunpack.c.h.b16 %v1513
    %v2315 = vunpack.c.l.b16 %v1514
    %v2316 = vunpack.c.h.b16 %v1514
    %v2317 = vunpack.c.l.b16 %v1515
    %v2318 = vunpack.c.h.b16 %v1515
    %v2319 = vunpack.c.l.b16 %v1516
    %v2320 = vunpack.c.h.b16 %v1516
    %v2321 = vunpack.c.l.b16 %v1517
    %v2322 = vunpack.c.h.b16 %v1517
    %v2323 = vunpack.c.l.b16 %v1518
    %v2324 = vunpack.c.h.b16 %v1518
    %v2325 = vunpack.c.l.b16 %v1519
    %v2326 = vunpack.c.h.b16 %v1519
    %v2327 = vunpack.c.l.b16 %v1520
    %v2328 = vunpack.c.h.b16 %v1520
    %v2329 = vunpack.c.l.b16 %v1521
    %v2330 = vunpack.c.h.b16 %v1521
    %v2331 = vunpack.c.l.b16 %v1522
    %v2332 = vunpack.c.h.b16 %v1522
    %v2333 = vunpack.c.l.b16 %v1523
    %v2334 = vunpack.c.h.b16 %v1523
    %v2335 = vunpack.c.l.b16 %v1524
    %v2336 = vunpack.c.h.b16 %v1524
    %v2337 = vunpack.c.l.b16 %v1525
    %v2338 = vunpack.c.h.b16 %v1525
    %v2339 = vunpack.c.l.b16 %v1526
    %v2340 = vunpack.c.h.b16 %v1526
    %v2341 = vunpack.c.l.b16 %v1527
    %v2342 = vunpack.c.h.b16 %v1527
    %v2343 = vunpack.c.l.b16 %v1528
    %v2344 = vunpack.c.h.b16 %v1528
    %v2345 = vunpack.c.l.b16 %v1529
    %v2346 = vunpack.c.h.b16 %v1529
    %v2347 = vunpack.c.l.b16 %v1530
    %v2348 = vunpack.c.h.b16 %v1530
    %v2349 = vunpack.c.l.b16 %v1531
    %v2350 = vunpack.c.h.b16 %v1531
    %v2351 = vunpack.c.l.b16 %v1532
    %v2352 = vunpack.c.h.b16 %v1532
    %v2353 = vunpack.c.l.b16 %v1533
    %v2354 = vunpack.c.h.b16 %v1533
    %v2355 = vunpack.c.l.b16 %v1534
    %v2356 = vunpack.c.h.b16 %v1534
    %v2357 = vunpack.c.l.b16 %v1535
    %v2358 = vunpack.c.h.b16 %v1535
    %v2359 = vunpack.c.l.b16 %v1536
    %v2360 = vunpack.c.h.b16 %v1536
    %v2361 = vunpack.c.l.b16 %v1537
    %v2362 = vunpack.c.h.b16 %v1537
    %v2363 = vunpack.c.l.b16 %v1538
    %v2364 = vunpack.c.h.b16 %v1538
    %v2365 = vunpack.c.l.b16 %v1539
    %v2366 = vunpack.c.h.b16 %v1539
    %v2367 = vunpack.c.l.b16 %v1540
    %v2368 = vunpack.c.h.b16 %v1540
    %v2369 = vunpack.c.l.b16 %v1541
    %v2370 = vunpack.c.h.b16 %v1541
    %v2371 = vunpack.c.l.b16 %v1542
    %v2372 = vunpack.c.h.b16 %v1542
    %v2373 = vunpack.c.l.b16 %v1543
    %v2374 = vunpack.c.h.b16 %v1543
    %v2375 = vunpack.c.l.b16 %v1544
    %v2376 = vunpack.c.h.b16 %v1544
    %v2377 = vunpack.c.l.b16 %v1545
    %v2378 = vunpack.c.h.b16 %v1545
    %v2379 = vunpack.c.l.b16 %v1546
    %v2380 = vunpack.c.h.b16 %v1546
    %v2381 = vunpack.c.l.b16 %v1547
    %v2382 = vunpack.c.h.b16 %v1547
    %v2383 = vunpack.c.l.b16 %v1548
    %v2384 = vunpack.c.h.b16 %v1548
    %v2385 = vunpack.c.l.b16 %v1549
    %v2386 = vunpack.c.h.b16 %v1549
    %v2387 = vunpack.c.l.b16 %v1550
    %v2388 = vunpack.c.h.b16 %v1550
    %v2389 = vunpack.c.l.b16 %v1551
    %v2390 = vunpack.c.h.b16 %v1551
    %v2391 = vunpack.c.l.b16 %v1552
    %v2392 = vunpack.c.h.b16 %v1552
    %v2393 = vunpack.c.l.b16 %v1553
    %v2394 = vunpack.c.h.b16 %v1553
    %v2395 = vunpack.c.l.b16 %v1554
    %v2396 = vunpack.c.h.b16 %v1554
    %v2397 = vunpack.c.l.b16 %v1555
    %v2398 = vunpack.c.h.b16 %v1555
    %v2399 = vunpack.c.l.b16 %v1556
    %v2400 = vunpack.c.h.b16 %v1556
    %v2401 = vunpack.c.l.b16 %v1557
    %v2402 = vunpack.c.h.b16 %v1557
    %v2403 = vunpack.c.l.b16 %v1558
    %v2404 = vunpack.c.h.b16 %v1558
    %v2405 = vunpack.c.l.b16 %v1559
    %v2406 = vunpack.c.h.b16 %v1559
    %v2407 = vunpack.c.l.b16 %v1560
    %v2408 = vunpack.c.h.b16 %v1560
    %v2409 = vunpack.c.l.b16 %v1561
    %v2410 = vunpack.c.h.b16 %v1561
    %v2411 = vunpack.c.l.b16 %v1562
    %v2412 = vunpack.c.h.b16 %v1562
    %v2413 = vunpack.c.l.b16 %v1563
    %v2414 = vunpack.c.h.b16 %v1563
    %v2415 = vunpack.c.l.b16 %v1564
    %v2416 = vunpack.c.h.b16 %v1564
    %v2417 = vunpack.c.l.b16 %v1565
    %v2418 = vunpack.c.h.b16 %v1565
    %v2419 = vunpack.c.l.b16 %v1566
    %v2420 = vunpack.c.h.b16 %v1566
    %v2421 = vunpack.c.l.b16 %v1567
    %v2422 = vunpack.c.h.b16 %v1567
    %v2423 = vunpack.c.l.b16 %v1568
    %v2424 = vunpack.c.h.b16 %v1568
    %v2425 = vunpack.c.l.b16 %v1569
    %v2426 = vunpack.c.h.b16 %v1569
    %v2427 = vunpack.c.l.b16 %v1570
    %v2428 = vunpack.c.h.b16 %v1570
    %v2429 = vunpack.c.l.b16 %v1571
    %v2430 = vunpack.c.h.b16 %v1571
    %v2431 = vunpack.c.l.b16 %v1572
    %v2432 = vunpack.c.h.b16 %v1572
    %v2433 = vunpack.c.l.b16 %v1573
    %v2434 = vunpack.c.h.b16 %v1573
    %v2435 = vunpack.c.l.b16 %v1574
    %v2436 = vunpack.c.h.b16 %v1574
    %v2437 = vunpack.c.l.b16 %v1575
    %v2438 = vunpack.c.h.b16 %v1575
    %v2439 = vunpack.c.l.b16 %v1576
    %v2440 = vunpack.c.h.b16 %v1576
    %v2441 = vunpack.c.l.b16 %v1577
    %v2442 = vunpack.c.h.b16 %v1577
    %v2443 = vunpack.c.l.b16 %v1578
    %v2444 = vunpack.c.h.b16 %v1578
    %v2445 = vunpack.c.l.b16 %v1579
    %v2446 = vunpack.c.h.b16 %v1579
    %v2447 = vunpack.c.l.b16 %v1580
    %v2448 = vunpack.c.h.b16 %v1580
    %v2449 = vunpack.c.l.b16 %v1581
    %v2450 = vunpack.c.h.b16 %v1581
    %v2451 = vunpack.c.l.b16 %v1582
    %v2452 = vunpack.c.h.b16 %v1582
    %v2453 = vunpack.c.l.b16 %v1583
    %v2454 = vunpack.c.h.b16 %v1583
    %v2455 = vunpack.c.l.b16 %v1584
    %v2456 = vunpack.c.h.b16 %v1584
    %v2457 = vunpack.c.l.b16 %v1585
    %v2458 = vunpack.c.h.b16 %v1585
    %v2459 = vunpack.c.l.b16 %v1586
    %v2460 = vunpack.c.h.b16 %v1586
    %v2461 = vunpack.c.l.b16 %v1587
    %v2462 = vunpack.c.h.b16 %v1587
    %v2463 = vunpack.c.l.b16 %v1588
    %v2464 = vunpack.c.h.b16 %v1588
    %v2465 = vunpack.c.l.b16 %v1589
    %v2466 = vunpack.c.h.b16 %v1589
    %v2467 = vunpack.c.l.b16 %v1590
    %v2468 = vunpack.c.h.b16 %v1590
    %v2469 = vunpack.c.l.b16 %v1591
    %v2470 = vunpack.c.h.b16 %v1591
    %v2471 = vunpack.c.l.b16 %v1592
    %v2472 = vunpack.c.h.b16 %v1592
    %v2473 = vunpack.c.l.b16 %v1593
    %v2474 = vunpack.c.h.b16 %v1593
    %v2475 = vunpack.c.l.b16 %v1594
    %v2476 = vunpack.c.h.b16 %v1594
    %v2477 = vunpack.c.l.b16 %v1595
    %v2478 = vunpack.c.h.b16 %v1595
    %v2479 = vunpack.c.l.b16 %v1596
    %v2480 = vunpack.c.h.b16 %v1596
    %v2481 = vunpack.c.l.b16 %v1597
    %v2482 = vunpack.c.h.b16 %v1597
    %v2483 = vunpack.c.l.b16 %v1598
    %v2484 = vunpack.c.h.b16 %v1598
    %v2485 = vunpack.c.l.b16 %v1599
    %v2486 = vunpack.c.h.b16 %v1599
    %v2487 = vunpack.c.l.b16 %v1600
    %v2488 = vunpack.c.h.b16 %v1600
    %v2489 = vunpack.c.l.b16 %v1601
    %v2490 = vunpack.c.h.b16 %v1601
    %v2491 = vunpack.c.l.b16 %v1602
    %v2492 = vunpack.c.h.b16 %v1602
    %v2493 = vunpack.c.l.b16 %v1603
    %v2494 = vunpack.c.h.b16 %v1603
    %v2495 = vunpack.c.l.b16 %v1604
    %v2496 = vunpack.c.h.b16 %v1604
    %v2497 = vunpack.c.l.b16 %v1605
    %v2498 = vunpack.c.h.b16 %v1605
    %v2499 = vunpack.c.l.b16 %v1606
    %v2500 = vunpack.c.h.b16 %v1606
    %v2501 = vunpack.c.l.b16 %v1607
    %v2502 = vunpack.c.h.b16 %v1607
    %v2503 = vunpack.c.l.b16 %v1608
    %v2504 = vunpack.c.h.b16 %v1608
    %v2505 = vpack.c.b16 %v1935, %v1929
    %v2506 = vpack.c.b16 %v1936, %v1930
    %v2507 = vpack.c.b16 %v1937, %v1931
    %v2508 = vpack.c.b16 %v1938, %v1932
    %v2509 = vpack.c.b16 %v1939, %v1933
    %v2510 = vpack.c.b16 %v1940, %v1934
    %v2511 = vpack.c.b16 %v1947, %v1941
    %v2512 = vpack.c.b16 %v1948, %v1942
    %v2513 = vpack.c.b16 %v1949, %v1943
    %v2514 = vpack.c.b16 %v1950, %v1944
    %v2515 = vpack.c.b16 %v1951, %v1945
    %v2516 = vpack.c.b16 %v1952, %v1946
    %v2517 = vpack.c.b16 %v1959, %v1953
    %v2518 = vpack.c.b16 %v1960, %v1954
    %v2519 = vpack.c.b16 %v1961, %v1955
    %v2520 = vpack.c.b16 %v1962, %v1956
    %v2521 = vpack.c.b16 %v1963, %v1957
    %v2522 = vpack.c.b16 %v1964, %v1958
    %v2523 = vpack.c.b16 %v1971, %v1965
    %v2524 = vpack.c.b16 %v1972, %v1966
    %v2525 = vpack.c.b16 %v1973, %v1967
    %v2526 = vpack.c.b16 %v1974, %v1968
    %v2527 = vpack.c.b16 %v1975, %v1969
    %v2528 = vpack.c.b16 %v1976, %v1970
    %v2529 = vpack.c.b16 %v1983, %v1977
    %v2530 = vpack.c.b16 %v1984, %v1978
    %v2531 = vpack.c.b16 %v1985, %v1979
    %v2532 = vpack.c.b16 %v1986, %v1980
    %v2533 = vpack.c.b16 %v1987, %v1981
    %v2534 = vpack.c.b16 %v1988, %v1982
    %v2535 = vpack.c.b16 %v1995, %v1989
    %v2536 = vpack.c.b16 %v1996, %v1990
    %v2537 = vpack.c.b16 %v1997, %v1991
    %v2538 = vpack.c.b16 %v1998, %v1992
    %v2539 = vpack.c.b16 %v1999, %v1993
    %v2540 = vpack.c.b16 %v2000, %v1994
    %v2541 = vpack.c.b16 %v2007, %v2001
    %v2542 = vpack.c.b16 %v2008, %v2002
    %v2543 = vpack.c.b16 %v2009, %v2003
    %v2544 = vpack.c.b16 %v2010, %v2004
    %v2545 = vpack.c.b16 %v2011, %v2005
    %v2546 = vpack.c.b16 %v2012, %v2006
    %v2547 = vpack.c.b16 %v2019, %v2013
    %v2548 = vpack.c.b16 %v2020, %v2014
    %v2549 = vpack.c.b16 %v2021, %v2015
    %v2550 = vpack.c.b16 %v2022, %v2016
    %v2551 = vpack.c.b16 %v2023, %v2017
    %v2552 = vpack.c.b16 %v2024, %v2018
    %v2553 = vpack.c.b16 %v2031, %v2025
    %v2554 = vpack.c.b16 %v2032, %v2026
    %v2555 = vpack.c.b16 %v2033, %v2027
    %v2556 = vpack.c.b16 %v2034, %v2028
    %v2557 = vpack.c.b16 %v2035, %v2029
    %v2558 = vpack.c.b16 %v2036, %v2030
    %v2559 = vpack.c.b16 %v2043, %v2037
    %v2560 = vpack.c.b16 %v2044, %v2038
    %v2561 = vpack.c.b16 %v2045, %v2039
    %v2562 = vpack.c.b16 %v2046, %v2040
    %v2563 = vpack.c.b16 %v2047, %v2041
    %v2564 = vpack.c.b16 %v2048, %v2042
    %v2565 = vpack.c.b16 %v2055, %v2049
    %v2566 = vpack.c.b16 %v2056, %v2050
    %v2567 = vpack.c.b16 %v2057, %v2051
    %v2568 = vpack.c.b16 %v2058, %v2052
    %v2569 = vpack.c.b16 %v2059, %v2053
    %v2570 = vpack.c.b16 %v2060, %v2054
    %v2571 = vpack.c.b16 %v2067, %v2061
    %v2572 = vpack.c.b16 %v2068, %v2062
    %v2573 = vpack.c.b16 %v2069, %v2063
    %v2574 = vpack.c.b16 %v2070, %v2064
    %v2575 = vpack.c.b16 %v2071, %v2065
    %v2576 = vpack.c.b16 %v2072, %v2066
    %v2577 = vpack.c.b16 %v2079, %v2073
    %v2578 = vpack.c.b16 %v2080, %v2074
    %v2579 = vpack.c.b16 %v2081, %v2075
    %v2580 = vpack.c.b16 %v2082, %v2076
    %v2581 = vpack.c.b16 %v2083, %v2077
    %v2582 = vpack.c.b16 %v2084, %v2078
    %v2583 = vpack.c.b16 %v2091, %v2085
    %v2584 = vpack.c.b16 %v2092, %v2086
    %v2585 = vpack.c.b16 %v2093, %v2087
    %v2586 = vpack.c.b16 %v2094, %v2088
    %v2587 = vpack.c.b16 %v2095, %v2089
    %v2588 = vpack.c.b16 %v2096, %v2090
    %v2589 = vpack.c.b16 %v2103, %v2097
    %v2590 = vpack.c.b16 %v2104, %v2098
    %v2591 = vpack.c.b16 %v2105, %v2099
    %v2592 = vpack.c.b16 %v2106, %v2100
    %v2593 = vpack.c.b16 %v2107, %v2101
    %v2594 = vpack.c.b16 %v2108, %v2102
    %v2595 = vpack.c.b16 %v2115, %v2109
    %v2596 = vpack.c.b16 %v2116, %v2110
    %v2597 = vpack.c.b16 %v2117, %v2111
    %v2598 = vpack.c.b16 %v2118, %v2112
    %v2599 = vpack.c.b16 %v2119, %v2113
    %v2600 = vpack.c.b16 %v2120, %v2114
    %v2601 = vpack.c.b16 %v2127, %v2121
    %v2602 = vpack.c.b16 %v2128, %v2122
    %v2603 = vpack.c.b16 %v2129, %v2123
    %v2604 = vpack.c.b16 %v2130, %v2124
    %v2605 = vpack.c.b16 %v2131, %v2125
    %v2606 = vpack.c.b16 %v2132, %v2126
    %v2607 = vpack.c.b16 %v2139, %v2133
    %v2608 = vpack.c.b16 %v2140, %v2134
    %v2609 = vpack.c.b16 %v2141, %v2135
    %v2610 = vpack.c.b16 %v2142, %v2136
    %v2611 = vpack.c.b16 %v2143, %v2137
    %v2612 = vpack.c.b16 %v2144, %v2138
    %v2613 = vpack.c.b16 %v2151, %v2145
    %v2614 = vpack.c.b16 %v2152, %v2146
    %v2615 = vpack.c.b16 %v2153, %v2147
    %v2616 = vpack.c.b16 %v2154, %v2148
    %v2617 = vpack.c.b16 %v2155, %v2149
    %v2618 = vpack.c.b16 %v2156, %v2150
    %v2619 = vpack.c.b16 %v2163, %v2157
    %v2620 = vpack.c.b16 %v2164, %v2158
    %v2621 = vpack.c.b16 %v2165, %v2159
    %v2622 = vpack.c.b16 %v2166, %v2160
    %v2623 = vpack.c.b16 %v2167, %v2161
    %v2624 = vpack.c.b16 %v2168, %v2162
    %v2625 = vpack.c.b16 %v2175, %v2169
    %v2626 = vpack.c.b16 %v2176, %v2170
    %v2627 = vpack.c.b16 %v2177, %v2171
    %v2628 = vpack.c.b16 %v2178, %v2172
    %v2629 = vpack.c.b16 %v2179, %v2173
    %v2630 = vpack.c.b16 %v2180, %v2174
    %v2631 = vpack.c.b16 %v2187, %v2181
    %v2632 = vpack.c.b16 %v2188, %v2182
    %v2633 = vpack.c.b16 %v2189, %v2183
    %v2634 = vpack.c.b16 %v2190, %v2184
    %v2635 = vpack.c.b16 %v2191, %v2185
    %v2636 = vpack.c.b16 %v2192, %v2186
    %v2637 = vpack.c.b16 %v2199, %v2193
    %v2638 = vpack.c.b16 %v2200, %v2194
    %v2639 = vpack.c.b16 %v2201, %v2195
    %v2640 = vpack.c.b16 %v2202, %v2196
    %v2641 = vpack.c.b16 %v2203, %v2197
    %v2642 = vpack.c.b16 %v2204, %v2198
    %v2643 = vpack.c.b16 %v2211, %v2205
    %v2644 = vpack.c.b16 %v2212, %v2206
    %v2645 = vpack.c.b16 %v2213, %v2207
    %v2646 = vpack.c.b16 %v2214, %v2208
    %v2647 = vpack.c.b16 %v2215, %v2209
    %v2648 = vpack.c.b16 %v2216, %v2210
    %v2649 = vpack.c.b16 %v2223, %v2217
    %v2650 = vpack.c.b16 %v2224, %v2218
    %v2651 = vpack.c.b16 %v2225, %v2219
    %v2652 = vpack.c.b16 %v2226, %v2220
    %v2653 = vpack.c.b16 %v2227, %v2221
    %v2654 = vpack.c.b16 %v2228, %v2222
    %v2655 = vpack.c.b16 %v2235, %v2229
    %v2656 = vpack.c.b16 %v2236, %v2230
    %v2657 = vpack.c.b16 %v2237, %v2231
    %v2658 = vpack.c.b16 %v2238, %v2232
    %v2659 = vpack.c.b16 %v2239, %v2233
    %v2660 = vpack.c.b16 %v2240, %v2234
    %v2661 = vpack.c.b16 %v2247, %v2241
    %v2662 = vpack.c.b16 %v2248, %v2242
    %v2663 = vpack.c.b16 %v2249, %v2243
    %v2664 = vpack.c.b16 %v2250, %v2244
    %v2665 = vpack.c.b16 %v2251, %v2245
    %v2666 = vpack.c.b16 %v2252, %v2246
    %v2667 = vpack.c.b16 %v2259, %v2253
    %v2668 = vpack.c.b16 %v2260, %v2254
    %v2669 = vpack.c.b16 %v2261, %v2255
    %v2670 = vpack.c.b16 %v2262, %v2256
    %v2671 = vpack.c.b16 %v2263, %v2257
    %v2672 = vpack.c.b16 %v2264, %v2258
    %v2673 = vpack.c.b16 %v2271, %v2265
    %v2674 = vpack.c.b16 %v2272, %v2266
    %v2675 = vpack.c.b16 %v2273, %v2267
    %v2676 = vpack.c.b16 %v2274, %v2268
    %v2677 = vpack.c.b16 %v2275, %v2269
    %v2678 = vpack.c.b16 %v2276, %v2270
    %v2679 = vpack.c.b16 %v2283, %v2277
    %v2680 = vpack.c.b16 %v2284, %v2278
    %v2681 = vpack.c.b16 %v2285, %v2279
    %v2682 = vpack.c.b16 %v2286, %v2280
    %v2683 = vpack.c.b16 %v2287, %v2281
    %v2684 = vpack.c.b16 %v2288, %v2282
    %v2685 = vpack.c.b16 %v2295, %v2289
    %v2686 = vpack.c.b16 %v2296, %v2290
    %v2687 = vpack.c.b16 %v2297, %v2291
    %v2688 = vpack.c.b16 %v2298, %v2292
    %v2689 = vpack.c.b16 %v2299, %v2293
    %v2690 = vpack.c.b16 %v2300, %v2294
    %v2691 = vpack.c.b16 %v2307, %v2301
    %v2692 = vpack.c.b16 %v2308, %v2302
    %v2693 = vpack.c.b16 %v2309, %v2303
    %v2694 = vpack.c.b16 %v2310, %v2304
    %v2695 = vpack.c.b16 %v2311, %v2305
    %v2696 = vpack.c.b16 %v2312, %v2306
    %v2697 = vpack.c.b16 %v2319, %v2313
    %v2698 = vpack.c.b16 %v2320, %v2314
    %v2699 = vpack.c.b16 %v2321, %v2315
    %v2700 = vpack.c.b16 %v2322, %v2316
    %v2701 = vpack.c.b16 %v2323, %v2317
    %v2702 = vpack.c.b16 %v2324, %v2318
    %v2703 = vpack.c.b16 %v2331, %v2325
    %v2704 = vpack.c.b16 %v2332, %v2326
    %v2705 = vpack.c.b16 %v2333, %v2327
    %v2706 = vpack.c.b16 %v2334, %v2328
    %v2707 = vpack.c.b16 %v2335, %v2329
    %v2708 = vpack.c.b16 %v2336, %v2330
    %v2709 = vpack.c.b16 %v2343, %v2337
    %v2710 = vpack.c.b16 %v2344, %v2338
    %v2711 = vpack.c.b16 %v2345, %v2339
    %v2712 = vpack.c.b16 %v2346, %v2340
    %v2713 = vpack.c.b16 %v2347, %v2341
    %v2714 = vpack.c.b16 %v2348, %v2342
    %v2715 = vpack.c.b16 %v2355, %v2349
    %v2716 = vpack.c.b16 %v2356, %v2350
    %v2717 = vpack.c.b16 %v2357, %v2351
    %v2718 = vpack.c.b16 %v2358, %v2352
    %v2719 = vpack.c.b16 %v2359, %v2353
    %v2720 = vpack.c.b16 %v2360, %v2354
    %v2721 = vpack.c.b16 %v2367, %v2361
    %v2722 = vpack.c.b16 %v2368, %v2362
    %v2723 = vpack.c.b16 %v2369, %v2363
    %v2724 = vpack.c.b16 %v2370, %v2364
    %v2725 = vpack.c.b16 %v2371, %v2365
    %v2726 = vpack.c.b16 %v2372, %v2366
    %v2727 = vpack.c.b16 %v2379, %v2373
    %v2728 = vpack.c.b16 %v2380, %v2374
    %v2729 = vpack.c.b16 %v2381, %v2375
    %v2730 = vpack.c.b16 %v2382, %v2376
    %v2731 = vpack.c.b16 %v2383, %v2377
    %v2732 = vpack.c.b16 %v2384, %v2378
    %v2733 = vpack.c.b16 %v2391, %v2385
    %v2734 = vpack.c.b16 %v2392, %v2386
    %v2735 = vpack.c.b16 %v2393, %v2387
    %v2736 = vpack.c.b16 %v2394, %v2388
    %v2737 = vpack.c.b16 %v2395, %v2389
    %v2738 = vpack.c.b16 %v2396, %v2390
    %v2739 = vpack.c.b16 %v2403, %v2397
    %v2740 = vpack.c.b16 %v2404, %v2398
    %v2741 = vpack.c.b16 %v2405, %v2399
    %v2742 = vpack.c.b16 %v2406, %v2400
    %v2743 = vpack.c.b16 %v2407, %v2401
    %v2744 = vpack.c.b16 %v2408, %v2402
    %v2745 = vpack.c.b16 %v2415, %v2409
    %v2746 = vpack.c.b16 %v2416, %v2410
    %v2747 = vpack.c.b16 %v2417, %v2411
    %v2748 = vpack.c.b16 %v2418, %v2412
    %v2749 = vpack.c.b16 %v2419, %v2413
    %v2750 = vpack.c.b16 %v2420, %v2414
    %v2751 = vpack.c.b16 %v2427, %v2421
    %v2752 = vpack.c.b16 %v2428, %v2422
    %v2753 = vpack.c.b16 %v2429, %v2423
    %v2754 = vpack.c.b16 %v2430, %v2424
    %v2755 = vpack.c.b16 %v2431, %v2425
    %v2756 = vpack.c.b16 %v2432, %v2426
    %v2757 = vpack.c.b16 %v2439, %v2433
    %v2758 = vpack.c.b16 %v2440, %v2434
    %v2759 = vpack.c.b16 %v2441, %v2435
    %v2760 = vpack.c.b16 %v2442, %v2436
    %v2761 = vpack.c.b16 %v2443, %v2437
    %v2762 = vpack.c.b16 %v2444, %v2438
    %v2763 = vpack.c.b16 %v2451, %v2445
    %v2764 = vpack.c.b16 %v2452, %v2446
    %v2765 = vpack.c.b16 %v2453, %v2447
    %v2766 = vpack.c.b16 %v2454, %v2448
    %v2767 = vpack.c.b16 %v2455, %v2449
    %v2768 = vpack.c.b16 %v2456, %v2450
    %v2769 = vpack.c.b16 %v2463, %v2457
    %v2770 = vpack.c.b16 %v2464, %v2458
    %v2771 = vpack.c.b16 %v2465, %v2459
    %v2772 = vpack.c.b16 %v2466, %v2460
    %v2773 = vpack.c.b16 %v2467, %v2461
    %v2774 = vpack.c.b16 %v2468, %v2462
    %v2775 = vpack.c.b16 %v2475, %v2469
    %v2776 = vpack.c.b16 %v2476, %v2470
    %v2777 = vpack.c.b16 %v2477, %v2471
    %v2778 = vpack.c.b16 %v2478, %v2472
    %v2779 = vpack.c.b16 %v2479, %v2473
    %v2780 = vpack.c.b16 %v2480, %v2474
    %v2781 = vpack.c.b16 %v2487, %v2481
    %v2782 = vpack.c.b16 %v2488, %v2482
    %v2783 = vpack.c.b16 %v2489, %v2483
    %v2784 = vpack.c.b16 %v2490, %v2484
    %v2785 = vpack.c.b16 %v2491, %v2485
    %v2786 = vpack.c.b16 %v2492, %v2486
    %v2787 = vpack.c.b16 %v2499, %v2493
    %v2788 = vpack.c.b16 %v2500, %v2494
    %v2789 = vpack.c.b16 %v2501, %v2495
    %v2790 = vpack.c.b16 %v2502, %v2496
    %v2791 = vpack.c.b16 %v2503, %v2497
    %v2792 = vpack.c.b16 %v2504, %v2498
    %3081 = vmatprep.subr.bf16.mxu0 %v2506
    %3082 = vmatpush1.bf16.msra.mxu0 %v2505
    %3083 = vmatprep.subr.bf16.mxu0 %v2512
    %3084 = vmatpush1.bf16.msra.mxu0 %v2511
    %3085 = vmatprep.subr.bf16.mxu0 %v2518
    %3086 = vmatpush1.bf16.msra.mxu0 %v2517
    %3087 = vmatprep.subr.bf16.mxu0 %v2524
    %3088 = vmatpush1.bf16.msra.mxu0 %v2523
    %3089 = vmatprep.subr.bf16.mxu0 %v2530
    %3090 = vmatpush1.bf16.msra.mxu0 %v2529
    %3091 = vmatprep.subr.bf16.mxu0 %v2536
    %3092 = vmatpush1.bf16.msra.mxu0 %v2535
    %3093 = vmatprep.subr.bf16.mxu0 %v2542
    %3094 = vmatpush1.bf16.msra.mxu0 %v2541
    %3095 = vmatprep.subr.bf16.mxu0 %v2548
    %3096 = vmatpush1.bf16.msra.mxu0 %v2547
    %3097 = vmatprep.subr.bf16.mxu0 %v2554
    %3098 = vmatpush1.bf16.msra.mxu0 %v2553
    %3099 = vmatprep.subr.bf16.mxu0 %v2560
    %3100 = vmatpush1.bf16.msra.mxu0 %v2559
    %3101 = vmatprep.subr.bf16.mxu0 %v2566
    %3102 = vmatpush1.bf16.msra.mxu0 %v2565
    %3103 = vmatprep.subr.bf16.mxu0 %v2572
    %3104 = vmatpush1.bf16.msra.mxu0 %v2571
    %3105 = vmatprep.subr.bf16.mxu0 %v2578
    %3106 = vmatpush1.bf16.msra.mxu0 %v2577
    %3107 = vmatprep.subr.bf16.mxu0 %v2584
    %3108 = vmatpush1.bf16.msra.mxu0 %v2583
    %3109 = vmatprep.subr.bf16.mxu0 %v2590
    %3110 = vmatpush1.bf16.msra.mxu0 %v2589
    %3111 = vmatprep.subr.bf16.mxu0 %v2596
    %3112 = vmatpush1.bf16.msra.mxu0 %v2595
    %3113 = vmatprep.mubr.bf16.mxu0 %v1310
    %3114 = vmatmul.mubr.bf16.gmra.mrb[0].mxu0 %v1309
    %v3115 = vpop.f32.mrb[0].mxu0
    %v3116 = vadd.f32 %v1614, %v3115
    %v3117 = vpop.f32.mrb[0].mxu0
    %v3118 = vadd.f32 %v1618, %v3117
    %v3119 = vpop.f32.mrb[0].mxu0
    %v3120 = vadd.f32 %v1614, %v3119
    %v3121 = vpop.f32.mrb[0].mxu0
    %v3122 = vadd.f32 %v1618, %v3121
    %3123 = vmatprep.mubr.bf16.mxu0 %v1316
    %3124 = vmatmul.mubr.bf16.gmra.mrb[0].mxu0 %v1315
    %v3125 = vpop.f32.mrb[0].mxu0
    %v3126 = vadd.f32 %v1614, %v3125
    %v3127 = vpop.f32.mrb[0].mxu0
    %v3128 = vadd.f32 %v1618, %v3127
    %v3129 = vpop.f32.mrb[0].mxu0
    %v3130 = vadd.f32 %v1614, %v3129
    %v3131 = vpop.f32.mrb[0].mxu0
    %v3132 = vadd.f32 %v1618, %v3131
    %3133 = vdwg.mxu0
    %3134 = vmatprep.subr.bf16.mxu0 %v2602
    %3135 = vmatpush1.bf16.msra.mxu0 %v2601
    %3136 = vmatprep.subr.bf16.mxu0 %v2608
    %3137 = vmatpush1.bf16.msra.mxu0 %v2607
    %3138 = vmatprep.subr.bf16.mxu0 %v2614
    %3139 = vmatpush1.bf16.msra.mxu0 %v2613
    %3140 = vmatprep.subr.bf16.mxu0 %v2620
    %3141 = vmatpush1.bf16.msra.mxu0 %v2619
    %3142 = vmatprep.subr.bf16.mxu0 %v2626
    %3143 = vmatpush1.bf16.msra.mxu0 %v2625
    %3144 = vmatprep.subr.bf16.mxu0 %v2632
    %3145 = vmatpush1.bf16.msra.mxu0 %v2631
    %3146 = vmatprep.subr.bf16.mxu0 %v2638
    %3147 = vmatpush1.bf16.msra.mxu0 %v2637
    %3148 = vmatprep.subr.bf16.mxu0 %v2644
    %3149 = vmatpush1.bf16.msra.mxu0 %v2643
    %3150 = vmatprep.subr.bf16.mxu0 %v2650
    %3151 = vmatpush1.bf16.msra.mxu0 %v2649
    %3152 = vmatprep.subr.bf16.mxu0 %v2656
    %3153 = vmatpush1.bf16.msra.mxu0 %v2655
    %3154 = vmatprep.subr.bf16.mxu0 %v2662
    %3155 = vmatpush1.bf16.msra.mxu0 %v2661
    %3156 = vmatprep.subr.bf16.mxu0 %v2668
    %3157 = vmatpush1.bf16.msra.mxu0 %v2667
    %3158 = vmatprep.subr.bf16.mxu0 %v2674
    %3159 = vmatpush1.bf16.msra.mxu0 %v2673
    %3160 = vmatprep.subr.bf16.mxu0 %v2680
    %3161 = vmatpush1.bf16.msra.mxu0 %v2679
    %3162 = vmatprep.subr.bf16.mxu0 %v2686
    %3163 = vmatpush1.bf16.msra.mxu0 %v2685
    %3164 = vmatprep.subr.bf16.mxu0 %v2692
    %3165 = vmatpush1.bf16.msra.mxu0 %v2691
    %3166 = vmatprep.mubr.bf16.mxu0 %v1312
    %3167 = vmatmul.mubr.bf16.gmra.mrb[0].mxu0 %v1311
    %v3168 = vpop.f32.mrb[0].mxu0
    %v3169 = vadd.f32 %v3116, %v3168
    %v3170 = vpop.f32.mrb[0].mxu0
    %v3171 = vadd.f32 %v3118, %v3170
    %v3172 = vpop.f32.mrb[0].mxu0
    %v3173 = vadd.f32 %v3120, %v3172
    %v3174 = vpop.f32.mrb[0].mxu0
    %v3175 = vadd.f32 %v3122, %v3174
    %3176 = vmatprep.mubr.bf16.mxu0 %v1318
    %3177 = vmatmul.mubr.bf16.gmra.mrb[0].mxu0 %v1317
    %v3178 = vpop.f32.mrb[0].mxu0
    %v3179 = vadd.f32 %v3126, %v3178
    %v3180 = vpop.f32.mrb[0].mxu0
    %v3181 = vadd.f32 %v3128, %v3180
    %v3182 = vpop.f32.mrb[0].mxu0
    %v3183 = vadd.f32 %v3130, %v3182
    %v3184 = vpop.f32.mrb[0].mxu0
    %v3185 = vadd.f32 %v3132, %v3184
    %3186 = vdwg.mxu0
    %3187 = vmatprep.subr.bf16.mxu0 %v2698
    %3188 = vmatpush1.bf16.msra.mxu0 %v2697
    %3189 = vmatprep.subr.bf16.mxu0 %v2704
    %3190 = vmatpush1.bf16.msra.mxu0 %v2703
    %3191 = vmatprep.subr.bf16.mxu0 %v2710
    %3192 = vmatpush1.bf16.msra.mxu0 %v2709
    %3193 = vmatprep.subr.bf16.mxu0 %v2716
    %3194 = vmatpush1.bf16.msra.mxu0 %v2715
    %3195 = vmatprep.subr.bf16.mxu0 %v2722
    %3196 = vmatpush1.bf16.msra.mxu0 %v2721
    %3197 = vmatprep.subr.bf16.mxu0 %v2728
    %3198 = vmatpush1.bf16.msra.mxu0 %v2727
    %3199 = vmatprep.subr.bf16.mxu0 %v2734
    %3200 = vmatpush1.bf16.msra.mxu0 %v2733
    %3201 = vmatprep.subr.bf16.mxu0 %v2740
    %3202 = vmatpush1.bf16.msra.mxu0 %v2739
    %3203 = vmatprep.subr.bf16.mxu0 %v2746
    %3204 = vmatpush1.bf16.msra.mxu0 %v2745
    %3205 = vmatprep.subr.bf16.mxu0 %v2752
    %3206 = vmatpush1.bf16.msra.mxu0 %v2751
    %3207 = vmatprep.subr.bf16.mxu0 %v2758
    %3208 = vmatpush1.bf16.msra.mxu0 %v2757
    %3209 = vmatprep.subr.bf16.mxu0 %v2764
    %3210 = vmatpush1.bf16.msra.mxu0 %v2763
    %3211 = vmatprep.subr.bf16.mxu0 %v2770
    %3212 = vmatpush1.bf16.msra.mxu0 %v2769
    %3213 = vmatprep.subr.bf16.mxu0 %v2776
    %3214 = vmatpush1.bf16.msra.mxu0 %v2775
    %3215 = vmatprep.subr.bf16.mxu0 %v2782
    %3216 = vmatpush1.bf16.msra.mxu0 %v2781
    %3217 = vmatprep.subr.bf16.mxu0 %v2788
    %3218 = vmatpush1.bf16.msra.mxu0 %v2787
    %3219 = vmatprep.mubr.bf16.mxu0 %v1314
    %3220 = vmatmul.mubr.bf16.gmra.mrb[0].mxu0 %v1313
    %v3221 = vpop.f32.mrb[0].mxu0
    %v3222 = vadd.f32 %v3169, %v3221
    %v3223 = vpop.f32.mrb[0].mxu0
    %v3224 = vadd.f32 %v3171, %v3223
    %v3225 = vpop.f32.mrb[0].mxu0
    %v3226 = vadd.f32 %v3173, %v3225
    %v3227 = vpop.f32.mrb[0].mxu0
    %v3228 = vadd.f32 %v3175, %v3227
    %3229 = vmatprep.mubr.bf16.mxu0 %v1320
    %3230 = vmatmul.mubr.bf16.gmra.mrb[0].mxu0 %v1319
    %v3231 = vpop.f32.mrb[0].mxu0
    %v3232 = vadd.f32 %v3179, %v3231
    %v3233 = vpop.f32.mrb[0].mxu0
    %v3234 = vadd.f32 %v3181, %v3233
    %v3235 = vpop.f32.mrb[0].mxu0
    %v3236 = vadd.f32 %v3183, %v3235
    %v3237 = vpop.f32.mrb[0].mxu0
    %v3238 = vadd.f32 %v3185, %v3237
    %3239 = vdwg.mxu0
    %3240 = vmatprep.subr.bf16.mxu0 %v2508
    %3241 = vmatpush1.bf16.msra.mxu0 %v2507
    %3242 = vmatprep.subr.bf16.mxu0 %v2514
    %3243 = vmatpush1.bf16.msra.mxu0 %v2513
    %3244 = vmatprep.subr.bf16.mxu0 %v2520
    %3245 = vmatpush1.bf16.msra.mxu0 %v2519
    %3246 = vmatprep.subr.bf16.mxu0 %v2526
    %3247 = vmatpush1.bf16.msra.mxu0 %v2525
    %3248 = vmatprep.subr.bf16.mxu0 %v2532
    %3249 = vmatpush1.bf16.msra.mxu0 %v2531
    %3250 = vmatprep.subr.bf16.mxu0 %v2538
    %3251 = vmatpush1.bf16.msra.mxu0 %v2537
    %3252 = vmatprep.subr.bf16.mxu0 %v2544
    %3253 = vmatpush1.bf16.msra.mxu0 %v2543
    %3254 = vmatprep.subr.bf16.mxu0 %v2550
    %3255 = vmatpush1.bf16.msra.mxu0 %v2549
    %3256 = vmatprep.subr.bf16.mxu0 %v2556
    %3257 = vmatpush1.bf16.msra.mxu0 %v2555
    %3258 = vmatprep.subr.bf16.mxu0 %v2562
    %3259 = vmatpush1.bf16.msra.mxu0 %v2561
    %3260 = vmatprep.subr.bf16.mxu0 %v2568
    %3261 = vmatpush1.bf16.msra.mxu0 %v2567
    %3262 = vmatprep.subr.bf16.mxu0 %v2574
    %3263 = vmatpush1.bf16.msra.mxu0 %v2573
    %3264 = vmatprep.subr.bf16.mxu0 %v2580
    %3265 = vmatpush1.bf16.msra.mxu0 %v2579
    %3266 = vmatprep.subr.bf16.mxu0 %v2586
    %3267 = vmatpush1.bf16.msra.mxu0 %v2585
    %3268 = vmatprep.subr.bf16.mxu0 %v2592
    %3269 = vmatpush1.bf16.msra.mxu0 %v2591
    %3270 = vmatprep.subr.bf16.mxu0 %v2598
    %3271 = vmatpush1.bf16.msra.mxu0 %v2597
    %3272 = vmatprep.mubr.bf16.mxu0 %v1310
    %3273 = vmatmul.mubr.bf16.gmra.mrb[0].mxu0 %v1309
    %v3274 = vpop.f32.mrb[0].mxu0
    %v3275 = vadd.f32 %v1622, %v3274
    %v3276 = vpop.f32.mrb[0].mxu0
    %v3277 = vadd.f32 %v1626, %v3276
    %v3278 = vpop.f32.mrb[0].mxu0
    %v3279 = vadd.f32 %v1622, %v3278
    %v3280 = vpop.f32.mrb[0].mxu0
    %v3281 = vadd.f32 %v1626, %v3280
    %3282 = vmatprep.mubr.bf16.mxu0 %v1316
    %3283 = vmatmul.mubr.bf16.gmra.mrb[0].mxu0 %v1315
    %v3284 = vpop.f32.mrb[0].mxu0
    %v3285 = vadd.f32 %v1622, %v3284
    %v3286 = vpop.f32.mrb[0].mxu0
    %v3287 = vadd.f32 %v1626, %v3286
    %v3288 = vpop.f32.mrb[0].mxu0
    %v3289 = vadd.f32 %v1622, %v3288
    %v3290 = vpop.f32.mrb[0].mxu0
    %v3291 = vadd.f32 %v1626, %v3290
    %3292 = vdwg.mxu0
    %3293 = vmatprep.subr.bf16.mxu0 %v2604
    %3294 = vmatpush1.bf16.msra.mxu0 %v2603
    %3295 = vmatprep.subr.bf16.mxu0 %v2610
    %3296 = vmatpush1.bf16.msra.mxu0 %v2609
    %3297 = vmatprep.subr.bf16.mxu0 %v2616
    %3298 = vmatpush1.bf16.msra.mxu0 %v2615
    %3299 = vmatprep.subr.bf16.mxu0 %v2622
    %3300 = vmatpush1.bf16.msra.mxu0 %v2621
    %3301 = vmatprep.subr.bf16.mxu0 %v2628
    %3302 = vmatpush1.bf16.msra.mxu0 %v2627
    %3303 = vmatprep.subr.bf16.mxu0 %v2634
    %3304 = vmatpush1.bf16.msra.mxu0 %v2633
    %3305 = vmatprep.subr.bf16.mxu0 %v2640
    %3306 = vmatpush1.bf16.msra.mxu0 %v2639
    %3307 = vmatprep.subr.bf16.mxu0 %v2646
    %3308 = vmatpush1.bf16.msra.mxu0 %v2645
    %3309 = vmatprep.subr.bf16.mxu0 %v2652
    %3310 = vmatpush1.bf16.msra.mxu0 %v2651
    %3311 = vmatprep.subr.bf16.mxu0 %v2658
    %3312 = vmatpush1.bf16.msra.mxu0 %v2657
    %3313 = vmatprep.subr.bf16.mxu0 %v2664
    %3314 = vmatpush1.bf16.msra.mxu0 %v2663
    %3315 = vmatprep.subr.bf16.mxu0 %v2670
    %3316 = vmatpush1.bf16.msra.mxu0 %v2669
    %3317 = vmatprep.subr.bf16.mxu0 %v2676
    %3318 = vmatpush1.bf16.msra.mxu0 %v2675
    %3319 = vmatprep.subr.bf16.mxu0 %v2682
    %3320 = vmatpush1.bf16.msra.mxu0 %v2681
    %3321 = vmatprep.subr.bf16.mxu0 %v2688
    %3322 = vmatpush1.bf16.msra.mxu0 %v2687
    %3323 = vmatprep.subr.bf16.mxu0 %v2694
    %3324 = vmatpush1.bf16.msra.mxu0 %v2693
    %3325 = vmatprep.mubr.bf16.mxu0 %v1312
    %3326 = vmatmul.mubr.bf16.gmra.mrb[0].mxu0 %v1311
    %v3327 = vpop.f32.mrb[0].mxu0
    %v3328 = vadd.f32 %v3275, %v3327
    %v3329 = vpop.f32.mrb[0].mxu0
    %v3330 = vadd.f32 %v3277, %v3329
    %v3331 = vpop.f32.mrb[0].mxu0
    %v3332 = vadd.f32 %v3279, %v3331
    %v3333 = vpop.f32.mrb[0].mxu0
    %v3334 = vadd.f32 %v3281, %v3333
    %3335 = vmatprep.mubr.bf16.mxu0 %v1318
    %3336 = vmatmul.mubr.bf16.gmra.mrb[0].mxu0 %v1317
    %v3337 = vpop.f32.mrb[0].mxu0
    %v3338 = vadd.f32 %v3285, %v3337
    %v3339 = vpop.f32.mrb[0].mxu0
    %v3340 = vadd.f32 %v3287, %v3339
    %v3341 = vpop.f32.mrb[0].mxu0
    %v3342 = vadd.f32 %v3289, %v3341
    %v3343 = vpop.f32.mrb[0].mxu0
    %v3344 = vadd.f32 %v3291, %v3343
    %3345 = vdwg.mxu0
    %3346 = vmatprep.subr.bf16.mxu0 %v2700
    %3347 = vmatpush1.bf16.msra.mxu0 %v2699
    %3348 = vmatprep.subr.bf16.mxu0 %v2706
    %3349 = vmatpush1.bf16.msra.mxu0 %v2705
    %3350 = vmatprep.subr.bf16.mxu0 %v2712
    %3351 = vmatpush1.bf16.msra.mxu0 %v2711
    %3352 = vmatprep.subr.bf16.mxu0 %v2718
    %3353 = vmatpush1.bf16.msra.mxu0 %v2717
    %3354 = vmatprep.subr.bf16.mxu0 %v2724
    %3355 = vmatpush1.bf16.msra.mxu0 %v2723
    %3356 = vmatprep.subr.bf16.mxu0 %v2730
    %3357 = vmatpush1.bf16.msra.mxu0 %v2729
    %3358 = vmatprep.subr.bf16.mxu0 %v2736
    %3359 = vmatpush1.bf16.msra.mxu0 %v2735
    %3360 = vmatprep.subr.bf16.mxu0 %v2742
    %3361 = vmatpush1.bf16.msra.mxu0 %v2741
    %3362 = vmatprep.subr.bf16.mxu0 %v2748
    %3363 = vmatpush1.bf16.msra.mxu0 %v2747
    %3364 = vmatprep.subr.bf16.mxu0 %v2754
    %3365 = vmatpush1.bf16.msra.mxu0 %v2753
    %3366 = vmatprep.subr.bf16.mxu0 %v2760
    %3367 = vmatpush1.bf16.msra.mxu0 %v2759
    %3368 = vmatprep.subr.bf16.mxu0 %v2766
    %3369 = vmatpush1.bf16.msra.mxu0 %v2765
    %3370 = vmatprep.subr.bf16.mxu0 %v2772
    %3371 = vmatpush1.bf16.msra.mxu0 %v2771
    %3372 = vmatprep.subr.bf16.mxu0 %v2778
    %3373 = vmatpush1.bf16.msra.mxu0 %v2777
    %3374 = vmatprep.subr.bf16.mxu0 %v2784
    %3375 = vmatpush1.bf16.msra.mxu0 %v2783
    %3376 = vmatprep.subr.bf16.mxu0 %v2790
    %3377 = vmatpush1.bf16.msra.mxu0 %v2789
    %3378 = vmatprep.mubr.bf16.mxu0 %v1314
    %3379 = vmatmul.mubr.bf16.gmra.mrb[0].mxu0 %v1313
    %v3380 = vpop.f32.mrb[0].mxu0
    %v3381 = vadd.f32 %v3328, %v3380
    %v3382 = vpop.f32.mrb[0].mxu0
    %v3383 = vadd.f32 %v3330, %v3382
    %v3384 = vpop.f32.mrb[0].mxu0
    %v3385 = vadd.f32 %v3332, %v3384
    %v3386 = vpop.f32.mrb[0].mxu0
    %v3387 = vadd.f32 %v3334, %v3386
    %3388 = vmatprep.mubr.bf16.mxu0 %v1320
    %3389 = vmatmul.mubr.bf16.gmra.mrb[0].mxu0 %v1319
    %v3390 = vpop.f32.mrb[0].mxu0
    %v3391 = vadd.f32 %v3338, %v3390
    %v3392 = vpop.f32.mrb[0].mxu0
    %v3393 = vadd.f32 %v3340, %v3392
    %v3394 = vpop.f32.mrb[0].mxu0
    %v3395 = vadd.f32 %v3342, %v3394
    %v3396 = vpop.f32.mrb[0].mxu0
    %v3397 = vadd.f32 %v3344, %v3396
    %3398 = vdwg.mxu0
    %3399 = vmatprep.subr.bf16.mxu0 %v2510
    %3400 = vmatpush1.bf16.msra.mxu0 %v2509
    %3401 = vmatprep.subr.bf16.mxu0 %v2516
    %3402 = vmatpush1.bf16.msra.mxu0 %v2515
    %3403 = vmatprep.subr.bf16.mxu0 %v2522
    %3404 = vmatpush1.bf16.msra.mxu0 %v2521
    %3405 = vmatprep.subr.bf16.mxu0 %v2528
    %3406 = vmatpush1.bf16.msra.mxu0 %v2527
    %3407 = vmatprep.subr.bf16.mxu0 %v2534
    %3408 = vmatpush1.bf16.msra.mxu0 %v2533
    %3409 = vmatprep.subr.bf16.mxu0 %v2540
    %3410 = vmatpush1.bf16.msra.mxu0 %v2539
    %3411 = vmatprep.subr.bf16.mxu0 %v2546
    %3412 = vmatpush1.bf16.msra.mxu0 %v2545
    %3413 = vmatprep.subr.bf16.mxu0 %v2552
    %3414 = vmatpush1.bf16.msra.mxu0 %v2551
    %3415 = vmatprep.subr.bf16.mxu0 %v2558
    %3416 = vmatpush1.bf16.msra.mxu0 %v2557
    %3417 = vmatprep.subr.bf16.mxu0 %v2564
    %3418 = vmatpush1.bf16.msra.mxu0 %v2563
    %3419 = vmatprep.subr.bf16.mxu0 %v2570
    %3420 = vmatpush1.bf16.msra.mxu0 %v2569
    %3421 = vmatprep.subr.bf16.mxu0 %v2576
    %3422 = vmatpush1.bf16.msra.mxu0 %v2575
    %3423 = vmatprep.subr.bf16.mxu0 %v2582
    %3424 = vmatpush1.bf16.msra.mxu0 %v2581
    %3425 = vmatprep.subr.bf16.mxu0 %v2588
    %3426 = vmatpush1.bf16.msra.mxu0 %v2587
    %3427 = vmatprep.subr.bf16.mxu0 %v2594
    %3428 = vmatpush1.bf16.msra.mxu0 %v2593
    %3429 = vmatprep.subr.bf16.mxu0 %v2600
    %3430 = vmatpush1.bf16.msra.mxu0 %v2599
    %3431 = vmatprep.mubr.bf16.mxu0 %v1310
    %3432 = vmatmul.mubr.bf16.gmra.mrb[0].mxu0 %v1309
    %v3433 = vpop.f32.mrb[0].mxu0
    %v3434 = vadd.f32 %v1630, %v3433
    %v3435 = vpop.f32.mrb[0].mxu0
    %v3436 = vadd.f32 %v1634, %v3435
    %v3437 = vpop.f32.mrb[0].mxu0
    %v3438 = vadd.f32 %v1630, %v3437
    %v3439 = vpop.f32.mrb[0].mxu0
    %v3440 = vadd.f32 %v1634, %v3439
    %3441 = vmatprep.mubr.bf16.mxu0 %v1316
    %3442 = vmatmul.mubr.bf16.gmra.mrb[0].mxu0 %v1315
    %v3443 = vpop.f32.mrb[0].mxu0
    %v3444 = vadd.f32 %v1630, %v3443
    %v3445 = vpop.f32.mrb[0].mxu0
    %v3446 = vadd.f32 %v1634, %v3445
    %v3447 = vpop.f32.mrb[0].mxu0
    %v3448 = vadd.f32 %v1630, %v3447
    %v3449 = vpop.f32.mrb[0].mxu0
    %v3450 = vadd.f32 %v1634, %v3449
    %3451 = vdwg.mxu0
    %3452 = vmatprep.subr.bf16.mxu0 %v2606
    %3453 = vmatpush1.bf16.msra.mxu0 %v2605
    %3454 = vmatprep.subr.bf16.mxu0 %v2612
    %3455 = vmatpush1.bf16.msra.mxu0 %v2611
    %3456 = vmatprep.subr.bf16.mxu0 %v2618
    %3457 = vmatpush1.bf16.msra.mxu0 %v2617
    %3458 = vmatprep.subr.bf16.mxu0 %v2624
    %3459 = vmatpush1.bf16.msra.mxu0 %v2623
    %3460 = vmatprep.subr.bf16.mxu0 %v2630
    %3461 = vmatpush1.bf16.msra.mxu0 %v2629
    %3462 = vmatprep.subr.bf16.mxu0 %v2636
    %3463 = vmatpush1.bf16.msra.mxu0 %v2635
    %3464 = vmatprep.subr.bf16.mxu0 %v2642
    %3465 = vmatpush1.bf16.msra.mxu0 %v2641
    %3466 = vmatprep.subr.bf16.mxu0 %v2648
    %3467 = vmatpush1.bf16.msra.mxu0 %v2647
    %3468 = vmatprep.subr.bf16.mxu0 %v2654
    %3469 = vmatpush1.bf16.msra.mxu0 %v2653
    %3470 = vmatprep.subr.bf16.mxu0 %v2660
    %3471 = vmatpush1.bf16.msra.mxu0 %v2659
    %3472 = vmatprep.subr.bf16.mxu0 %v2666
    %3473 = vmatpush1.bf16.msra.mxu0 %v2665
    %3474 = vmatprep.subr.bf16.mxu0 %v2672
    %3475 = vmatpush1.bf16.msra.mxu0 %v2671
    %3476 = vmatprep.subr.bf16.mxu0 %v2678
    %3477 = vmatpush1.bf16.msra.mxu0 %v2677
    %3478 = vmatprep.subr.bf16.mxu0 %v2684
    %3479 = vmatpush1.bf16.msra.mxu0 %v2683
    %3480 = vmatprep.subr.bf16.mxu0 %v2690
    %3481 = vmatpush1.bf16.msra.mxu0 %v2689
    %3482 = vmatprep.subr.bf16.mxu0 %v2696
    %3483 = vmatpush1.bf16.msra.mxu0 %v2695
    %3484 = vmatprep.mubr.bf16.mxu0 %v1312
    %3485 = vmatmul.mubr.bf16.gmra.mrb[0].mxu0 %v1311
    %v3486 = vpop.f32.mrb[0].mxu0
    %v3487 = vadd.f32 %v3434, %v3486
    %v3488 = vpop.f32.mrb[0].mxu0
    %v3489 = vadd.f32 %v3436, %v3488
    %v3490 = vpop.f32.mrb[0].mxu0
    %v3491 = vadd.f32 %v3438, %v3490
    %v3492 = vpop.f32.mrb[0].mxu0
    %v3493 = vadd.f32 %v3440, %v3492
    %3494 = vmatprep.mubr.bf16.mxu0 %v1318
    %3495 = vmatmul.mubr.bf16.gmra.mrb[0].mxu0 %v1317
    %v3496 = vpop.f32.mrb[0].mxu0
    %v3497 = vadd.f32 %v3444, %v3496
    %v3498 = vpop.f32.mrb[0].mxu0
    %v3499 = vadd.f32 %v3446, %v3498
    %v3500 = vpop.f32.mrb[0].mxu0
    %v3501 = vadd.f32 %v3448, %v3500
    %v3502 = vpop.f32.mrb[0].mxu0
    %v3503 = vadd.f32 %v3450, %v3502
    %3504 = vdwg.mxu0
    %3505 = vmatprep.subr.bf16.mxu0 %v2702
    %3506 = vmatpush1.bf16.msra.mxu0 %v2701
    %3507 = vmatprep.subr.bf16.mxu0 %v2708
    %3508 = vmatpush1.bf16.msra.mxu0 %v2707
    %3509 = vmatprep.subr.bf16.mxu0 %v2714
    %3510 = vmatpush1.bf16.msra.mxu0 %v2713
    %3511 = vmatprep.subr.bf16.mxu0 %v2720
    %3512 = vmatpush1.bf16.msra.mxu0 %v2719
    %3513 = vmatprep.subr.bf16.mxu0 %v2726
    %3514 = vmatpush1.bf16.msra.mxu0 %v2725
    %3515 = vmatprep.subr.bf16.mxu0 %v2732
    %3516 = vmatpush1.bf16.msra.mxu0 %v2731
    %3517 = vmatprep.subr.bf16.mxu0 %v2738
    %3518 = vmatpush1.bf16.msra.mxu0 %v2737
    %3519 = vmatprep.subr.bf16.mxu0 %v2744
    %3520 = vmatpush1.bf16.msra.mxu0 %v2743
    %3521 = vmatprep.subr.bf16.mxu0 %v2750
    %3522 = vmatpush1.bf16.msra.mxu0 %v2749
    %3523 = vmatprep.subr.bf16.mxu0 %v2756
    %3524 = vmatpush1.bf16.msra.mxu0 %v2755
    %3525 = vmatprep.subr.bf16.mxu0 %v2762
    %3526 = vmatpush1.bf16.msra.mxu0 %v2761
    %3527 = vmatprep.subr.bf16.mxu0 %v2768
    %3528 = vmatpush1.bf16.msra.mxu0 %v2767
    %3529 = vmatprep.subr.bf16.mxu0 %v2774
    %3530 = vmatpush1.bf16.msra.mxu0 %v2773
    %3531 = vmatprep.subr.bf16.mxu0 %v2780
    %3532 = vmatpush1.bf16.msra.mxu0 %v2779
    %3533 = vmatprep.subr.bf16.mxu0 %v2786
    %3534 = vmatpush1.bf16.msra.mxu0 %v2785
    %3535 = vmatprep.subr.bf16.mxu0 %v2792
    %3536 = vmatpush1.bf16.msra.mxu0 %v2791
    %3537 = vmatprep.mubr.bf16.mxu0 %v1314
    %3538 = vmatmul.mubr.bf16.gmra.mrb[0].mxu0 %v1313
    %v3539 = vpop.f32.mrb[0].mxu0
    %v3540 = vadd.f32 %v3487, %v3539
    %v3541 = vpop.f32.mrb[0].mxu0
    %v3542 = vadd.f32 %v3489, %v3541
    %v3543 = vpop.f32.mrb[0].mxu0
    %v3544 = vadd.f32 %v3491, %v3543
    %v3545 = vpop.f32.mrb[0].mxu0
    %v3546 = vadd.f32 %v3493, %v3545
    %3547 = vmatprep.mubr.bf16.mxu0 %v1320
    %3548 = vmatmul.mubr.bf16.gmra.mrb[0].mxu0 %v1319
    %v3549 = vpop.f32.mrb[0].mxu0
    %v3550 = vadd.f32 %v3497, %v3549
    %v3551 = vpop.f32.mrb[0].mxu0
    %v3552 = vadd.f32 %v3499, %v3551
    %v3553 = vpop.f32.mrb[0].mxu0
    %v3554 = vadd.f32 %v3501, %v3553
    %v3555 = vpop.f32.mrb[0].mxu0
    %v3556 = vadd.f32 %v3503, %v3555
    %3557 = vdwg.mxu0
    %3558 = vst [vmem:[#allocation14] sm:$0xff] %v3222
    %3559 = vst [vmem:[#allocation14 + $0x8] sm:$0xff] %v3224
    %3560 = vst [vmem:[#allocation14 + $0x10] sm:$0xff] %v3381
    %3561 = vst [vmem:[#allocation14 + $0x18] sm:$0xff] %v3383
    %3562 = vst [vmem:[#allocation14 + $0x20] sm:$0xff] %v3540
    %3563 = vst [vmem:[#allocation14 + $0x28] sm:$0xff] %v3542
    %3564 = vst [vmem:[#allocation14 + $0x30] sm:$0xff] %v3226
    %3565 = vst [vmem:[#allocation14 + $0x38] sm:$0xff] %v3228
    %3566 = vst [vmem:[#allocation14 + $0x40] sm:$0xff] %v3385
    %3567 = vst [vmem:[#allocation14 + $0x48] sm:$0xff] %v3387
    %3568 = vst [vmem:[#allocation14 + $0x50] sm:$0xff] %v3544
    %3569 = vst [vmem:[#allocation14 + $0x58] sm:$0xff] %v3546
    %3570 = vst [vmem:[#allocation14 + $0x60] sm:$0xff] %v3232
    %3571 = vst [vmem:[#allocation14 + $0x68] sm:$0xff] %v3234
    %3572 = vst [vmem:[#allocation14 + $0x70] sm:$0xff] %v3391
    %3573 = vst [vmem:[#allocation14 + $0x78] sm:$0xff] %v3393
    %3574 = vst [vmem:[#allocation14 + $0x80] sm:$0xff] %v3550
    %3575 = vst [vmem:[#allocation14 + $0x88] sm:$0xff] %v3552
    %3576 = vst [vmem:[#allocation14 + $0x90] sm:$0xff] %v3236
    %3577 = vst [vmem:[#allocation14 + $0x98] sm:$0xff] %v3238
    %3578 = vst [vmem:[#allocation14 + $0xa0] sm:$0xff] %v3395
    %3579 = vst [vmem:[#allocation14 + $0xa8] sm:$0xff] %v3397
    %3580 = vst [vmem:[#allocation14 + $0xb0] sm:$0xff] %v3554
    %3581 = vst [vmem:[#allocation14 + $0xb8] sm:$0xff] %v3556
    // Predicated region
    $region54: #{tpu_custom_call.1} parent=1 // pred_check
      _
    $region55: #{tpu_custom_call.1} parent=1 // pred_check_branch
      %3583 = sbr.rel (0) target = $region57
    $region56: #{tpu_custom_call.1} parent=1 // pred_region
      %s3585 = ssub.s32 3072, 3072
      %3586 = vsyncadd [#allocation5], %s3585
      %s3587 = sshll.u32 [#allocation14], 4
      %s3588 = int_to_ptr.vmem [resolvable:$true] %s3587
      %3593 = dma.vmem_to_hbm [thread:$0]  %s3588, 3072, %s7, [#allocation5], 768, 768, 48
    $region57: #{tpu_custom_call.1} parent=1 // pred_fallthru
      _
    // Predicated region
    $region58: #{tpu_custom_call.1} parent=1 // pred_check
      _
    $region59: #{tpu_custom_call.1} parent=1 // pred_check_branch
      %3595 = sbr.rel (0) target = $region61
    $region60: #{tpu_custom_call.1} parent=1 // pred_region
      %3596 = dma.done [#allocation5], 3072
    $region61: #{tpu_custom_call.1} parent=1 // pred_fallthru
      _
    %3597 = vsyncpa [#allocation4], 1
    %3598 = vsyncpa [#allocation7], 1
    %3599 = vsyncpa [#allocation10], 1
    %3600 = vsyncpa [#allocation13], 1
    %3601 = vsyncpa [#allocation5], 1

</llo_original>
